<compile_context>
chip_gen: v7x
topology: tpu7x:2x2x1
jax: 0.10.0
libtpu: 0.0.40
codegen_flags: <defaults>
</compile_context>

<pallas_src>
import functools

import jax
import jax.numpy as jnp
from jax import lax
from jax.experimental import pallas as pl
from jax.experimental.pallas import tpu as pltpu

EPS = 1e-5
VMEM_LIMIT = 48 * 1024 * 1024      # safe on v5e/v6e (128 MiB) and v7x (64 MiB)
VMEM_TILE_BUDGET = 24 * 1024 * 1024


def _round_up(x, m):
    return (x + m - 1) // m * m


def _choose_tile_m(m, k, c, max_tile=512):
    """Largest row tile (multiple of 8, <= max_tile) whose double-buffered
    footprint (2x in-tile + 2x out-tile + weights, f32) fits the budget."""
    tile = min(max_tile, _round_up(m, 8))

    def footprint(t):
        return 4 * (2 * t * k + 2 * t * c + k * c + 8 * c)

    while tile > 8 and footprint(tile) > VMEM_TILE_BUDGET:
        tile = max(8, (tile // 2 // 8) * 8)
    return tile


def _pad_rows(a, mpad):
    m = a.shape[0]
    if mpad == m:
        return a
    return jnp.pad(a, ((0, mpad - m), (0, 0)))


# ---------------------------------------------------------------------------
# Pallas kernels
# ---------------------------------------------------------------------------
def _gemm_stats_kernel(p_ref, w_ref, y_ref, sum_ref, sq_ref):
    # conv1: y = patches @ W ; accumulate per-channel sum / sumsq for BN stats.
    @pl.when(pl.program_id(0) == 0)
    def _():
        sum_ref[...] = jnp.zeros_like(sum_ref)
        sq_ref[...] = jnp.zeros_like(sq_ref)

    y = jnp.dot(p_ref[...], w_ref[...], preferred_element_type=jnp.float32)
    y_ref[...] = y
    # zero-padded patch rows produce zero y rows -> no masking needed here.
    sum_ref[...] += jnp.sum(y, axis=0, keepdims=True)
    sq_ref[...] += jnp.sum(y * y, axis=0, keepdims=True)


def _bnrelu_gemm_stats_kernel(p_ref, s_ref, t_ref, w_ref, y_ref, sum_ref, sq_ref,
                              *, tile_m, m_real):
    # conv2: apply BN1 (scale/shift) + ReLU to the raw pre-activation patches,
    # GEMM, and accumulate BN2 stats.  Padded rows are masked out of the stats.
    @pl.when(pl.program_id(0) == 0)
    def _():
        sum_ref[...] = jnp.zeros_like(sum_ref)
        sq_ref[...] = jnp.zeros_like(sq_ref)

    h = jnp.maximum(p_ref[...] * s_ref[...] + t_ref[...], 0.0)
    y = jnp.dot(h, w_ref[...], preferred_element_type=jnp.float32)
    y_ref[...] = y

    rows = (pl.program_id(0) * tile_m
            + lax.broadcasted_iota(jnp.int32, (tile_m, 1), 0))
    ym = jnp.where(rows < m_real, y, 0.0)
    sum_ref[...] += jnp.sum(ym, axis=0, keepdims=True)
    sq_ref[...] += jnp.sum(ym * ym, axis=0, keepdims=True)


def _bnrelu_matmul_bias_kernel(x_ref, s_ref, t_ref, w_ref, b_ref, o_ref):
    # ConvTranspose2d(k=2, s=2): every output pixel gets exactly one tap, so
    # the op is one GEMM producing 4*Cout lanes per input pixel; BN2-apply +
    # ReLU are fused in front of it.
    h = jnp.maximum(x_ref[...] * s_ref[...] + t_ref[...], 0.0)
    o_ref[...] = (jnp.dot(h, w_ref[...], preferred_element_type=jnp.float32)
                  + b_ref[...])


# ---------------------------------------------------------------------------
# pallas_call wrappers (tiled over M with BlockSpec pipelining)
# ---------------------------------------------------------------------------
def _call_gemm_stats(patches, w_mat):
    m, k = patches.shape
    c = w_mat.shape[1]
    tile = _choose_tile_m(m, k, c)
    mpad = _round_up(m, tile)
    p = _pad_rows(patches, mpad)
    grid = (mpad // tile,)

    y, s, q = pl.pallas_call(
        _gemm_stats_kernel,
        out_shape=(jax.ShapeDtypeStruct((mpad, c), jnp.float32),
                   jax.ShapeDtypeStruct((1, c), jnp.float32),
                   jax.ShapeDtypeStruct((1, c), jnp.float32)),
        grid=grid,
        in_specs=[pl.BlockSpec((tile, k), lambda i: (i, 0)),
                  pl.BlockSpec((k, c), lambda i: (0, 0))],
        out_specs=(pl.BlockSpec((tile, c), lambda i: (i, 0)),
                   pl.BlockSpec((1, c), lambda i: (0, 0)),
                   pl.BlockSpec((1, c), lambda i: (0, 0))),
        compiler_params=pltpu.CompilerParams(
            dimension_semantics=("arbitrary",),
            vmem_limit_bytes=VMEM_LIMIT),
        cost_estimate=pl.CostEstimate(
            flops=2 * mpad * k * c, transcendentals=0,
            bytes_accessed=4 * (mpad * k + k * c + mpad * c + 2 * c)),
    )(p, w_mat)
    return y, s, q


def _call_bnrelu_gemm_stats(patches, scale_rep, shift_rep, w_mat, m_real):
    m, k = patches.shape
    c = w_mat.shape[1]
    tile = _choose_tile_m(m, k, c)
    mpad = _round_up(m, tile)
    p = _pad_rows(patches, mpad)
    grid = (mpad // tile,)
    kernel = functools.partial(_bnrelu_gemm_stats_kernel,
                               tile_m=tile, m_real=m_real)

    y, s, q = pl.pallas_call(
        kernel,
        out_shape=(jax.ShapeDtypeStruct((mpad, c), jnp.float32),
                   jax.ShapeDtypeStruct((1, c), jnp.float32),
                   jax.ShapeDtypeStruct((1, c), jnp.float32)),
        grid=grid,
        in_specs=[pl.BlockSpec((tile, k), lambda i: (i, 0)),
                  pl.BlockSpec((1, k), lambda i: (0, 0)),
                  pl.BlockSpec((1, k), lambda i: (0, 0)),
                  pl.BlockSpec((k, c), lambda i: (0, 0))],
        out_specs=(pl.BlockSpec((tile, c), lambda i: (i, 0)),
                   pl.BlockSpec((1, c), lambda i: (0, 0)),
                   pl.BlockSpec((1, c), lambda i: (0, 0))),
        compiler_params=pltpu.CompilerParams(
            dimension_semantics=("arbitrary",),
            vmem_limit_bytes=VMEM_LIMIT),
        cost_estimate=pl.CostEstimate(
            flops=2 * mpad * k * c + 2 * mpad * k, transcendentals=0,
            bytes_accessed=4 * (mpad * k + 2 * k + k * c + mpad * c + 2 * c)),
    )(p, scale_rep, shift_rep, w_mat)
    return y, s, q, tile


def _call_bnrelu_matmul_bias(x_pad, scale, shift, w_mat, b_row, tile):
    mpad, k = x_pad.shape
    ncol = w_mat.shape[1]
    grid = (mpad // tile,)

    return pl.pallas_call(
        _bnrelu_matmul_bias_kernel,
        out_shape=jax.ShapeDtypeStruct((mpad, ncol), jnp.float32),
        grid=grid,
        in_specs=[pl.BlockSpec((tile, k), lambda i: (i, 0)),
                  pl.BlockSpec((1, k), lambda i: (0, 0)),
                  pl.BlockSpec((1, k), lambda i: (0, 0)),
                  pl.BlockSpec((k, ncol), lambda i: (0, 0)),
                  pl.BlockSpec((1, ncol), lambda i: (0, 0))],
        out_specs=pl.BlockSpec((tile, ncol), lambda i: (i, 0)),
        compiler_params=pltpu.CompilerParams(
            dimension_semantics=("parallel",),   # pure per-tile -> megacore on v7x
            vmem_limit_bytes=VMEM_LIMIT),
        cost_estimate=pl.CostEstimate(
            flops=2 * mpad * k * ncol + 2 * mpad * k, transcendentals=0,
            bytes_accessed=4 * (mpad * k + 2 * k + k * ncol + mpad * ncol + ncol)),
    )(x_pad, scale, shift, w_mat, b_row)


# ---------------------------------------------------------------------------
# Glue (layout plumbing: im2col, weight flattening, pixel interleave)
# ---------------------------------------------------------------------------
def _im2col_3x3_valid(x_nhwc):
    n, h, w, c = x_nhwc.shape
    ho, wo = h - 2, w - 2
    cols = [x_nhwc[:, dy:dy + ho, dx:dx + wo, :]
            for dy in range(3) for dx in range(3)]
    patches = jnp.concatenate(cols, axis=-1)      # (N, Ho, Wo, 9*C) tap-major
    return patches.reshape(n * ho * wo, 9 * c), (ho, wo)


def _bn_scale_shift(sum_row, sq_row, count, gamma, beta):
    # Training-mode BatchNorm batch stats from single-pass (sum, sumsq).
    mean = sum_row / count
    var = jnp.maximum(sq_row / count - mean * mean, 0.0)
    scale = gamma.reshape(1, -1) * lax.rsqrt(var + EPS)
    shift = beta.reshape(1, -1) - mean * scale
    return scale, shift


def decoder_block_forward(x_nchw, params):
    # b1/b2 are unused: a conv bias followed by BatchNorm mean-subtraction
    # cancels exactly, so it is dropped from the kernel path.
    (w1, _b1, g1, be1, w2, _b2, g2, be2, wt, bt) = params
    n, cin, h, w = x_nchw.shape
    cmid = w1.shape[0]
    cout = wt.shape[1]
    cmid_p = _round_up(cmid, 128)       # lane-dense GEMM N-dim / output stores
    cout_p = _round_up(cout, 32)        # 4 * cout_p is a multiple of 128

    x = jnp.transpose(x_nchw, (0, 2, 3, 1)).astype(jnp.float32)   # NHWC

    # ---- conv1 (3x3 valid) GEMM + BN1 statistics -----------------------------
    p1, (h1, w1s) = _im2col_3x3_valid(x)                 # (M1, 9*Cin)
    m1 = n * h1 * w1s
    w1p = jnp.pad(w1, ((0, cmid_p - cmid), (0, 0), (0, 0), (0, 0)))
    w1m = jnp.transpose(w1p, (2, 3, 1, 0)).reshape(9 * cin, cmid_p)
    y1, s1, q1 = _call_gemm_stats(p1, w1m)               # y1: (Mpad1, Cmid_p)

    g1p = jnp.pad(g1, (0, cmid_p - cmid))
    be1p = jnp.pad(be1, (0, cmid_p - cmid))
    scale1, shift1 = _bn_scale_shift(s1, q1, float(m1), g1p, be1p)

    # ---- conv2 (BN1-apply + ReLU fused into the GEMM) + BN2 statistics -------
    y1_img = y1[:m1].reshape(n, h1, w1s, cmid_p)
    p2, (h2, w2s) = _im2col_3x3_valid(y1_img)            # (M2, 9*Cmid_p)
    m2 = n * h2 * w2s
    w2p = jnp.pad(w2, ((0, cmid_p - cmid), (0, cmid_p - cmid), (0, 0), (0, 0)))
    w2m = jnp.transpose(w2p, (2, 3, 1, 0)).reshape(9 * cmid_p, cmid_p)
    s1r = jnp.tile(scale1, (1, 9))                       # tap-major replication
    t1r = jnp.tile(shift1, (1, 9))
    y2, s2, q2, tile2 = _call_bnrelu_gemm_stats(p2, s1r, t1r, w2m, m2)

    g2p = jnp.pad(g2, (0, cmid_p - cmid))
    be2p = jnp.pad(be2, (0, cmid_p - cmid))
    scale2, shift2 = _bn_scale_shift(s2, q2, float(m2), g2p, be2p)

    # ---- ConvTranspose2d(k=2, s=2) with BN2-apply + ReLU fused ---------------
    wtp = jnp.pad(wt, ((0, cmid_p - cmid), (0, cout_p - cout), (0, 0), (0, 0)))
    wtm = jnp.transpose(wtp, (0, 2, 3, 1)).reshape(cmid_p, 4 * cout_p)
    btr = jnp.tile(jnp.pad(bt, (0, cout_p - cout)), 4).reshape(1, 4 * cout_p)
    y = _call_bnrelu_matmul_bias(y2, scale2, shift2, wtm, btr, tile2)

    y = y[:m2].reshape(n, h2, w2s, 2, 2, cout_p)[..., :cout]
    y = jnp.transpose(y, (0, 1, 3, 2, 4, 5)).reshape(n, 2 * h2, 2 * w2s, cout)
    return jnp.transpose(y, (0, 3, 1, 2))                # back to NCHW


# ---------------------------------------------------------------------------
# Deterministic parameter init (shapes from the nn.Module __init__)
# ---------------------------------------------------------------------------
def init_params(key, cin, cmid, cout):
    ks = jax.random.split(key, 10)
    w1 = 0.1 * jax.random.normal(ks[0], (cmid, cin, 3, 3), jnp.float32)
    b1 = 0.1 * jax.random.normal(ks[1], (cmid,), jnp.float32)
    g1 = 1.0 + 0.1 * jax.random.normal(ks[2], (cmid,), jnp.float32)
    be1 = 0.1 * jax.random.normal(ks[3], (cmid,), jnp.float32)
    w2 = 0.1 * jax.random.normal(ks[4], (cmid, cmid, 3, 3), jnp.float32)
    b2 = 0.1 * jax.random.normal(ks[5], (cmid,), jnp.float32)
    g2 = 1.0 + 0.1 * jax.random.normal(ks[6], (cmid,), jnp.float32)
    be2 = 0.1 * jax.random.normal(ks[7], (cmid,), jnp.float32)
    wt = 0.1 * jax.random.normal(ks[8], (cmid, cout, 2, 2), jnp.float32)
    bt = 0.1 * jax.random.normal(ks[9], (cout,), jnp.float32)
    return (w1, b1, g1, be1, w2, b2, g2, be2, wt, bt)


# ---------------------------------------------------------------------------
# Pure-JAX reference (lax conv, with the conv biases — they cancel under BN)
# ---------------------------------------------------------------------------
def _bn_relu_ref(y, g, b):
    mean = jnp.mean(y, axis=(0, 2, 3), keepdims=True)
    var = jnp.mean(jnp.square(y - mean), axis=(0, 2, 3), keepdims=True)
    yhat = (y - mean) / jnp.sqrt(var + EPS)
    return jnp.maximum(yhat * g[None, :, None, None] + b[None, :, None, None], 0.0)


def ref_forward(x, params):
    (w1, b1, g1, be1, w2, b2, g2, be2, wt, bt) = params
    dn = ("NCHW", "OIHW", "NCHW")
    y = lax.conv_general_dilated(x, w1, (1, 1), "VALID", dimension_numbers=dn)
    y = _bn_relu_ref(y + b1[None, :, None, None], g1, be1)
    y = lax.conv_general_dilated(y, w2, (1, 1), "VALID", dimension_numbers=dn)
    y = _bn_relu_ref(y + b2[None, :, None, None], g2, be2)
    t = jnp.einsum("nchw,coyx->nohywx", y, wt)
    n, co, ho, _, wo, _ = t.shape
    return t.reshape(n, co, 2 * ho, 2 * wo) + bt[None, :, None, None]


if __name__ == "__main__":
    key = jax.random.PRNGKey(0)
    kx, kp = jax.random.split(key)
    N, Cin, Cmid, Cout, H, W = 2, 4, 8, 4, 16, 16
    x = jax.random.normal(kx, (N, Cin, H, W), jnp.float32)
    params = init_params(kp, Cin, Cmid, Cout)

    fwd = jax.jit(decoder_block_forward)
    out = jax.block_until_ready(fwd(x, params))

    assert out.shape == (N, Cout, 2 * (H - 4), 2 * (W - 4)), out.shape
    ref = ref_forward(x, params)
    max_err = float(jnp.max(jnp.abs(out - ref)))
    assert max_err < 5e-4, max_err
    print("KERNEL_OK")
</pallas_src>

<mosaic_0001>
module attributes {stable_mosaic.version = 11 : i64} {
  func.func @_gemm_stats_kernel(%arg0: i32, %arg1: memref<392x36xf32, #tpu.memory_space<vmem>>, %arg2: memref<36x128xf32, #tpu.memory_space<vmem>>, %arg3: memref<392x128xf32, #tpu.memory_space<vmem>>, %arg4: memref<1x128xf32, #tpu.memory_space<vmem>>, %arg5: memref<1x128xf32, #tpu.memory_space<vmem>>) attributes {dimension_semantics = [#tpu.dimension_semantics<arbitrary>], iteration_bounds = array<i64: 1>, scalar_prefetch = 0 : i64, scratch_operands = 0 : i64, tpu.core_type = #tpu.core_type<tc>, window_params = [{transform_indices = @transform_0, window_bounds = array<i64: 392, 36>}, {pipeline_mode = #tpu.pipeline_mode<synchronous>, transform_indices = @transform_1, window_bounds = array<i64: 36, 128>}, {transform_indices = @transform_2, window_bounds = array<i64: 392, 128>}, {pipeline_mode = #tpu.pipeline_mode<synchronous>, transform_indices = @transform_3, window_bounds = array<i64: 1, 128>}, {pipeline_mode = #tpu.pipeline_mode<synchronous>, transform_indices = @transform_4, window_bounds = array<i64: 1, 128>}]} {
    %c0_i32 = arith.constant 0 : i32
    %0 = arith.cmpi eq, %arg0, %c0_i32 : i32
    %1 = arith.extui %0 : i1 to i32
    %c0_i32_0 = arith.constant 0 : i32
    %2 = arith.cmpi ne, %1, %c0_i32_0 : i32
    scf.if %2 {
      %cst_16 = arith.constant 0.000000e+00 : f32
      %18 = vector.broadcast %cst_16 : f32 to vector<1x128xf32>
      %c0_17 = arith.constant 0 : index
      %c0_18 = arith.constant 0 : index
      %19 = vector.load %arg4[%c0_17, %c0_18] : memref<1x128xf32, #tpu.memory_space<vmem>>, vector<1x128xf32>
      tpu.vector_store %arg4[%c0_17, %c0_18], %18 {strides = array<i32>} : memref<1x128xf32, #tpu.memory_space<vmem>>, vector<1x128xf32>,
      %cst_19 = arith.constant 0.000000e+00 : f32
      %20 = vector.broadcast %cst_19 : f32 to vector<1x128xf32>
      %c0_20 = arith.constant 0 : index
      %c0_21 = arith.constant 0 : index
      %21 = vector.load %arg5[%c0_20, %c0_21] : memref<1x128xf32, #tpu.memory_space<vmem>>, vector<1x128xf32>
      tpu.vector_store %arg5[%c0_20, %c0_21], %20 {strides = array<i32>} : memref<1x128xf32, #tpu.memory_space<vmem>>, vector<1x128xf32>,
    } else {
    }
    %c0 = arith.constant 0 : index
    %c0_1 = arith.constant 0 : index
    %3 = vector.load %arg1[%c0, %c0_1] : memref<392x36xf32, #tpu.memory_space<vmem>>, vector<392x36xf32>
    %c0_2 = arith.constant 0 : index
    %c0_3 = arith.constant 0 : index
    %4 = vector.load %arg2[%c0_2, %c0_3] : memref<36x128xf32, #tpu.memory_space<vmem>>, vector<36x128xf32>
    %cst = arith.constant dense<0.000000e+00> : vector<392x128xf32>
    %5 = tpu.matmul %3, %4, %cst {dimension_numbers = #tpu.dot_dimension_numbers<[1], [0], [0], [1], [0, 0, 1, 1], [], []>} : vector<392x36xf32>, vector<36x128xf32>, vector<392x128xf32> -> vector<392x128xf32>
    %c0_4 = arith.constant 0 : index
    %c0_5 = arith.constant 0 : index
    %6 = vector.load %arg3[%c0_4, %c0_5] : memref<392x128xf32, #tpu.memory_space<vmem>>, vector<392x128xf32>
    tpu.vector_store %arg3[%c0_4, %c0_5], %5 {strides = array<i32>} : memref<392x128xf32, #tpu.memory_space<vmem>>, vector<392x128xf32>,
    %c0_6 = arith.constant 0 : index
    %c0_7 = arith.constant 0 : index
    %7 = vector.load %arg4[%c0_6, %c0_7] : memref<1x128xf32, #tpu.memory_space<vmem>>, vector<1x128xf32>
    %cst_8 = arith.constant dense<0.000000e+00> : vector<128xf32>
    %8 = vector.multi_reduction <add>, %5, %cst_8 [0] : vector<392x128xf32> to vector<128xf32>
    %9 = vector.shape_cast %8 : vector<128xf32> to vector<1x128xf32>
    %10 = arith.addf %7, %9 : vector<1x128xf32>
    %c0_9 = arith.constant 0 : index
    %c0_10 = arith.constant 0 : index
    %11 = vector.load %arg4[%c0_9, %c0_10] : memref<1x128xf32, #tpu.memory_space<vmem>>, vector<1x128xf32>
    tpu.vector_store %arg4[%c0_9, %c0_10], %10 {strides = array<i32>} : memref<1x128xf32, #tpu.memory_space<vmem>>, vector<1x128xf32>,
    %c0_11 = arith.constant 0 : index
    %c0_12 = arith.constant 0 : index
    %12 = vector.load %arg5[%c0_11, %c0_12] : memref<1x128xf32, #tpu.memory_space<vmem>>, vector<1x128xf32>
    %13 = arith.mulf %5, %5 : vector<392x128xf32>
    %cst_13 = arith.constant dense<0.000000e+00> : vector<128xf32>
    %14 = vector.multi_reduction <add>, %13, %cst_13 [0] : vector<392x128xf32> to vector<128xf32>
    %15 = vector.shape_cast %14 : vector<128xf32> to vector<1x128xf32>
    %16 = arith.addf %12, %15 : vector<1x128xf32>
    %c0_14 = arith.constant 0 : index
    %c0_15 = arith.constant 0 : index
    %17 = vector.load %arg5[%c0_14, %c0_15] : memref<1x128xf32, #tpu.memory_space<vmem>>, vector<1x128xf32>
    tpu.vector_store %arg5[%c0_14, %c0_15], %16 {strides = array<i32>} : memref<1x128xf32, #tpu.memory_space<vmem>>, vector<1x128xf32>,
    return
  }
  func.func @transform_0(%arg0: i32) -> (i32, i32) {
    %c0_i32 = arith.constant 0 : i32
    %c0_i32_0 = arith.constant 0 : i32
    return %arg0, %c0_i32 : i32, i32
  }
  func.func @transform_1(%arg0: i32) -> (i32, i32) {
    %c0_i32 = arith.constant 0 : i32
    %c0_i32_0 = arith.constant 0 : i32
    %c0_i32_1 = arith.constant 0 : i32
    return %c0_i32, %c0_i32_0 : i32, i32
  }
  func.func @transform_2(%arg0: i32) -> (i32, i32) {
    %c0_i32 = arith.constant 0 : i32
    %c0_i32_0 = arith.constant 0 : i32
    return %arg0, %c0_i32 : i32, i32
  }
  func.func @transform_3(%arg0: i32) -> (i32, i32) {
    %c0_i32 = arith.constant 0 : i32
    %c0_i32_0 = arith.constant 0 : i32
    %c0_i32_1 = arith.constant 0 : i32
    return %c0_i32, %c0_i32_0 : i32, i32
  }
  func.func @transform_4(%arg0: i32) -> (i32, i32) {
    %c0_i32 = arith.constant 0 : i32
    %c0_i32_0 = arith.constant 0 : i32
    %c0_i32_1 = arith.constant 0 : i32
    return %c0_i32, %c0_i32_0 : i32, i32
  }
}

module attributes {stable_mosaic.version = 11 : i64} {
  func.func @_bnrelu_gemm_stats_kernel(%arg0: i32, %arg1: memref<288x1152xf32, #tpu.memory_space<vmem>>, %arg2: memref<1x1152xf32, #tpu.memory_space<vmem>>, %arg3: memref<1x1152xf32, #tpu.memory_space<vmem>>, %arg4: memref<1152x128xf32, #tpu.memory_space<vmem>>, %arg5: memref<288x128xf32, #tpu.memory_space<vmem>>, %arg6: memref<1x128xf32, #tpu.memory_space<vmem>>, %arg7: memref<1x128xf32, #tpu.memory_space<vmem>>) attributes {dimension_semantics = [#tpu.dimension_semantics<arbitrary>], iteration_bounds = array<i64: 1>, scalar_prefetch = 0 : i64, scratch_operands = 0 : i64, tpu.core_type = #tpu.core_type<tc>, window_params = [{transform_indices = @transform_0, window_bounds = array<i64: 288, 1152>}, {pipeline_mode = #tpu.pipeline_mode<synchronous>, transform_indices = @transform_1, window_bounds = array<i64: 1, 1152>}, {pipeline_mode = #tpu.pipeline_mode<synchronous>, transform_indices = @transform_2, window_bounds = array<i64: 1, 1152>}, {pipeline_mode = #tpu.pipeline_mode<synchronous>, transform_indices = @transform_3, window_bounds = array<i64: 1152, 128>}, {transform_indices = @transform_4, window_bounds = array<i64: 288, 128>}, {pipeline_mode = #tpu.pipeline_mode<synchronous>, transform_indices = @transform_5, window_bounds = array<i64: 1, 128>}, {pipeline_mode = #tpu.pipeline_mode<synchronous>, transform_indices = @transform_6, window_bounds = array<i64: 1, 128>}]} {
    %c0_i32 = arith.constant 0 : i32
    %0 = arith.cmpi eq, %arg0, %c0_i32 : i32
    %1 = arith.extui %0 : i1 to i32
    %c0_i32_0 = arith.constant 0 : i32
    %2 = arith.cmpi ne, %1, %c0_i32_0 : i32
    scf.if %2 {
      %cst_23 = arith.constant 0.000000e+00 : f32
      %36 = vector.broadcast %cst_23 : f32 to vector<1x128xf32>
      %c0_24 = arith.constant 0 : index
      %c0_25 = arith.constant 0 : index
      %37 = vector.load %arg6[%c0_24, %c0_25] : memref<1x128xf32, #tpu.memory_space<vmem>>, vector<1x128xf32>
      tpu.vector_store %arg6[%c0_24, %c0_25], %36 {strides = array<i32>} : memref<1x128xf32, #tpu.memory_space<vmem>>, vector<1x128xf32>,
      %cst_26 = arith.constant 0.000000e+00 : f32
      %38 = vector.broadcast %cst_26 : f32 to vector<1x128xf32>
      %c0_27 = arith.constant 0 : index
      %c0_28 = arith.constant 0 : index
      %39 = vector.load %arg7[%c0_27, %c0_28] : memref<1x128xf32, #tpu.memory_space<vmem>>, vector<1x128xf32>
      tpu.vector_store %arg7[%c0_27, %c0_28], %38 {strides = array<i32>} : memref<1x128xf32, #tpu.memory_space<vmem>>, vector<1x128xf32>,
    } else {
    }
    %c0 = arith.constant 0 : index
    %c0_1 = arith.constant 0 : index
    %3 = vector.load %arg1[%c0, %c0_1] : memref<288x1152xf32, #tpu.memory_space<vmem>>, vector<288x1152xf32>
    %c0_2 = arith.constant 0 : index
    %c0_3 = arith.constant 0 : index
    %4 = vector.load %arg2[%c0_2, %c0_3] : memref<1x1152xf32, #tpu.memory_space<vmem>>, vector<1x1152xf32>
    %5 = vector.broadcast %4 : vector<1x1152xf32> to vector<288x1152xf32>
    %6 = arith.mulf %3, %5 : vector<288x1152xf32>
    %c0_4 = arith.constant 0 : index
    %c0_5 = arith.constant 0 : index
    %7 = vector.load %arg3[%c0_4, %c0_5] : memref<1x1152xf32, #tpu.memory_space<vmem>>, vector<1x1152xf32>
    %8 = vector.broadcast %7 : vector<1x1152xf32> to vector<288x1152xf32>
    %9 = arith.addf %6, %8 : vector<288x1152xf32>
    %cst = arith.constant 0.000000e+00 : f32
    %10 = vector.broadcast %cst : f32 to vector<288x1152xf32>
    %11 = arith.maximumf %9, %10 : vector<288x1152xf32>
    %c0_6 = arith.constant 0 : index
    %c0_7 = arith.constant 0 : index
    %12 = vector.load %arg4[%c0_6, %c0_7] : memref<1152x128xf32, #tpu.memory_space<vmem>>, vector<1152x128xf32>
    %cst_8 = arith.constant dense<0.000000e+00> : vector<288x128xf32>
    %13 = tpu.matmul %11, %12, %cst_8 {dimension_numbers = #tpu.dot_dimension_numbers<[1], [0], [0], [1], [0, 0, 1, 1], [], []>} : vector<288x1152xf32>, vector<1152x128xf32>, vector<288x128xf32> -> vector<288x128xf32>
    %c0_9 = arith.constant 0 : index
    %c0_10 = arith.constant 0 : index
    %14 = vector.load %arg5[%c0_9, %c0_10] : memref<288x128xf32, #tpu.memory_space<vmem>>, vector<288x128xf32>
    tpu.vector_store %arg5[%c0_9, %c0_10], %13 {strides = array<i32>} : memref<288x128xf32, #tpu.memory_space<vmem>>, vector<288x128xf32>,
    %c288_i32 = arith.constant 288 : i32
    %15 = arith.muli %arg0, %c288_i32 : i32
    %16 = tpu.iota {dimensions = array<i32: 0>} : vector<288x1xi32>
    %17 = vector.broadcast %15 : i32 to vector<288x1xi32>
    %18 = arith.addi %17, %16 : vector<288x1xi32>
    %c288_i32_11 = arith.constant 288 : i32
    %19 = vector.broadcast %c288_i32_11 : i32 to vector<288x1xi32>
    %20 = arith.cmpi slt, %18, %19 : vector<288x1xi32>
    %cst_12 = arith.constant 0.000000e+00 : f32
    %21 = vector.shape_cast %20 : vector<288x1xi1> to vector<288x1xi1>
    %22 = vector.broadcast %21 : vector<288x1xi1> to vector<288x128xi1>
    %23 = vector.broadcast %cst_12 : f32 to vector<288x128xf32>
    %24 = arith.select %22, %13, %23 : vector<288x128xi1>, vector<288x128xf32>
    %c0_13 = arith.constant 0 : index
    %c0_14 = arith.constant 0 : index
    %25 = vector.load %arg6[%c0_13, %c0_14] : memref<1x128xf32, #tpu.memory_space<vmem>>, vector<1x128xf32>
    %cst_15 = arith.constant dense<0.000000e+00> : vector<128xf32>
    %26 = vector.multi_reduction <add>, %24, %cst_15 [0] : vector<288x128xf32> to vector<128xf32>
    %27 = vector.shape_cast %26 : vector<128xf32> to vector<1x128xf32>
    %28 = arith.addf %25, %27 : vector<1x128xf32>
    %c0_16 = arith.constant 0 : index
    %c0_17 = arith.constant 0 : index
    %29 = vector.load %arg6[%c0_16, %c0_17] : memref<1x128xf32, #tpu.memory_space<vmem>>, vector<1x128xf32>
    tpu.vector_store %arg6[%c0_16, %c0_17], %28 {strides = array<i32>} : memref<1x128xf32, #tpu.memory_space<vmem>>, vector<1x128xf32>,
    %c0_18 = arith.constant 0 : index
    %c0_19 = arith.constant 0 : index
    %30 = vector.load %arg7[%c0_18, %c0_19] : memref<1x128xf32, #tpu.memory_space<vmem>>, vector<1x128xf32>
    %31 = arith.mulf %24, %24 : vector<288x128xf32>
    %cst_20 = arith.constant dense<0.000000e+00> : vector<128xf32>
    %32 = vector.multi_reduction <add>, %31, %cst_20 [0] : vector<288x128xf32> to vector<128xf32>
    %33 = vector.shape_cast %32 : vector<128xf32> to vector<1x128xf32>
    %34 = arith.addf %30, %33 : vector<1x128xf32>
    %c0_21 = arith.constant 0 : index
    %c0_22 = arith.constant 0 : index
    %35 = vector.load %arg7[%c0_21, %c0_22] : memref<1x128xf32, #tpu.memory_space<vmem>>, vector<1x128xf32>
    tpu.vector_store %arg7[%c0_21, %c0_22], %34 {strides = array<i32>} : memref<1x128xf32, #tpu.memory_space<vmem>>, vector<1x128xf32>,
    return
  }
  func.func @transform_0(%arg0: i32) -> (i32, i32) {
    %c0_i32 = arith.constant 0 : i32
    %c0_i32_0 = arith.constant 0 : i32
    return %arg0, %c0_i32 : i32, i32
  }
  func.func @transform_1(%arg0: i32) -> (i32, i32) {
    %c0_i32 = arith.constant 0 : i32
    %c0_i32_0 = arith.constant 0 : i32
    %c0_i32_1 = arith.constant 0 : i32
    return %c0_i32, %c0_i32_0 : i32, i32
  }
  func.func @transform_2(%arg0: i32) -> (i32, i32) {
    %c0_i32 = arith.constant 0 : i32
    %c0_i32_0 = arith.constant 0 : i32
    %c0_i32_1 = arith.constant 0 : i32
    return %c0_i32, %c0_i32_0 : i32, i32
  }
  func.func @transform_3(%arg0: i32) -> (i32, i32) {
    %c0_i32 = arith.constant 0 : i32
    %c0_i32_0 = arith.constant 0 : i32
    %c0_i32_1 = arith.constant 0 : i32
    return %c0_i32, %c0_i32_0 : i32, i32
  }
  func.func @transform_4(%arg0: i32) -> (i32, i32) {
    %c0_i32 = arith.constant 0 : i32
    %c0_i32_0 = arith.constant 0 : i32
    return %arg0, %c0_i32 : i32, i32
  }
  func.func @transform_5(%arg0: i32) -> (i32, i32) {
    %c0_i32 = arith.constant 0 : i32
    %c0_i32_0 = arith.constant 0 : i32
    %c0_i32_1 = arith.constant 0 : i32
    return %c0_i32, %c0_i32_0 : i32, i32
  }
  func.func @transform_6(%arg0: i32) -> (i32, i32) {
    %c0_i32 = arith.constant 0 : i32
    %c0_i32_0 = arith.constant 0 : i32
    %c0_i32_1 = arith.constant 0 : i32
    return %c0_i32, %c0_i32_0 : i32, i32
  }
}

module attributes {stable_mosaic.version = 11 : i64} {
  func.func @_bnrelu_matmul_bias_kernel(%arg0: i32, %arg1: memref<288x128xf32, #tpu.memory_space<vmem>>, %arg2: memref<1x128xf32, #tpu.memory_space<vmem>>, %arg3: memref<1x128xf32, #tpu.memory_space<vmem>>, %arg4: memref<128x128xf32, #tpu.memory_space<vmem>>, %arg5: memref<1x128xf32, #tpu.memory_space<vmem>>, %arg6: memref<288x128xf32, #tpu.memory_space<vmem>>) attributes {dimension_semantics = [#tpu.dimension_semantics<parallel>], iteration_bounds = array<i64: 1>, scalar_prefetch = 0 : i64, scratch_operands = 0 : i64, tpu.core_type = #tpu.core_type<tc>, window_params = [{transform_indices = @transform_0, window_bounds = array<i64: 288, 128>}, {pipeline_mode = #tpu.pipeline_mode<synchronous>, transform_indices = @transform_1, window_bounds = array<i64: 1, 128>}, {pipeline_mode = #tpu.pipeline_mode<synchronous>, transform_indices = @transform_2, window_bounds = array<i64: 1, 128>}, {pipeline_mode = #tpu.pipeline_mode<synchronous>, transform_indices = @transform_3, window_bounds = array<i64: 128, 128>}, {pipeline_mode = #tpu.pipeline_mode<synchronous>, transform_indices = @transform_4, window_bounds = array<i64: 1, 128>}, {transform_indices = @transform_5, window_bounds = array<i64: 288, 128>}]} {
    %c0 = arith.constant 0 : index
    %c0_0 = arith.constant 0 : index
    %0 = vector.load %arg1[%c0, %c0_0] : memref<288x128xf32, #tpu.memory_space<vmem>>, vector<288x128xf32>
    %c0_1 = arith.constant 0 : index
    %c0_2 = arith.constant 0 : index
    %1 = vector.load %arg2[%c0_1, %c0_2] : memref<1x128xf32, #tpu.memory_space<vmem>>, vector<1x128xf32>
    %2 = vector.broadcast %1 : vector<1x128xf32> to vector<288x128xf32>
    %3 = arith.mulf %0, %2 : vector<288x128xf32>
    %c0_3 = arith.constant 0 : index
    %c0_4 = arith.constant 0 : index
    %4 = vector.load %arg3[%c0_3, %c0_4] : memref<1x128xf32, #tpu.memory_space<vmem>>, vector<1x128xf32>
    %5 = vector.broadcast %4 : vector<1x128xf32> to vector<288x128xf32>
    %6 = arith.addf %3, %5 : vector<288x128xf32>
    %cst = arith.constant 0.000000e+00 : f32
    %7 = vector.broadcast %cst : f32 to vector<288x128xf32>
    %8 = arith.maximumf %6, %7 : vector<288x128xf32>
    %c0_5 = arith.constant 0 : index
    %c0_6 = arith.constant 0 : index
    %9 = vector.load %arg4[%c0_5, %c0_6] : memref<128x128xf32, #tpu.memory_space<vmem>>, vector<128x128xf32>
    %cst_7 = arith.constant dense<0.000000e+00> : vector<288x128xf32>
    %10 = tpu.matmul %8, %9, %cst_7 {dimension_numbers = #tpu.dot_dimension_numbers<[1], [0], [0], [1], [0, 0, 1, 1], [], []>} : vector<288x128xf32>, vector<128x128xf32>, vector<288x128xf32> -> vector<288x128xf32>
    %c0_8 = arith.constant 0 : index
    %c0_9 = arith.constant 0 : index
    %11 = vector.load %arg5[%c0_8, %c0_9] : memref<1x128xf32, #tpu.memory_space<vmem>>, vector<1x128xf32>
    %12 = vector.broadcast %11 : vector<1x128xf32> to vector<288x128xf32>
    %13 = arith.addf %10, %12 : vector<288x128xf32>
    %c0_10 = arith.constant 0 : index
    %c0_11 = arith.constant 0 : index
    %14 = vector.load %arg6[%c0_10, %c0_11] : memref<288x128xf32, #tpu.memory_space<vmem>>, vector<288x128xf32>
    tpu.vector_store %arg6[%c0_10, %c0_11], %13 {strides = array<i32>} : memref<288x128xf32, #tpu.memory_space<vmem>>, vector<288x128xf32>,
    return
  }
  func.func @transform_0(%arg0: i32) -> (i32, i32) {
    %c0_i32 = arith.constant 0 : i32
    %c0_i32_0 = arith.constant 0 : i32
    return %arg0, %c0_i32 : i32, i32
  }
  func.func @transform_1(%arg0: i32) -> (i32, i32) {
    %c0_i32 = arith.constant 0 : i32
    %c0_i32_0 = arith.constant 0 : i32
    %c0_i32_1 = arith.constant 0 : i32
    return %c0_i32, %c0_i32_0 : i32, i32
  }
  func.func @transform_2(%arg0: i32) -> (i32, i32) {
    %c0_i32 = arith.constant 0 : i32
    %c0_i32_0 = arith.constant 0 : i32
    %c0_i32_1 = arith.constant 0 : i32
    return %c0_i32, %c0_i32_0 : i32, i32
  }
  func.func @transform_3(%arg0: i32) -> (i32, i32) {
    %c0_i32 = arith.constant 0 : i32
    %c0_i32_0 = arith.constant 0 : i32
    %c0_i32_1 = arith.constant 0 : i32
    return %c0_i32, %c0_i32_0 : i32, i32
  }
  func.func @transform_4(%arg0: i32) -> (i32, i32) {
    %c0_i32 = arith.constant 0 : i32
    %c0_i32_0 = arith.constant 0 : i32
    %c0_i32_1 = arith.constant 0 : i32
    return %c0_i32, %c0_i32_0 : i32, i32
  }
  func.func @transform_5(%arg0: i32) -> (i32, i32) {
    %c0_i32 = arith.constant 0 : i32
    %c0_i32_0 = arith.constant 0 : i32
    return %arg0, %c0_i32 : i32, i32
  }
}

</mosaic_0001>

<llo_original>
// kernel: decoder_block_forward.3
$region0: #{decoder_block_forward.3}
  #allocation0 [shape = 'u32[]', space=smem, size = 0x4, offset = 0x4, fixed_abs, tag = 'smem constant byte address 0x4 - core index']
  #allocation1 [shape = 'u32[144,128]{1,0:T(1,128)}', space=vmem, size = 0x12000, scoped, tag = 'internal scratch']
  %s0 = inlined_call_operand.vmem [shape: f32[392,36], index: 0, kind: input, shape index: {}]
  %s1 = inlined_call_operand.vmem [shape: f32[36,128], index: 1, kind: input, shape index: {}]
  %s2 = inlined_call_operand.vmem [shape: f32[392,128], index: 2, kind: output, shape index: {0}]
  %s3 = inlined_call_operand.vmem [shape: f32[1,128], index: 3, kind: output, shape index: {1}]
  %s4 = inlined_call_operand.vmem [shape: f32[1,128], index: 4, kind: output, shape index: {2}]
  %5 = xla_tuple %s2, %s3, %s4
  %s6 = sld [smem:[#allocation0]]
  $region38: #{decoder_block_forward.3} parent=0
    _
  %s8 = ssub.s32 1, %s6
  %s9 = scalar_select 0, %s8, %s6
  // Predicated region
  $region2: #{decoder_block_forward.3} parent=0 // pred_check
    _
  $region3: #{decoder_block_forward.3} parent=0 // pred_check_branch
    %11 = sbr.rel (0) target = $region5
  $region4: #{decoder_block_forward.3} parent=0 // pred_region
    _
  $region5: #{decoder_block_forward.3} parent=0 // pred_fallthru
    _
  // Predicated region
  $region6: #{decoder_block_forward.3} parent=0 // pred_check
    _
  $region7: #{decoder_block_forward.3} parent=0 // pred_check_branch
    %13 = sbr.rel (0) target = $region9
  $region8: #{decoder_block_forward.3} parent=0 // pred_region
    _
  $region9: #{decoder_block_forward.3} parent=0 // pred_fallthru
    _
  %p14 = scmp.eq.s32.totalorder 0, 0
  // Predicated region
  $region10: #{decoder_block_forward.3} parent=0 // pred_check
    %p15 = pneg %p14
  $region11: #{decoder_block_forward.3} parent=0 // pred_check_branch
    %17 = sbr.rel (%p15) target = $region13
  $region12: #{decoder_block_forward.3} parent=0 // pred_region
    %18 = vst [vmem:[%s3] sm:$0x1] 0.0
    %19 = vst [vmem:[%s4] sm:$0x1] 0.0
  $region13: #{decoder_block_forward.3} parent=0 // pred_fallthru
    _
  %v20 = vld [vmem:[%s0] sm:$0xff]
  %v21 = vld [vmem:[%s0 + $0x8] sm:$0xff]
  %v22 = vld [vmem:[%s0 + $0x10] sm:$0xff]
  %v23 = vld [vmem:[%s0 + $0x18] sm:$0xff]
  %v24 = vld [vmem:[%s0 + $0x20] sm:$0xff]
  %v25 = vld [vmem:[%s0 + $0x28] sm:$0xff]
  %v26 = vld [vmem:[%s0 + $0x30] sm:$0xff]
  %v27 = vld [vmem:[%s0 + $0x38] sm:$0xff]
  %v28 = vld [vmem:[%s0 + $0x40] sm:$0xff]
  %v29 = vld [vmem:[%s0 + $0x48] sm:$0xff]
  %v30 = vld [vmem:[%s0 + $0x50] sm:$0xff]
  %v31 = vld [vmem:[%s0 + $0x58] sm:$0xff]
  %v32 = vld [vmem:[%s0 + $0x60] sm:$0xff]
  %v33 = vld [vmem:[%s0 + $0x68] sm:$0xff]
  %v34 = vld [vmem:[%s0 + $0x70] sm:$0xff]
  %v35 = vld [vmem:[%s0 + $0x78] sm:$0xff]
  %v36 = vld [vmem:[%s0 + $0x80] sm:$0xff]
  %v37 = vld [vmem:[%s0 + $0x88] sm:$0xff]
  %v38 = vld [vmem:[%s0 + $0x90] sm:$0xff]
  %v39 = vld [vmem:[%s0 + $0x98] sm:$0xff]
  %v40 = vld [vmem:[%s0 + $0xa0] sm:$0xff]
  %v41 = vld [vmem:[%s0 + $0xa8] sm:$0xff]
  %v42 = vld [vmem:[%s0 + $0xb0] sm:$0xff]
  %v43 = vld [vmem:[%s0 + $0xb8] sm:$0xff]
  %v44 = vld [vmem:[%s0 + $0xc0] sm:$0xff]
  %v45 = vld [vmem:[%s0 + $0xc8] sm:$0xff]
  %v46 = vld [vmem:[%s0 + $0xd0] sm:$0xff]
  %v47 = vld [vmem:[%s0 + $0xd8] sm:$0xff]
  %v48 = vld [vmem:[%s0 + $0xe0] sm:$0xff]
  %v49 = vld [vmem:[%s0 + $0xe8] sm:$0xff]
  %v50 = vld [vmem:[%s0 + $0xf0] sm:$0xff]
  %v51 = vld [vmem:[%s0 + $0xf8] sm:$0xff]
  %v52 = vld [vmem:[%s0 + $0x100] sm:$0xff]
  %v53 = vld [vmem:[%s0 + $0x108] sm:$0xff]
  %v54 = vld [vmem:[%s0 + $0x110] sm:$0xff]
  %v55 = vld [vmem:[%s0 + $0x118] sm:$0xff]
  %v56 = vld [vmem:[%s0 + $0x120] sm:$0xff]
  %v57 = vld [vmem:[%s0 + $0x128] sm:$0xff]
  %v58 = vld [vmem:[%s0 + $0x130] sm:$0xff]
  %v59 = vld [vmem:[%s0 + $0x138] sm:$0xff]
  %v60 = vld [vmem:[%s0 + $0x140] sm:$0xff]
  %v61 = vld [vmem:[%s0 + $0x148] sm:$0xff]
  %v62 = vld [vmem:[%s0 + $0x150] sm:$0xff]
  %v63 = vld [vmem:[%s0 + $0x158] sm:$0xff]
  %v64 = vld [vmem:[%s0 + $0x160] sm:$0xff]
  %v65 = vld [vmem:[%s0 + $0x168] sm:$0xff]
  %v66 = vld [vmem:[%s0 + $0x170] sm:$0xff]
  %v67 = vld [vmem:[%s0 + $0x178] sm:$0xff]
  %v68 = vld [vmem:[%s0 + $0x180] sm:$0xff]
  %v69 = vld [vmem:[%s1] sm:$0xff]
  %v70 = vld [vmem:[%s1 + $0x8] sm:$0xff]
  %v71 = vld [vmem:[%s1 + $0x10] sm:$0xff]
  %v72 = vld [vmem:[%s1 + $0x18] sm:$0xff]
  %v73 = vld [vmem:[%s1 + $0x20] sm:$0xf]
  %vm74 = vcmask 293888
  %v76 = vsel %vm74, %v20, 0
  %v79 = vsel %vm74, %v21, 0
  %v82 = vsel %vm74, %v22, 0
  %v85 = vsel %vm74, %v23, 0
  %v88 = vsel %vm74, %v24, 0
  %v91 = vsel %vm74, %v25, 0
  %v94 = vsel %vm74, %v26, 0
  %v97 = vsel %vm74, %v27, 0
  %v100 = vsel %vm74, %v28, 0
  %v103 = vsel %vm74, %v29, 0
  %v106 = vsel %vm74, %v30, 0
  %v109 = vsel %vm74, %v31, 0
  %v112 = vsel %vm74, %v32, 0
  %v115 = vsel %vm74, %v33, 0
  %v118 = vsel %vm74, %v34, 0
  %v121 = vsel %vm74, %v35, 0
  %v124 = vsel %vm74, %v36, 0
  %v127 = vsel %vm74, %v37, 0
  %v130 = vsel %vm74, %v38, 0
  %v133 = vsel %vm74, %v39, 0
  %v136 = vsel %vm74, %v40, 0
  %v139 = vsel %vm74, %v41, 0
  %v142 = vsel %vm74, %v42, 0
  %v145 = vsel %vm74, %v43, 0
  %v148 = vsel %vm74, %v44, 0
  %v151 = vsel %vm74, %v45, 0
  %v154 = vsel %vm74, %v46, 0
  %v157 = vsel %vm74, %v47, 0
  %v160 = vsel %vm74, %v48, 0
  %v163 = vsel %vm74, %v49, 0
  %v166 = vsel %vm74, %v50, 0
  %v169 = vsel %vm74, %v51, 0
  %v172 = vsel %vm74, %v52, 0
  %v175 = vsel %vm74, %v53, 0
  %v178 = vsel %vm74, %v54, 0
  %v181 = vsel %vm74, %v55, 0
  %v184 = vsel %vm74, %v56, 0
  %v187 = vsel %vm74, %v57, 0
  %v190 = vsel %vm74, %v58, 0
  %v193 = vsel %vm74, %v59, 0
  %v196 = vsel %vm74, %v60, 0
  %v199 = vsel %vm74, %v61, 0
  %v202 = vsel %vm74, %v62, 0
  %v205 = vsel %vm74, %v63, 0
  %v208 = vsel %vm74, %v64, 0
  %v211 = vsel %vm74, %v65, 0
  %v214 = vsel %vm74, %v66, 0
  %v217 = vsel %vm74, %v67, 0
  %v220 = vsel %vm74, %v68, 0
  %vm222 = vcmask 1043456
  %v224 = vsel %vm222, %v73, 0
  %226 = vmatprep.subr.mxu0 0.0
  %227 = vmatpush1.msra.mxu0 %v69
  %228 = vmatprep.subr.mxu0 0.0
  %229 = vmatpush1.msra.mxu0 %v70
  %230 = vmatprep.subr.mxu0 0.0
  %231 = vmatpush1.msra.mxu0 %v71
  %232 = vmatprep.subr.mxu0 0.0
  %233 = vmatpush1.msra.mxu0 %v72
  %234 = vmatprep.subr.mxu0 0.0
  %235 = vmatpush1.msra.mxu0 %v224
  %236 = vmatprep.subr.mxu0 0.0
  %237 = vmatpush1.msra.mxu0 0.0
  %238 = vmatprep.subr.mxu0 0.0
  %239 = vmatpush1.msra.mxu0 0.0
  %240 = vmatprep.subr.mxu0 0.0
  %241 = vmatpush1.msra.mxu0 0.0
  %242 = vmatprep.subr.mxu0 0.0
  %243 = vmatpush1.msra.mxu0 0.0
  %244 = vmatprep.subr.mxu0 0.0
  %245 = vmatpush1.msra.mxu0 0.0
  %246 = vmatprep.subr.mxu0 0.0
  %247 = vmatpush1.msra.mxu0 0.0
  %248 = vmatprep.subr.mxu0 0.0
  %249 = vmatpush1.msra.mxu0 0.0
  %250 = vmatprep.subr.mxu0 0.0
  %251 = vmatpush1.msra.mxu0 0.0
  %252 = vmatprep.subr.mxu0 0.0
  %253 = vmatpush1.msra.mxu0 0.0
  %254 = vmatprep.subr.mxu0 0.0
  %255 = vmatpush1.msra.mxu0 0.0
  %256 = vmatprep.subr.mxu0 0.0
  %257 = vmatpush1.msra.mxu0 0.0
  %258 = vmatprep.subr.mxu0 0.0
  %259 = vmatpush1.msra.mxu0 0.0
  %260 = vmatprep.subr.mxu0 0.0
  %261 = vmatpush1.msra.mxu0 0.0
  %262 = vmatprep.subr.mxu0 0.0
  %263 = vmatpush1.msra.mxu0 0.0
  %264 = vmatprep.subr.mxu0 0.0
  %265 = vmatpush1.msra.mxu0 0.0
  %266 = vmatprep.subr.mxu0 0.0
  %267 = vmatpush1.msra.mxu0 0.0
  %268 = vmatprep.subr.mxu0 0.0
  %269 = vmatpush1.msra.mxu0 0.0
  %270 = vmatprep.subr.mxu0 0.0
  %271 = vmatpush1.msra.mxu0 0.0
  %272 = vmatprep.subr.mxu0 0.0
  %273 = vmatpush1.msra.mxu0 0.0
  %274 = vmatprep.subr.mxu0 0.0
  %275 = vmatpush1.msra.mxu0 0.0
  %276 = vmatprep.subr.mxu0 0.0
  %277 = vmatpush1.msra.mxu0 0.0
  %278 = vmatprep.subr.mxu0 0.0
  %279 = vmatpush1.msra.mxu0 0.0
  %280 = vmatprep.subr.mxu0 0.0
  %281 = vmatpush1.msra.mxu0 0.0
  %282 = vmatprep.subr.mxu0 0.0
  %283 = vmatpush1.msra.mxu0 0.0
  %284 = vmatprep.subr.mxu0 0.0
  %285 = vmatpush1.msra.mxu0 0.0
  %286 = vmatprep.subr.mxu0 0.0
  %287 = vmatpush1.msra.mxu0 0.0
  %288 = vmatprep.subr.mxu0 0.0
  %289 = vmatpush1.msra.mxu0 0.0
  %290 = vmatprep.mubr.f32.mxu0 0.0
  %291 = vmatmul.mubr.f32.gmra.mrb[0].mxu0 %v76
  %v292 = vpop.f32.mrb[0].mxu0
  %v293 = vadd.f32 0.0, %v292
  %v294 = vpop.f32.mrb[0].mxu0
  %295 = vmatprep.mubr.f32.mxu0 0.0
  %296 = vmatmul.mubr.f32.gmra.mrb[0].mxu0 %v79
  %v297 = vpop.f32.mrb[0].mxu0
  %v298 = vadd.f32 0.0, %v297
  %v299 = vpop.f32.mrb[0].mxu0
  %300 = vmatprep.mubr.f32.mxu0 0.0
  %301 = vmatmul.mubr.f32.gmra.mrb[0].mxu0 %v82
  %v302 = vpop.f32.mrb[0].mxu0
  %v303 = vadd.f32 0.0, %v302
  %v304 = vpop.f32.mrb[0].mxu0
  %305 = vmatprep.mubr.f32.mxu0 0.0
  %306 = vmatmul.mubr.f32.gmra.mrb[0].mxu0 %v85
  %v307 = vpop.f32.mrb[0].mxu0
  %v308 = vadd.f32 0.0, %v307
  %v309 = vpop.f32.mrb[0].mxu0
  %310 = vmatprep.mubr.f32.mxu0 0.0
  %311 = vmatmul.mubr.f32.gmra.mrb[0].mxu0 %v88
  %v312 = vpop.f32.mrb[0].mxu0
  %v313 = vadd.f32 0.0, %v312
  %v314 = vpop.f32.mrb[0].mxu0
  %315 = vmatprep.mubr.f32.mxu0 0.0
  %316 = vmatmul.mubr.f32.gmra.mrb[0].mxu0 %v91
  %v317 = vpop.f32.mrb[0].mxu0
  %v318 = vadd.f32 0.0, %v317
  %v319 = vpop.f32.mrb[0].mxu0
  %320 = vmatprep.mubr.f32.mxu0 0.0
  %321 = vmatmul.mubr.f32.gmra.mrb[0].mxu0 %v94
  %v322 = vpop.f32.mrb[0].mxu0
  %v323 = vadd.f32 0.0, %v322
  %v324 = vpop.f32.mrb[0].mxu0
  %325 = vmatprep.mubr.f32.mxu0 0.0
  %326 = vmatmul.mubr.f32.gmra.mrb[0].mxu0 %v97
  %v327 = vpop.f32.mrb[0].mxu0
  %v328 = vadd.f32 0.0, %v327
  %v329 = vpop.f32.mrb[0].mxu0
  %330 = vmatprep.mubr.f32.mxu0 0.0
  %331 = vmatmul.mubr.f32.gmra.mrb[0].mxu0 %v100
  %v332 = vpop.f32.mrb[0].mxu0
  %v333 = vadd.f32 0.0, %v332
  %v334 = vpop.f32.mrb[0].mxu0
  %335 = vmatprep.mubr.f32.mxu0 0.0
  %336 = vmatmul.mubr.f32.gmra.mrb[0].mxu0 %v103
  %v337 = vpop.f32.mrb[0].mxu0
  %v338 = vadd.f32 0.0, %v337
  %v339 = vpop.f32.mrb[0].mxu0
  %340 = vmatprep.mubr.f32.mxu0 0.0
  %341 = vmatmul.mubr.f32.gmra.mrb[0].mxu0 %v106
  %v342 = vpop.f32.mrb[0].mxu0
  %v343 = vadd.f32 0.0, %v342
  %v344 = vpop.f32.mrb[0].mxu0
  %345 = vmatprep.mubr.f32.mxu0 0.0
  %346 = vmatmul.mubr.f32.gmra.mrb[0].mxu0 %v109
  %v347 = vpop.f32.mrb[0].mxu0
  %v348 = vadd.f32 0.0, %v347
  %v349 = vpop.f32.mrb[0].mxu0
  %350 = vmatprep.mubr.f32.mxu0 0.0
  %351 = vmatmul.mubr.f32.gmra.mrb[0].mxu0 %v112
  %v352 = vpop.f32.mrb[0].mxu0
  %v353 = vadd.f32 0.0, %v352
  %v354 = vpop.f32.mrb[0].mxu0
  %355 = vmatprep.mubr.f32.mxu0 0.0
  %356 = vmatmul.mubr.f32.gmra.mrb[0].mxu0 %v115
  %v357 = vpop.f32.mrb[0].mxu0
  %v358 = vadd.f32 0.0, %v357
  %v359 = vpop.f32.mrb[0].mxu0
  %360 = vmatprep.mubr.f32.mxu0 0.0
  %361 = vmatmul.mubr.f32.gmra.mrb[0].mxu0 %v118
  %v362 = vpop.f32.mrb[0].mxu0
  %v363 = vadd.f32 0.0, %v362
  %v364 = vpop.f32.mrb[0].mxu0
  %365 = vmatprep.mubr.f32.mxu0 0.0
  %366 = vmatmul.mubr.f32.gmra.mrb[0].mxu0 %v121
  %v367 = vpop.f32.mrb[0].mxu0
  %v368 = vadd.f32 0.0, %v367
  %v369 = vpop.f32.mrb[0].mxu0
  %370 = vmatprep.mubr.f32.mxu0 0.0
  %371 = vmatmul.mubr.f32.gmra.mrb[0].mxu0 %v124
  %v372 = vpop.f32.mrb[0].mxu0
  %v373 = vadd.f32 0.0, %v372
  %v374 = vpop.f32.mrb[0].mxu0
  %375 = vmatprep.mubr.f32.mxu0 0.0
  %376 = vmatmul.mubr.f32.gmra.mrb[0].mxu0 %v127
  %v377 = vpop.f32.mrb[0].mxu0
  %v378 = vadd.f32 0.0, %v377
  %v379 = vpop.f32.mrb[0].mxu0
  %380 = vmatprep.mubr.f32.mxu0 0.0
  %381 = vmatmul.mubr.f32.gmra.mrb[0].mxu0 %v130
  %v382 = vpop.f32.mrb[0].mxu0
  %v383 = vadd.f32 0.0, %v382
  %v384 = vpop.f32.mrb[0].mxu0
  %385 = vmatprep.mubr.f32.mxu0 0.0
  %386 = vmatmul.mubr.f32.gmra.mrb[0].mxu0 %v133
  %v387 = vpop.f32.mrb[0].mxu0
  %v388 = vadd.f32 0.0, %v387
  %v389 = vpop.f32.mrb[0].mxu0
  %390 = vmatprep.mubr.f32.mxu0 0.0
  %391 = vmatmul.mubr.f32.gmra.mrb[0].mxu0 %v136
  %v392 = vpop.f32.mrb[0].mxu0
  %v393 = vadd.f32 0.0, %v392
  %v394 = vpop.f32.mrb[0].mxu0
  %395 = vmatprep.mubr.f32.mxu0 0.0
  %396 = vmatmul.mubr.f32.gmra.mrb[0].mxu0 %v139
  %v397 = vpop.f32.mrb[0].mxu0
  %v398 = vadd.f32 0.0, %v397
  %v399 = vpop.f32.mrb[0].mxu0
  %400 = vmatprep.mubr.f32.mxu0 0.0
  %401 = vmatmul.mubr.f32.gmra.mrb[0].mxu0 %v142
  %v402 = vpop.f32.mrb[0].mxu0
  %v403 = vadd.f32 0.0, %v402
  %v404 = vpop.f32.mrb[0].mxu0
  %405 = vmatprep.mubr.f32.mxu0 0.0
  %406 = vmatmul.mubr.f32.gmra.mrb[0].mxu0 %v145
  %v407 = vpop.f32.mrb[0].mxu0
  %v408 = vadd.f32 0.0, %v407
  %v409 = vpop.f32.mrb[0].mxu0
  %410 = vmatprep.mubr.f32.mxu0 0.0
  %411 = vmatmul.mubr.f32.gmra.mrb[0].mxu0 %v148
  %v412 = vpop.f32.mrb[0].mxu0
  %v413 = vadd.f32 0.0, %v412
  %v414 = vpop.f32.mrb[0].mxu0
  %415 = vmatprep.mubr.f32.mxu0 0.0
  %416 = vmatmul.mubr.f32.gmra.mrb[0].mxu0 %v151
  %v417 = vpop.f32.mrb[0].mxu0
  %v418 = vadd.f32 0.0, %v417
  %v419 = vpop.f32.mrb[0].mxu0
  %420 = vmatprep.mubr.f32.mxu0 0.0
  %421 = vmatmul.mubr.f32.gmra.mrb[0].mxu0 %v154
  %v422 = vpop.f32.mrb[0].mxu0
  %v423 = vadd.f32 0.0, %v422
  %v424 = vpop.f32.mrb[0].mxu0
  %425 = vmatprep.mubr.f32.mxu0 0.0
  %426 = vmatmul.mubr.f32.gmra.mrb[0].mxu0 %v157
  %v427 = vpop.f32.mrb[0].mxu0
  %v428 = vadd.f32 0.0, %v427
  %v429 = vpop.f32.mrb[0].mxu0
  %430 = vmatprep.mubr.f32.mxu0 0.0
  %431 = vmatmul.mubr.f32.gmra.mrb[0].mxu0 %v160
  %v432 = vpop.f32.mrb[0].mxu0
  %v433 = vadd.f32 0.0, %v432
  %v434 = vpop.f32.mrb[0].mxu0
  %435 = vmatprep.mubr.f32.mxu0 0.0
  %436 = vmatmul.mubr.f32.gmra.mrb[0].mxu0 %v163
  %v437 = vpop.f32.mrb[0].mxu0
  %v438 = vadd.f32 0.0, %v437
  %v439 = vpop.f32.mrb[0].mxu0
  %440 = vmatprep.mubr.f32.mxu0 0.0
  %441 = vmatmul.mubr.f32.gmra.mrb[0].mxu0 %v166
  %v442 = vpop.f32.mrb[0].mxu0
  %v443 = vadd.f32 0.0, %v442
  %v444 = vpop.f32.mrb[0].mxu0
  %445 = vmatprep.mubr.f32.mxu0 0.0
  %446 = vmatmul.mubr.f32.gmra.mrb[0].mxu0 %v169
  %v447 = vpop.f32.mrb[0].mxu0
  %v448 = vadd.f32 0.0, %v447
  %v449 = vpop.f32.mrb[0].mxu0
  %450 = vmatprep.mubr.f32.mxu0 0.0
  %451 = vmatmul.mubr.f32.gmra.mrb[0].mxu0 %v172
  %v452 = vpop.f32.mrb[0].mxu0
  %v453 = vadd.f32 0.0, %v452
  %v454 = vpop.f32.mrb[0].mxu0
  %455 = vmatprep.mubr.f32.mxu0 0.0
  %456 = vmatmul.mubr.f32.gmra.mrb[0].mxu0 %v175
  %v457 = vpop.f32.mrb[0].mxu0
  %v458 = vadd.f32 0.0, %v457
  %v459 = vpop.f32.mrb[0].mxu0
  %460 = vmatprep.mubr.f32.mxu0 0.0
  %461 = vmatmul.mubr.f32.gmra.mrb[0].mxu0 %v178
  %v462 = vpop.f32.mrb[0].mxu0
  %v463 = vadd.f32 0.0, %v462
  %v464 = vpop.f32.mrb[0].mxu0
  %465 = vmatprep.mubr.f32.mxu0 0.0
  %466 = vmatmul.mubr.f32.gmra.mrb[0].mxu0 %v181
  %v467 = vpop.f32.mrb[0].mxu0
  %v468 = vadd.f32 0.0, %v467
  %v469 = vpop.f32.mrb[0].mxu0
  %470 = vmatprep.mubr.f32.mxu0 0.0
  %471 = vmatmul.mubr.f32.gmra.mrb[0].mxu0 %v184
  %v472 = vpop.f32.mrb[0].mxu0
  %v473 = vadd.f32 0.0, %v472
  %v474 = vpop.f32.mrb[0].mxu0
  %475 = vmatprep.mubr.f32.mxu0 0.0
  %476 = vmatmul.mubr.f32.gmra.mrb[0].mxu0 %v187
  %v477 = vpop.f32.mrb[0].mxu0
  %v478 = vadd.f32 0.0, %v477
  %v479 = vpop.f32.mrb[0].mxu0
  %480 = vmatprep.mubr.f32.mxu0 0.0
  %481 = vmatmul.mubr.f32.gmra.mrb[0].mxu0 %v190
  %v482 = vpop.f32.mrb[0].mxu0
  %v483 = vadd.f32 0.0, %v482
  %v484 = vpop.f32.mrb[0].mxu0
  %485 = vmatprep.mubr.f32.mxu0 0.0
  %486 = vmatmul.mubr.f32.gmra.mrb[0].mxu0 %v193
  %v487 = vpop.f32.mrb[0].mxu0
  %v488 = vadd.f32 0.0, %v487
  %v489 = vpop.f32.mrb[0].mxu0
  %490 = vmatprep.mubr.f32.mxu0 0.0
  %491 = vmatmul.mubr.f32.gmra.mrb[0].mxu0 %v196
  %v492 = vpop.f32.mrb[0].mxu0
  %v493 = vadd.f32 0.0, %v492
  %v494 = vpop.f32.mrb[0].mxu0
  %495 = vmatprep.mubr.f32.mxu0 0.0
  %496 = vmatmul.mubr.f32.gmra.mrb[0].mxu0 %v199
  %v497 = vpop.f32.mrb[0].mxu0
  %v498 = vadd.f32 0.0, %v497
  %v499 = vpop.f32.mrb[0].mxu0
  %500 = vmatprep.mubr.f32.mxu0 0.0
  %501 = vmatmul.mubr.f32.gmra.mrb[0].mxu0 %v202
  %v502 = vpop.f32.mrb[0].mxu0
  %v503 = vadd.f32 0.0, %v502
  %v504 = vpop.f32.mrb[0].mxu0
  %505 = vmatprep.mubr.f32.mxu0 0.0
  %506 = vmatmul.mubr.f32.gmra.mrb[0].mxu0 %v205
  %v507 = vpop.f32.mrb[0].mxu0
  %v508 = vadd.f32 0.0, %v507
  %v509 = vpop.f32.mrb[0].mxu0
  %510 = vmatprep.mubr.f32.mxu0 0.0
  %511 = vmatmul.mubr.f32.gmra.mrb[0].mxu0 %v208
  %v512 = vpop.f32.mrb[0].mxu0
  %v513 = vadd.f32 0.0, %v512
  %v514 = vpop.f32.mrb[0].mxu0
  %515 = vmatprep.mubr.f32.mxu0 0.0
  %516 = vmatmul.mubr.f32.gmra.mrb[0].mxu0 %v211
  %v517 = vpop.f32.mrb[0].mxu0
  %v518 = vadd.f32 0.0, %v517
  %v519 = vpop.f32.mrb[0].mxu0
  %520 = vmatprep.mubr.f32.mxu0 0.0
  %521 = vmatmul.mubr.f32.gmra.mrb[0].mxu0 %v214
  %v522 = vpop.f32.mrb[0].mxu0
  %v523 = vadd.f32 0.0, %v522
  %v524 = vpop.f32.mrb[0].mxu0
  %525 = vmatprep.mubr.f32.mxu0 0.0
  %526 = vmatmul.mubr.f32.gmra.mrb[0].mxu0 %v217
  %v527 = vpop.f32.mrb[0].mxu0
  %v528 = vadd.f32 0.0, %v527
  %v529 = vpop.f32.mrb[0].mxu0
  %530 = vmatprep.mubr.f32.mxu0 0.0
  %531 = vmatmul.mubr.f32.gmra.mrb[0].mxu0 %v220
  %v532 = vpop.f32.mrb[0].mxu0
  %v533 = vadd.f32 0.0, %v532
  %v534 = vpop.f32.mrb[0].mxu0
  %535 = vdwg.mxu0
  %536 = vst [vmem:[%s2] sm:$0xff] %v293
  %537 = vst [vmem:[%s2 + $0x8] sm:$0xff] %v298
  %538 = vst [vmem:[%s2 + $0x10] sm:$0xff] %v303
  %539 = vst [vmem:[%s2 + $0x18] sm:$0xff] %v308
  %540 = vst [vmem:[%s2 + $0x20] sm:$0xff] %v313
  %541 = vst [vmem:[%s2 + $0x28] sm:$0xff] %v318
  %542 = vst [vmem:[%s2 + $0x30] sm:$0xff] %v323
  %543 = vst [vmem:[%s2 + $0x38] sm:$0xff] %v328
  %544 = vst [vmem:[%s2 + $0x40] sm:$0xff] %v333
  %545 = vst [vmem:[%s2 + $0x48] sm:$0xff] %v338
  %546 = vst [vmem:[%s2 + $0x50] sm:$0xff] %v343
  %547 = vst [vmem:[%s2 + $0x58] sm:$0xff] %v348
  %548 = vst [vmem:[%s2 + $0x60] sm:$0xff] %v353
  %549 = vst [vmem:[%s2 + $0x68] sm:$0xff] %v358
  %550 = vst [vmem:[%s2 + $0x70] sm:$0xff] %v363
  %551 = vst [vmem:[%s2 + $0x78] sm:$0xff] %v368
  %552 = vst [vmem:[%s2 + $0x80] sm:$0xff] %v373
  %553 = vst [vmem:[%s2 + $0x88] sm:$0xff] %v378
  %554 = vst [vmem:[%s2 + $0x90] sm:$0xff] %v383
  %555 = vst [vmem:[%s2 + $0x98] sm:$0xff] %v388
  %556 = vst [vmem:[%s2 + $0xa0] sm:$0xff] %v393
  %557 = vst [vmem:[%s2 + $0xa8] sm:$0xff] %v398
  %558 = vst [vmem:[%s2 + $0xb0] sm:$0xff] %v403
  %559 = vst [vmem:[%s2 + $0xb8] sm:$0xff] %v408
  %560 = vst [vmem:[%s2 + $0xc0] sm:$0xff] %v413
  %561 = vst [vmem:[%s2 + $0xc8] sm:$0xff] %v418
  %562 = vst [vmem:[%s2 + $0xd0] sm:$0xff] %v423
  %563 = vst [vmem:[%s2 + $0xd8] sm:$0xff] %v428
  %564 = vst [vmem:[%s2 + $0xe0] sm:$0xff] %v433
  %565 = vst [vmem:[%s2 + $0xe8] sm:$0xff] %v438
  %566 = vst [vmem:[%s2 + $0xf0] sm:$0xff] %v443
  %567 = vst [vmem:[%s2 + $0xf8] sm:$0xff] %v448
  %568 = vst [vmem:[%s2 + $0x100] sm:$0xff] %v453
  %569 = vst [vmem:[%s2 + $0x108] sm:$0xff] %v458
  %570 = vst [vmem:[%s2 + $0x110] sm:$0xff] %v463
  %571 = vst [vmem:[%s2 + $0x118] sm:$0xff] %v468
  %572 = vst [vmem:[%s2 + $0x120] sm:$0xff] %v473
  %573 = vst [vmem:[%s2 + $0x128] sm:$0xff] %v478
  %574 = vst [vmem:[%s2 + $0x130] sm:$0xff] %v483
  %575 = vst [vmem:[%s2 + $0x138] sm:$0xff] %v488
  %576 = vst [vmem:[%s2 + $0x140] sm:$0xff] %v493
  %577 = vst [vmem:[%s2 + $0x148] sm:$0xff] %v498
  %578 = vst [vmem:[%s2 + $0x150] sm:$0xff] %v503
  %579 = vst [vmem:[%s2 + $0x158] sm:$0xff] %v508
  %580 = vst [vmem:[%s2 + $0x160] sm:$0xff] %v513
  %581 = vst [vmem:[%s2 + $0x168] sm:$0xff] %v518
  %582 = vst [vmem:[%s2 + $0x170] sm:$0xff] %v523
  %583 = vst [vmem:[%s2 + $0x178] sm:$0xff] %v528
  %584 = vst [vmem:[%s2 + $0x180] sm:$0xff] %v533
  %v585 = vld [vmem:[%s3] sm:$0x1]
  %v586 = vadd.f32 %v293, %v298
  %v587 = vadd.f32 %v586, %v303
  %v588 = vadd.f32 %v587, %v308
  %v589 = vadd.f32 %v588, %v313
  %v590 = vadd.f32 %v589, %v318
  %v591 = vadd.f32 %v590, %v323
  %v592 = vadd.f32 %v591, %v328
  %v593 = vadd.f32 %v592, %v333
  %v594 = vadd.f32 %v593, %v338
  %v595 = vadd.f32 %v594, %v343
  %v596 = vadd.f32 %v595, %v348
  %v597 = vadd.f32 %v596, %v353
  %v598 = vadd.f32 %v597, %v358
  %v599 = vadd.f32 %v598, %v363
  %v600 = vadd.f32 %v599, %v368
  %v601 = vadd.f32 %v600, %v373
  %v602 = vadd.f32 %v601, %v378
  %v603 = vadd.f32 %v602, %v383
  %v604 = vadd.f32 %v603, %v388
  %v605 = vadd.f32 %v604, %v393
  %v606 = vadd.f32 %v605, %v398
  %v607 = vadd.f32 %v606, %v403
  %v608 = vadd.f32 %v607, %v408
  %v609 = vadd.f32 %v608, %v413
  %v610 = vadd.f32 %v609, %v418
  %v611 = vadd.f32 %v610, %v423
  %v612 = vadd.f32 %v611, %v428
  %v613 = vadd.f32 %v612, %v433
  %v614 = vadd.f32 %v613, %v438
  %v615 = vadd.f32 %v614, %v443
  %v616 = vadd.f32 %v615, %v448
  %v617 = vadd.f32 %v616, %v453
  %v618 = vadd.f32 %v617, %v458
  %v619 = vadd.f32 %v618, %v463
  %v620 = vadd.f32 %v619, %v468
  %v621 = vadd.f32 %v620, %v473
  %v622 = vadd.f32 %v621, %v478
  %v623 = vadd.f32 %v622, %v483
  %v624 = vadd.f32 %v623, %v488
  %v625 = vadd.f32 %v624, %v493
  %v626 = vadd.f32 %v625, %v498
  %v627 = vadd.f32 %v626, %v503
  %v628 = vadd.f32 %v627, %v508
  %v629 = vadd.f32 %v628, %v513
  %v630 = vadd.f32 %v629, %v518
  %v631 = vadd.f32 %v630, %v523
  %v632 = vadd.f32 %v631, %v528
  %v633 = vadd.f32 %v632, %v533
  %v634 = vrot.slane %v633, 4
  %v635 = vadd.f32 %v633, %v634
  %v636 = vrot.slane %v635, 2
  %v637 = vadd.f32 %v635, %v636
  %v638 = vrot.slane %v637, 1
  %v639 = vadd.f32 %v637, %v638
  %v640 = vadd.f32 %v585, %v639
  %641 = vst [vmem:[%s3] sm:$0x1] %v640
  %v642 = vld [vmem:[%s4] sm:$0x1]
  %v643 = vmul.f32 %v293, %v293
  %v644 = vmul.f32 %v298, %v298
  %v645 = vmul.f32 %v303, %v303
  %v646 = vmul.f32 %v308, %v308
  %v647 = vmul.f32 %v313, %v313
  %v648 = vmul.f32 %v318, %v318
  %v649 = vmul.f32 %v323, %v323
  %v650 = vmul.f32 %v328, %v328
  %v651 = vmul.f32 %v333, %v333
  %v652 = vmul.f32 %v338, %v338
  %v653 = vmul.f32 %v343, %v343
  %v654 = vmul.f32 %v348, %v348
  %v655 = vmul.f32 %v353, %v353
  %v656 = vmul.f32 %v358, %v358
  %v657 = vmul.f32 %v363, %v363
  %v658 = vmul.f32 %v368, %v368
  %v659 = vmul.f32 %v373, %v373
  %v660 = vmul.f32 %v378, %v378
  %v661 = vmul.f32 %v383, %v383
  %v662 = vmul.f32 %v388, %v388
  %v663 = vmul.f32 %v393, %v393
  %v664 = vmul.f32 %v398, %v398
  %v665 = vmul.f32 %v403, %v403
  %v666 = vmul.f32 %v408, %v408
  %v667 = vmul.f32 %v413, %v413
  %v668 = vmul.f32 %v418, %v418
  %v669 = vmul.f32 %v423, %v423
  %v670 = vmul.f32 %v428, %v428
  %v671 = vmul.f32 %v433, %v433
  %v672 = vmul.f32 %v438, %v438
  %v673 = vmul.f32 %v443, %v443
  %v674 = vmul.f32 %v448, %v448
  %v675 = vmul.f32 %v453, %v453
  %v676 = vmul.f32 %v458, %v458
  %v677 = vmul.f32 %v463, %v463
  %v678 = vmul.f32 %v468, %v468
  %v679 = vmul.f32 %v473, %v473
  %v680 = vmul.f32 %v478, %v478
  %v681 = vmul.f32 %v483, %v483
  %v682 = vmul.f32 %v488, %v488
  %v683 = vmul.f32 %v493, %v493
  %v684 = vmul.f32 %v498, %v498
  %v685 = vmul.f32 %v503, %v503
  %v686 = vmul.f32 %v508, %v508
  %v687 = vmul.f32 %v513, %v513
  %v688 = vmul.f32 %v518, %v518
  %v689 = vmul.f32 %v523, %v523
  %v690 = vmul.f32 %v528, %v528
  %v691 = vmul.f32 %v533, %v533
  %v692 = vadd.f32 %v643, %v644
  %v693 = vadd.f32 %v692, %v645
  %v694 = vadd.f32 %v693, %v646
  %v695 = vadd.f32 %v694, %v647
  %v696 = vadd.f32 %v695, %v648
  %v697 = vadd.f32 %v696, %v649
  %v698 = vadd.f32 %v697, %v650
  %v699 = vadd.f32 %v698, %v651
  %v700 = vadd.f32 %v699, %v652
  %v701 = vadd.f32 %v700, %v653
  %v702 = vadd.f32 %v701, %v654
  %v703 = vadd.f32 %v702, %v655
  %v704 = vadd.f32 %v703, %v656
  %v705 = vadd.f32 %v704, %v657
  %v706 = vadd.f32 %v705, %v658
  %v707 = vadd.f32 %v706, %v659
  %v708 = vadd.f32 %v707, %v660
  %v709 = vadd.f32 %v708, %v661
  %v710 = vadd.f32 %v709, %v662
  %v711 = vadd.f32 %v710, %v663
  %v712 = vadd.f32 %v711, %v664
  %v713 = vadd.f32 %v712, %v665
  %v714 = vadd.f32 %v713, %v666
  %v715 = vadd.f32 %v714, %v667
  %v716 = vadd.f32 %v715, %v668
  %v717 = vadd.f32 %v716, %v669
  %v718 = vadd.f32 %v717, %v670
  %v719 = vadd.f32 %v718, %v671
  %v720 = vadd.f32 %v719, %v672
  %v721 = vadd.f32 %v720, %v673
  %v722 = vadd.f32 %v721, %v674
  %v723 = vadd.f32 %v722, %v675
  %v724 = vadd.f32 %v723, %v676
  %v725 = vadd.f32 %v724, %v677
  %v726 = vadd.f32 %v725, %v678
  %v727 = vadd.f32 %v726, %v679
  %v728 = vadd.f32 %v727, %v680
  %v729 = vadd.f32 %v728, %v681
  %v730 = vadd.f32 %v729, %v682
  %v731 = vadd.f32 %v730, %v683
  %v732 = vadd.f32 %v731, %v684
  %v733 = vadd.f32 %v732, %v685
  %v734 = vadd.f32 %v733, %v686
  %v735 = vadd.f32 %v734, %v687
  %v736 = vadd.f32 %v735, %v688
  %v737 = vadd.f32 %v736, %v689
  %v738 = vadd.f32 %v737, %v690
  %v739 = vadd.f32 %v738, %v691
  %v740 = vrot.slane %v739, 4
  %v741 = vadd.f32 %v739, %v740
  %v742 = vrot.slane %v741, 2
  %v743 = vadd.f32 %v741, %v742
  %v744 = vrot.slane %v743, 1
  %v745 = vadd.f32 %v743, %v744
  %v746 = vadd.f32 %v642, %v745
  %747 = vst [vmem:[%s4] sm:$0x1] %v746
  // Predicated region
  $region14: #{decoder_block_forward.3} parent=0 // pred_check
    _
  $region15: #{decoder_block_forward.3} parent=0 // pred_check_branch
    %749 = sbr.rel (0) target = $region17
  $region16: #{decoder_block_forward.3} parent=0 // pred_region
    _
  $region17: #{decoder_block_forward.3} parent=0 // pred_fallthru
    _
  // Predicated region
  $region18: #{decoder_block_forward.3} parent=0 // pred_check
    _
  $region19: #{decoder_block_forward.3} parent=0 // pred_check_branch
    %751 = sbr.rel (0) target = $region21
  $region20: #{decoder_block_forward.3} parent=0 // pred_region
    _
  $region21: #{decoder_block_forward.3} parent=0 // pred_fallthru
    _
  // Predicated region
  $region22: #{decoder_block_forward.3} parent=0 // pred_check
    _
  $region23: #{decoder_block_forward.3} parent=0 // pred_check_branch
    %753 = sbr.rel (0) target = $region25
  $region24: #{decoder_block_forward.3} parent=0 // pred_region
    _
  $region25: #{decoder_block_forward.3} parent=0 // pred_fallthru
    _
  // Predicated region
  $region26: #{decoder_block_forward.3} parent=0 // pred_check
    _
  $region27: #{decoder_block_forward.3} parent=0 // pred_check_branch
    %755 = sbr.rel (0) target = $region29
  $region28: #{decoder_block_forward.3} parent=0 // pred_region
    _
  $region29: #{decoder_block_forward.3} parent=0 // pred_fallthru
    _
  // Predicated region
  $region30: #{decoder_block_forward.3} parent=0 // pred_check
    _
  $region31: #{decoder_block_forward.3} parent=0 // pred_check_branch
    %757 = sbr.rel (0) target = $region33
  $region32: #{decoder_block_forward.3} parent=0 // pred_region
    _
  $region33: #{decoder_block_forward.3} parent=0 // pred_fallthru
    _
  // Predicated region
  $region34: #{decoder_block_forward.3} parent=0 // pred_check
    _
  $region35: #{decoder_block_forward.3} parent=0 // pred_check_branch
    %759 = sbr.rel (0) target = $region37
  $region36: #{decoder_block_forward.3} parent=0 // pred_region
    _
  $region37: #{decoder_block_forward.3} parent=0 // pred_fallthru
    _

// kernel: tile.28
$region0: #{tile.28}
  #allocation0 [shape = 's32[1]{0}', space=sflag, size = 0x4, scoped, tag = 'scoped memory for tile.28']
  %s0 = inlined_call_operand.vmem [shape: f32[32], index: 0, kind: input, shape index: {}]
  %s1 = inlined_call_operand.vmem [shape: f32[4,32], index: 1, kind: output, shape index: {}]
  // Predicated region
  $region2: #{tile.28} parent=0 // pred_check
    _
  $region3: #{tile.28} parent=0 // pred_check_branch
    %3 = sbr.rel (0) target = $region5
  $region4: #{tile.28} parent=0 // pred_region
    _
  $region5: #{tile.28} parent=0 // pred_fallthru
    _
  %v4 = vld [vmem:[%s0] ss:$0 sm:$0xff]
  %5 = vst [vmem:[%s1] sm:$0xf] %v4

// kernel: tile.29
$region0: #{tile.29}
  %s0 = inlined_call_operand.vmem [shape: f32[4,32], index: 0, kind: input, shape index: {}]
  %s1 = inlined_call_operand.vmem [shape: f32[1,128], index: 1, kind: output, shape index: {}]
  $region1: #{tile.29} parent=0
    #allocation0 [shape = 'u8[4096]{0}', space=vmem, size = 0x1000, scoped, tag = 'scoped mem for output reshape']
    #allocation1 [shape = 'u8[4096]{0}', space=vmem, size = 0x1000, scoped, tag = 'scoped mem for input reshape']
    %s3 = sshllo.u32 0, 4
    %v4 = vld [vmem:[%s0] sm:%s3]
    %5 = vst [vmem:[#allocation1] sm:%s3] %v4
    %v6 = vld [vmem:[#allocation1] sm:$0x1]
    %vm7 = vcmask 261120
    %8 = vst.msk [vmem:[#allocation0] sm:$0x1] %vm7, %v6
    %s9 = scalar_lea.vmem [#allocation1], 3
    %v10 = vld [vmem:[%s9] sm:$0x1]
    %11 = vrot.lane.b32.xlu0 %v10, 96
    %v12 = vpop.permute.xlu0 %11
    %vm13 = vcmask 1048320
    %14 = vst.msk [vmem:[#allocation0] sm:$0x1] %vm13, %v12
    %s15 = scalar_lea.vmem [#allocation1], 2
    %v16 = vld [vmem:[%s15] sm:$0x1]
    %17 = vrot.lane.b32.xlu0 %v16, 64
    %v18 = vpop.permute.xlu0 %17
    %vm19 = vcmask 785920
    %20 = vst.msk [vmem:[#allocation0] sm:$0x1] %vm19, %v18
    %s21 = scalar_lea.vmem [#allocation1], 1
    %v22 = vld [vmem:[%s21] sm:$0x1]
    %23 = vrot.lane.b32.xlu0 %v22, 32
    %v24 = vpop.permute.xlu0 %23
    %vm25 = vcmask 523520
    %26 = vst.msk [vmem:[#allocation0] sm:$0x1] %vm25, %v24
    %s28 = sshllo.u32 0, 1
    %v30 = vld [vmem:[#allocation0] sm:%s28]
    %s31 = sshllo.u32 0, 1
    %32 = vst [vmem:[%s1] sm:%s31] %v30

// kernel: decoder_block_forward.5
$region0: #{decoder_block_forward.5}
  #allocation0 [shape = 'u32[]', space=smem, size = 0x4, offset = 0x4, fixed_abs, tag = 'smem constant byte address 0x4 - core index']
  #allocation1 [shape = 'u32[144,128]{1,0:T(1,128)}', space=vmem, size = 0x12000, scoped, tag = 'internal scratch']
  %s0 = inlined_call_operand.vmem [shape: f32[288,128], index: 0, kind: input, shape index: {}]
  %s1 = inlined_call_operand.vmem [shape: f32[1,128], index: 1, kind: input, shape index: {}]
  %s2 = inlined_call_operand.vmem [shape: f32[1,128], index: 2, kind: input, shape index: {}]
  %s3 = inlined_call_operand.vmem [shape: f32[128,128], index: 3, kind: input, shape index: {}]
  %s4 = inlined_call_operand.vmem [shape: f32[1,128], index: 4, kind: input, shape index: {}]
  %s5 = inlined_call_operand.vmem [shape: f32[288,128], index: 5, kind: output, shape index: {}]
  %s6 = sld [smem:[#allocation0]]
  $region30: #{decoder_block_forward.5} parent=0
    _
  %s8 = ssub.s32 1, %s6
  %s9 = scalar_select 0, %s8, %s6
  // Predicated region
  $region2: #{decoder_block_forward.5} parent=0 // pred_check
    _
  $region3: #{decoder_block_forward.5} parent=0 // pred_check_branch
    %11 = sbr.rel (0) target = $region5
  $region4: #{decoder_block_forward.5} parent=0 // pred_region
    _
  $region5: #{decoder_block_forward.5} parent=0 // pred_fallthru
    _
  // Predicated region
  $region6: #{decoder_block_forward.5} parent=0 // pred_check
    _
  $region7: #{decoder_block_forward.5} parent=0 // pred_check_branch
    %13 = sbr.rel (0) target = $region9
  $region8: #{decoder_block_forward.5} parent=0 // pred_region
    _
  $region9: #{decoder_block_forward.5} parent=0 // pred_fallthru
    _
  // Predicated region
  $region10: #{decoder_block_forward.5} parent=0 // pred_check
    _
  $region11: #{decoder_block_forward.5} parent=0 // pred_check_branch
    %15 = sbr.rel (0) target = $region13
  $region12: #{decoder_block_forward.5} parent=0 // pred_region
    _
  $region13: #{decoder_block_forward.5} parent=0 // pred_fallthru
    _
  // Predicated region
  $region14: #{decoder_block_forward.5} parent=0 // pred_check
    _
  $region15: #{decoder_block_forward.5} parent=0 // pred_check_branch
    %17 = sbr.rel (0) target = $region17
  $region16: #{decoder_block_forward.5} parent=0 // pred_region
    _
  $region17: #{decoder_block_forward.5} parent=0 // pred_fallthru
    _
  // Predicated region
  $region18: #{decoder_block_forward.5} parent=0 // pred_check
    _
  $region19: #{decoder_block_forward.5} parent=0 // pred_check_branch
    %19 = sbr.rel (0) target = $region21
  $region20: #{decoder_block_forward.5} parent=0 // pred_region
    _
  $region21: #{decoder_block_forward.5} parent=0 // pred_fallthru
    _
  %v20 = vld [vmem:[%s0] sm:$0xff]
  %v21 = vld [vmem:[%s0 + $0x8] sm:$0xff]
  %v22 = vld [vmem:[%s0 + $0x10] sm:$0xff]
  %v23 = vld [vmem:[%s0 + $0x18] sm:$0xff]
  %v24 = vld [vmem:[%s0 + $0x20] sm:$0xff]
  %v25 = vld [vmem:[%s0 + $0x28] sm:$0xff]
  %v26 = vld [vmem:[%s0 + $0x30] sm:$0xff]
  %v27 = vld [vmem:[%s0 + $0x38] sm:$0xff]
  %v28 = vld [vmem:[%s0 + $0x40] sm:$0xff]
  %v29 = vld [vmem:[%s0 + $0x48] sm:$0xff]
  %v30 = vld [vmem:[%s0 + $0x50] sm:$0xff]
  %v31 = vld [vmem:[%s0 + $0x58] sm:$0xff]
  %v32 = vld [vmem:[%s0 + $0x60] sm:$0xff]
  %v33 = vld [vmem:[%s0 + $0x68] sm:$0xff]
  %v34 = vld [vmem:[%s0 + $0x70] sm:$0xff]
  %v35 = vld [vmem:[%s0 + $0x78] sm:$0xff]
  %v36 = vld [vmem:[%s0 + $0x80] sm:$0xff]
  %v37 = vld [vmem:[%s0 + $0x88] sm:$0xff]
  %v38 = vld [vmem:[%s0 + $0x90] sm:$0xff]
  %v39 = vld [vmem:[%s0 + $0x98] sm:$0xff]
  %v40 = vld [vmem:[%s0 + $0xa0] sm:$0xff]
  %v41 = vld [vmem:[%s0 + $0xa8] sm:$0xff]
  %v42 = vld [vmem:[%s0 + $0xb0] sm:$0xff]
  %v43 = vld [vmem:[%s0 + $0xb8] sm:$0xff]
  %v44 = vld [vmem:[%s0 + $0xc0] sm:$0xff]
  %v45 = vld [vmem:[%s0 + $0xc8] sm:$0xff]
  %v46 = vld [vmem:[%s0 + $0xd0] sm:$0xff]
  %v47 = vld [vmem:[%s0 + $0xd8] sm:$0xff]
  %v48 = vld [vmem:[%s0 + $0xe0] sm:$0xff]
  %v49 = vld [vmem:[%s0 + $0xe8] sm:$0xff]
  %v50 = vld [vmem:[%s0 + $0xf0] sm:$0xff]
  %v51 = vld [vmem:[%s0 + $0xf8] sm:$0xff]
  %v52 = vld [vmem:[%s0 + $0x100] sm:$0xff]
  %v53 = vld [vmem:[%s0 + $0x108] sm:$0xff]
  %v54 = vld [vmem:[%s0 + $0x110] sm:$0xff]
  %v55 = vld [vmem:[%s0 + $0x118] sm:$0xff]
  %v56 = vld [vmem:[%s1] sm:$0x1]
  %v58 = vlaneseq
  %v59 = vshrl.u32 %v58, 7
  %v60 = vsub.s32 0, %v59
  %v61 = vrot.slane %v56, %v60
  %v63 = vmul.f32 %v20, %v61
  %v64 = vmul.f32 %v21, %v61
  %v65 = vmul.f32 %v22, %v61
  %v66 = vmul.f32 %v23, %v61
  %v67 = vmul.f32 %v24, %v61
  %v68 = vmul.f32 %v25, %v61
  %v69 = vmul.f32 %v26, %v61
  %v70 = vmul.f32 %v27, %v61
  %v71 = vmul.f32 %v28, %v61
  %v72 = vmul.f32 %v29, %v61
  %v73 = vmul.f32 %v30, %v61
  %v74 = vmul.f32 %v31, %v61
  %v75 = vmul.f32 %v32, %v61
  %v76 = vmul.f32 %v33, %v61
  %v77 = vmul.f32 %v34, %v61
  %v78 = vmul.f32 %v35, %v61
  %v79 = vmul.f32 %v36, %v61
  %v80 = vmul.f32 %v37, %v61
  %v81 = vmul.f32 %v38, %v61
  %v82 = vmul.f32 %v39, %v61
  %v83 = vmul.f32 %v40, %v61
  %v84 = vmul.f32 %v41, %v61
  %v85 = vmul.f32 %v42, %v61
  %v86 = vmul.f32 %v43, %v61
  %v87 = vmul.f32 %v44, %v61
  %v88 = vmul.f32 %v45, %v61
  %v89 = vmul.f32 %v46, %v61
  %v90 = vmul.f32 %v47, %v61
  %v91 = vmul.f32 %v48, %v61
  %v92 = vmul.f32 %v49, %v61
  %v93 = vmul.f32 %v50, %v61
  %v94 = vmul.f32 %v51, %v61
  %v95 = vmul.f32 %v52, %v61
  %v96 = vmul.f32 %v53, %v61
  %v97 = vmul.f32 %v54, %v61
  %v98 = vmul.f32 %v55, %v61
  %v99 = vld [vmem:[%s2] sm:$0x1]
  %v101 = vlaneseq
  %v102 = vshrl.u32 %v101, 7
  %v103 = vsub.s32 0, %v102
  %v104 = vrot.slane %v99, %v103
  %v106 = vadd.f32 %v63, %v104
  %v107 = vadd.f32 %v64, %v104
  %v108 = vadd.f32 %v65, %v104
  %v109 = vadd.f32 %v66, %v104
  %v110 = vadd.f32 %v67, %v104
  %v111 = vadd.f32 %v68, %v104
  %v112 = vadd.f32 %v69, %v104
  %v113 = vadd.f32 %v70, %v104
  %v114 = vadd.f32 %v71, %v104
  %v115 = vadd.f32 %v72, %v104
  %v116 = vadd.f32 %v73, %v104
  %v117 = vadd.f32 %v74, %v104
  %v118 = vadd.f32 %v75, %v104
  %v119 = vadd.f32 %v76, %v104
  %v120 = vadd.f32 %v77, %v104
  %v121 = vadd.f32 %v78, %v104
  %v122 = vadd.f32 %v79, %v104
  %v123 = vadd.f32 %v80, %v104
  %v124 = vadd.f32 %v81, %v104
  %v125 = vadd.f32 %v82, %v104
  %v126 = vadd.f32 %v83, %v104
  %v127 = vadd.f32 %v84, %v104
  %v128 = vadd.f32 %v85, %v104
  %v129 = vadd.f32 %v86, %v104
  %v130 = vadd.f32 %v87, %v104
  %v131 = vadd.f32 %v88, %v104
  %v132 = vadd.f32 %v89, %v104
  %v133 = vadd.f32 %v90, %v104
  %v134 = vadd.f32 %v91, %v104
  %v135 = vadd.f32 %v92, %v104
  %v136 = vadd.f32 %v93, %v104
  %v137 = vadd.f32 %v94, %v104
  %v138 = vadd.f32 %v95, %v104
  %v139 = vadd.f32 %v96, %v104
  %v140 = vadd.f32 %v97, %v104
  %v141 = vadd.f32 %v98, %v104
  %v142 = vmax.f32 %v106, 0.0
  %v143 = vmax.f32 %v107, 0.0
  %v144 = vmax.f32 %v108, 0.0
  %v145 = vmax.f32 %v109, 0.0
  %v146 = vmax.f32 %v110, 0.0
  %v147 = vmax.f32 %v111, 0.0
  %v148 = vmax.f32 %v112, 0.0
  %v149 = vmax.f32 %v113, 0.0
  %v150 = vmax.f32 %v114, 0.0
  %v151 = vmax.f32 %v115, 0.0
  %v152 = vmax.f32 %v116, 0.0
  %v153 = vmax.f32 %v117, 0.0
  %v154 = vmax.f32 %v118, 0.0
  %v155 = vmax.f32 %v119, 0.0
  %v156 = vmax.f32 %v120, 0.0
  %v157 = vmax.f32 %v121, 0.0
  %v158 = vmax.f32 %v122, 0.0
  %v159 = vmax.f32 %v123, 0.0
  %v160 = vmax.f32 %v124, 0.0
  %v161 = vmax.f32 %v125, 0.0
  %v162 = vmax.f32 %v126, 0.0
  %v163 = vmax.f32 %v127, 0.0
  %v164 = vmax.f32 %v128, 0.0
  %v165 = vmax.f32 %v129, 0.0
  %v166 = vmax.f32 %v130, 0.0
  %v167 = vmax.f32 %v131, 0.0
  %v168 = vmax.f32 %v132, 0.0
  %v169 = vmax.f32 %v133, 0.0
  %v170 = vmax.f32 %v134, 0.0
  %v171 = vmax.f32 %v135, 0.0
  %v172 = vmax.f32 %v136, 0.0
  %v173 = vmax.f32 %v137, 0.0
  %v174 = vmax.f32 %v138, 0.0
  %v175 = vmax.f32 %v139, 0.0
  %v176 = vmax.f32 %v140, 0.0
  %v177 = vmax.f32 %v141, 0.0
  %v178 = vld [vmem:[%s3] sm:$0xff]
  %v179 = vld [vmem:[%s3 + $0x8] sm:$0xff]
  %v180 = vld [vmem:[%s3 + $0x10] sm:$0xff]
  %v181 = vld [vmem:[%s3 + $0x18] sm:$0xff]
  %v182 = vld [vmem:[%s3 + $0x20] sm:$0xff]
  %v183 = vld [vmem:[%s3 + $0x28] sm:$0xff]
  %v184 = vld [vmem:[%s3 + $0x30] sm:$0xff]
  %v185 = vld [vmem:[%s3 + $0x38] sm:$0xff]
  %v186 = vld [vmem:[%s3 + $0x40] sm:$0xff]
  %v187 = vld [vmem:[%s3 + $0x48] sm:$0xff]
  %v188 = vld [vmem:[%s3 + $0x50] sm:$0xff]
  %v189 = vld [vmem:[%s3 + $0x58] sm:$0xff]
  %v190 = vld [vmem:[%s3 + $0x60] sm:$0xff]
  %v191 = vld [vmem:[%s3 + $0x68] sm:$0xff]
  %v192 = vld [vmem:[%s3 + $0x70] sm:$0xff]
  %v193 = vld [vmem:[%s3 + $0x78] sm:$0xff]
  %v194 = vld [vmem:[%s4] sm:$0x1]
  %v196 = vlaneseq
  %v197 = vshrl.u32 %v196, 7
  %v198 = vsub.s32 0, %v197
  %v199 = vrot.slane %v194, %v198
  %201 = vmatprep.subr.mxu0 0.0
  %202 = vmatpush1.msra.mxu0 %v178
  %203 = vmatprep.subr.mxu0 0.0
  %204 = vmatpush1.msra.mxu0 %v179
  %205 = vmatprep.subr.mxu0 0.0
  %206 = vmatpush1.msra.mxu0 %v180
  %207 = vmatprep.subr.mxu0 0.0
  %208 = vmatpush1.msra.mxu0 %v181
  %209 = vmatprep.subr.mxu0 0.0
  %210 = vmatpush1.msra.mxu0 %v182
  %211 = vmatprep.subr.mxu0 0.0
  %212 = vmatpush1.msra.mxu0 %v183
  %213 = vmatprep.subr.mxu0 0.0
  %214 = vmatpush1.msra.mxu0 %v184
  %215 = vmatprep.subr.mxu0 0.0
  %216 = vmatpush1.msra.mxu0 %v185
  %217 = vmatprep.subr.mxu0 0.0
  %218 = vmatpush1.msra.mxu0 %v186
  %219 = vmatprep.subr.mxu0 0.0
  %220 = vmatpush1.msra.mxu0 %v187
  %221 = vmatprep.subr.mxu0 0.0
  %222 = vmatpush1.msra.mxu0 %v188
  %223 = vmatprep.subr.mxu0 0.0
  %224 = vmatpush1.msra.mxu0 %v189
  %225 = vmatprep.subr.mxu0 0.0
  %226 = vmatpush1.msra.mxu0 %v190
  %227 = vmatprep.subr.mxu0 0.0
  %228 = vmatpush1.msra.mxu0 %v191
  %229 = vmatprep.subr.mxu0 0.0
  %230 = vmatpush1.msra.mxu0 %v192
  %231 = vmatprep.subr.mxu0 0.0
  %232 = vmatpush1.msra.mxu0 %v193
  %233 = vmatprep.subr.mxu0 0.0
  %234 = vmatpush1.msra.mxu0 0.0
  %235 = vmatprep.subr.mxu0 0.0
  %236 = vmatpush1.msra.mxu0 0.0
  %237 = vmatprep.subr.mxu0 0.0
  %238 = vmatpush1.msra.mxu0 0.0
  %239 = vmatprep.subr.mxu0 0.0
  %240 = vmatpush1.msra.mxu0 0.0
  %241 = vmatprep.subr.mxu0 0.0
  %242 = vmatpush1.msra.mxu0 0.0
  %243 = vmatprep.subr.mxu0 0.0
  %244 = vmatpush1.msra.mxu0 0.0
  %245 = vmatprep.subr.mxu0 0.0
  %246 = vmatpush1.msra.mxu0 0.0
  %247 = vmatprep.subr.mxu0 0.0
  %248 = vmatpush1.msra.mxu0 0.0
  %249 = vmatprep.subr.mxu0 0.0
  %250 = vmatpush1.msra.mxu0 0.0
  %251 = vmatprep.subr.mxu0 0.0
  %252 = vmatpush1.msra.mxu0 0.0
  %253 = vmatprep.subr.mxu0 0.0
  %254 = vmatpush1.msra.mxu0 0.0
  %255 = vmatprep.subr.mxu0 0.0
  %256 = vmatpush1.msra.mxu0 0.0
  %257 = vmatprep.subr.mxu0 0.0
  %258 = vmatpush1.msra.mxu0 0.0
  %259 = vmatprep.subr.mxu0 0.0
  %260 = vmatpush1.msra.mxu0 0.0
  %261 = vmatprep.subr.mxu0 0.0
  %262 = vmatpush1.msra.mxu0 0.0
  %263 = vmatprep.subr.mxu0 0.0
  %264 = vmatpush1.msra.mxu0 0.0
  %265 = vmatprep.mubr.f32.mxu0 0.0
  %266 = vmatmul.mubr.f32.gmra.mrb[0].mxu0 %v142
  %v267 = vpop.f32.mrb[0].mxu0
  %v268 = vadd.f32 %v199, %v267
  %v269 = vpop.f32.mrb[0].mxu0
  %270 = vmatprep.mubr.f32.mxu0 0.0
  %271 = vmatmul.mubr.f32.gmra.mrb[0].mxu0 %v143
  %v272 = vpop.f32.mrb[0].mxu0
  %v273 = vadd.f32 %v199, %v272
  %v274 = vpop.f32.mrb[0].mxu0
  %275 = vmatprep.mubr.f32.mxu0 0.0
  %276 = vmatmul.mubr.f32.gmra.mrb[0].mxu0 %v144
  %v277 = vpop.f32.mrb[0].mxu0
  %v278 = vadd.f32 %v199, %v277
  %v279 = vpop.f32.mrb[0].mxu0
  %280 = vmatprep.mubr.f32.mxu0 0.0
  %281 = vmatmul.mubr.f32.gmra.mrb[0].mxu0 %v145
  %v282 = vpop.f32.mrb[0].mxu0
  %v283 = vadd.f32 %v199, %v282
  %v284 = vpop.f32.mrb[0].mxu0
  %285 = vmatprep.mubr.f32.mxu0 0.0
  %286 = vmatmul.mubr.f32.gmra.mrb[0].mxu0 %v146
  %v287 = vpop.f32.mrb[0].mxu0
  %v288 = vadd.f32 %v199, %v287
  %v289 = vpop.f32.mrb[0].mxu0
  %290 = vmatprep.mubr.f32.mxu0 0.0
  %291 = vmatmul.mubr.f32.gmra.mrb[0].mxu0 %v147
  %v292 = vpop.f32.mrb[0].mxu0
  %v293 = vadd.f32 %v199, %v292
  %v294 = vpop.f32.mrb[0].mxu0
  %295 = vmatprep.mubr.f32.mxu0 0.0
  %296 = vmatmul.mubr.f32.gmra.mrb[0].mxu0 %v148
  %v297 = vpop.f32.mrb[0].mxu0
  %v298 = vadd.f32 %v199, %v297
  %v299 = vpop.f32.mrb[0].mxu0
  %300 = vmatprep.mubr.f32.mxu0 0.0
  %301 = vmatmul.mubr.f32.gmra.mrb[0].mxu0 %v149
  %v302 = vpop.f32.mrb[0].mxu0
  %v303 = vadd.f32 %v199, %v302
  %v304 = vpop.f32.mrb[0].mxu0
  %305 = vmatprep.mubr.f32.mxu0 0.0
  %306 = vmatmul.mubr.f32.gmra.mrb[0].mxu0 %v150
  %v307 = vpop.f32.mrb[0].mxu0
  %v308 = vadd.f32 %v199, %v307
  %v309 = vpop.f32.mrb[0].mxu0
  %310 = vmatprep.mubr.f32.mxu0 0.0
  %311 = vmatmul.mubr.f32.gmra.mrb[0].mxu0 %v151
  %v312 = vpop.f32.mrb[0].mxu0
  %v313 = vadd.f32 %v199, %v312
  %v314 = vpop.f32.mrb[0].mxu0
  %315 = vmatprep.mubr.f32.mxu0 0.0
  %316 = vmatmul.mubr.f32.gmra.mrb[0].mxu0 %v152
  %v317 = vpop.f32.mrb[0].mxu0
  %v318 = vadd.f32 %v199, %v317
  %v319 = vpop.f32.mrb[0].mxu0
  %320 = vmatprep.mubr.f32.mxu0 0.0
  %321 = vmatmul.mubr.f32.gmra.mrb[0].mxu0 %v153
  %v322 = vpop.f32.mrb[0].mxu0
  %v323 = vadd.f32 %v199, %v322
  %v324 = vpop.f32.mrb[0].mxu0
  %325 = vmatprep.mubr.f32.mxu0 0.0
  %326 = vmatmul.mubr.f32.gmra.mrb[0].mxu0 %v154
  %v327 = vpop.f32.mrb[0].mxu0
  %v328 = vadd.f32 %v199, %v327
  %v329 = vpop.f32.mrb[0].mxu0
  %330 = vmatprep.mubr.f32.mxu0 0.0
  %331 = vmatmul.mubr.f32.gmra.mrb[0].mxu0 %v155
  %v332 = vpop.f32.mrb[0].mxu0
  %v333 = vadd.f32 %v199, %v332
  %v334 = vpop.f32.mrb[0].mxu0
  %335 = vmatprep.mubr.f32.mxu0 0.0
  %336 = vmatmul.mubr.f32.gmra.mrb[0].mxu0 %v156
  %v337 = vpop.f32.mrb[0].mxu0
  %v338 = vadd.f32 %v199, %v337
  %v339 = vpop.f32.mrb[0].mxu0
  %340 = vmatprep.mubr.f32.mxu0 0.0
  %341 = vmatmul.mubr.f32.gmra.mrb[0].mxu0 %v157
  %v342 = vpop.f32.mrb[0].mxu0
  %v343 = vadd.f32 %v199, %v342
  %v344 = vpop.f32.mrb[0].mxu0
  %345 = vmatprep.mubr.f32.mxu0 0.0
  %346 = vmatmul.mubr.f32.gmra.mrb[0].mxu0 %v158
  %v347 = vpop.f32.mrb[0].mxu0
  %v348 = vadd.f32 %v199, %v347
  %v349 = vpop.f32.mrb[0].mxu0
  %350 = vmatprep.mubr.f32.mxu0 0.0
  %351 = vmatmul.mubr.f32.gmra.mrb[0].mxu0 %v159
  %v352 = vpop.f32.mrb[0].mxu0
  %v353 = vadd.f32 %v199, %v352
  %v354 = vpop.f32.mrb[0].mxu0
  %355 = vmatprep.mubr.f32.mxu0 0.0
  %356 = vmatmul.mubr.f32.gmra.mrb[0].mxu0 %v160
  %v357 = vpop.f32.mrb[0].mxu0
  %v358 = vadd.f32 %v199, %v357
  %v359 = vpop.f32.mrb[0].mxu0
  %360 = vmatprep.mubr.f32.mxu0 0.0
  %361 = vmatmul.mubr.f32.gmra.mrb[0].mxu0 %v161
  %v362 = vpop.f32.mrb[0].mxu0
  %v363 = vadd.f32 %v199, %v362
  %v364 = vpop.f32.mrb[0].mxu0
  %365 = vmatprep.mubr.f32.mxu0 0.0
  %366 = vmatmul.mubr.f32.gmra.mrb[0].mxu0 %v162
  %v367 = vpop.f32.mrb[0].mxu0
  %v368 = vadd.f32 %v199, %v367
  %v369 = vpop.f32.mrb[0].mxu0
  %370 = vmatprep.mubr.f32.mxu0 0.0
  %371 = vmatmul.mubr.f32.gmra.mrb[0].mxu0 %v163
  %v372 = vpop.f32.mrb[0].mxu0
  %v373 = vadd.f32 %v199, %v372
  %v374 = vpop.f32.mrb[0].mxu0
  %375 = vmatprep.mubr.f32.mxu0 0.0
  %376 = vmatmul.mubr.f32.gmra.mrb[0].mxu0 %v164
  %v377 = vpop.f32.mrb[0].mxu0
  %v378 = vadd.f32 %v199, %v377
  %v379 = vpop.f32.mrb[0].mxu0
  %380 = vmatprep.mubr.f32.mxu0 0.0
  %381 = vmatmul.mubr.f32.gmra.mrb[0].mxu0 %v165
  %v382 = vpop.f32.mrb[0].mxu0
  %v383 = vadd.f32 %v199, %v382
  %v384 = vpop.f32.mrb[0].mxu0
  %385 = vmatprep.mubr.f32.mxu0 0.0
  %386 = vmatmul.mubr.f32.gmra.mrb[0].mxu0 %v166
  %v387 = vpop.f32.mrb[0].mxu0
  %v388 = vadd.f32 %v199, %v387
  %v389 = vpop.f32.mrb[0].mxu0
  %390 = vmatprep.mubr.f32.mxu0 0.0
  %391 = vmatmul.mubr.f32.gmra.mrb[0].mxu0 %v167
  %v392 = vpop.f32.mrb[0].mxu0
  %v393 = vadd.f32 %v199, %v392
  %v394 = vpop.f32.mrb[0].mxu0
  %395 = vmatprep.mubr.f32.mxu0 0.0
  %396 = vmatmul.mubr.f32.gmra.mrb[0].mxu0 %v168
  %v397 = vpop.f32.mrb[0].mxu0
  %v398 = vadd.f32 %v199, %v397
  %v399 = vpop.f32.mrb[0].mxu0
  %400 = vmatprep.mubr.f32.mxu0 0.0
  %401 = vmatmul.mubr.f32.gmra.mrb[0].mxu0 %v169
  %v402 = vpop.f32.mrb[0].mxu0
  %v403 = vadd.f32 %v199, %v402
  %v404 = vpop.f32.mrb[0].mxu0
  %405 = vmatprep.mubr.f32.mxu0 0.0
  %406 = vmatmul.mubr.f32.gmra.mrb[0].mxu0 %v170
  %v407 = vpop.f32.mrb[0].mxu0
  %v408 = vadd.f32 %v199, %v407
  %v409 = vpop.f32.mrb[0].mxu0
  %410 = vmatprep.mubr.f32.mxu0 0.0
  %411 = vmatmul.mubr.f32.gmra.mrb[0].mxu0 %v171
  %v412 = vpop.f32.mrb[0].mxu0
  %v413 = vadd.f32 %v199, %v412
  %v414 = vpop.f32.mrb[0].mxu0
  %415 = vmatprep.mubr.f32.mxu0 0.0
  %416 = vmatmul.mubr.f32.gmra.mrb[0].mxu0 %v172
  %v417 = vpop.f32.mrb[0].mxu0
  %v418 = vadd.f32 %v199, %v417
  %v419 = vpop.f32.mrb[0].mxu0
  %420 = vmatprep.mubr.f32.mxu0 0.0
  %421 = vmatmul.mubr.f32.gmra.mrb[0].mxu0 %v173
  %v422 = vpop.f32.mrb[0].mxu0
  %v423 = vadd.f32 %v199, %v422
  %v424 = vpop.f32.mrb[0].mxu0
  %425 = vmatprep.mubr.f32.mxu0 0.0
  %426 = vmatmul.mubr.f32.gmra.mrb[0].mxu0 %v174
  %v427 = vpop.f32.mrb[0].mxu0
  %v428 = vadd.f32 %v199, %v427
  %v429 = vpop.f32.mrb[0].mxu0
  %430 = vmatprep.mubr.f32.mxu0 0.0
  %431 = vmatmul.mubr.f32.gmra.mrb[0].mxu0 %v175
  %v432 = vpop.f32.mrb[0].mxu0
  %v433 = vadd.f32 %v199, %v432
  %v434 = vpop.f32.mrb[0].mxu0
  %435 = vmatprep.mubr.f32.mxu0 0.0
  %436 = vmatmul.mubr.f32.gmra.mrb[0].mxu0 %v176
  %v437 = vpop.f32.mrb[0].mxu0
  %v438 = vadd.f32 %v199, %v437
  %v439 = vpop.f32.mrb[0].mxu0
  %440 = vmatprep.mubr.f32.mxu0 0.0
  %441 = vmatmul.mubr.f32.gmra.mrb[0].mxu0 %v177
  %v442 = vpop.f32.mrb[0].mxu0
  %v443 = vadd.f32 %v199, %v442
  %v444 = vpop.f32.mrb[0].mxu0
  %445 = vdwg.mxu0
  %446 = vst [vmem:[%s5] sm:$0xff] %v268
  %447 = vst [vmem:[%s5 + $0x8] sm:$0xff] %v273
  %448 = vst [vmem:[%s5 + $0x10] sm:$0xff] %v278
  %449 = vst [vmem:[%s5 + $0x18] sm:$0xff] %v283
  %450 = vst [vmem:[%s5 + $0x20] sm:$0xff] %v288
  %451 = vst [vmem:[%s5 + $0x28] sm:$0xff] %v293
  %452 = vst [vmem:[%s5 + $0x30] sm:$0xff] %v298
  %453 = vst [vmem:[%s5 + $0x38] sm:$0xff] %v303
  %454 = vst [vmem:[%s5 + $0x40] sm:$0xff] %v308
  %455 = vst [vmem:[%s5 + $0x48] sm:$0xff] %v313
  %456 = vst [vmem:[%s5 + $0x50] sm:$0xff] %v318
  %457 = vst [vmem:[%s5 + $0x58] sm:$0xff] %v323
  %458 = vst [vmem:[%s5 + $0x60] sm:$0xff] %v328
  %459 = vst [vmem:[%s5 + $0x68] sm:$0xff] %v333
  %460 = vst [vmem:[%s5 + $0x70] sm:$0xff] %v338
  %461 = vst [vmem:[%s5 + $0x78] sm:$0xff] %v343
  %462 = vst [vmem:[%s5 + $0x80] sm:$0xff] %v348
  %463 = vst [vmem:[%s5 + $0x88] sm:$0xff] %v353
  %464 = vst [vmem:[%s5 + $0x90] sm:$0xff] %v358
  %465 = vst [vmem:[%s5 + $0x98] sm:$0xff] %v363
  %466 = vst [vmem:[%s5 + $0xa0] sm:$0xff] %v368
  %467 = vst [vmem:[%s5 + $0xa8] sm:$0xff] %v373
  %468 = vst [vmem:[%s5 + $0xb0] sm:$0xff] %v378
  %469 = vst [vmem:[%s5 + $0xb8] sm:$0xff] %v383
  %470 = vst [vmem:[%s5 + $0xc0] sm:$0xff] %v388
  %471 = vst [vmem:[%s5 + $0xc8] sm:$0xff] %v393
  %472 = vst [vmem:[%s5 + $0xd0] sm:$0xff] %v398
  %473 = vst [vmem:[%s5 + $0xd8] sm:$0xff] %v403
  %474 = vst [vmem:[%s5 + $0xe0] sm:$0xff] %v408
  %475 = vst [vmem:[%s5 + $0xe8] sm:$0xff] %v413
  %476 = vst [vmem:[%s5 + $0xf0] sm:$0xff] %v418
  %477 = vst [vmem:[%s5 + $0xf8] sm:$0xff] %v423
  %478 = vst [vmem:[%s5 + $0x100] sm:$0xff] %v428
  %479 = vst [vmem:[%s5 + $0x108] sm:$0xff] %v433
  %480 = vst [vmem:[%s5 + $0x110] sm:$0xff] %v438
  %481 = vst [vmem:[%s5 + $0x118] sm:$0xff] %v443
  // Predicated region
  $region22: #{decoder_block_forward.5} parent=0 // pred_check
    _
  $region23: #{decoder_block_forward.5} parent=0 // pred_check_branch
    %483 = sbr.rel (0) target = $region25
  $region24: #{decoder_block_forward.5} parent=0 // pred_region
    _
  $region25: #{decoder_block_forward.5} parent=0 // pred_fallthru
    _
  // Predicated region
  $region26: #{decoder_block_forward.5} parent=0 // pred_check
    _
  $region27: #{decoder_block_forward.5} parent=0 // pred_check_branch
    %485 = sbr.rel (0) target = $region29
  $region28: #{decoder_block_forward.5} parent=0 // pred_region
    _
  $region29: #{decoder_block_forward.5} parent=0 // pred_fallthru
    _

// kernel: decoder_block_forward.4
$region0: #{decoder_block_forward.4}
  #allocation0 [shape = 'u32[]', space=smem, size = 0x4, offset = 0x4, fixed_abs, tag = 'smem constant byte address 0x4 - core index']
  #allocation1 [shape = 'u32[144,128]{1,0:T(1,128)}', space=vmem, size = 0x12000, scoped, tag = 'internal scratch']
  %s0 = inlined_call_operand.vmem [shape: f32[288,1152], index: 0, kind: input, shape index: {}]
  %s1 = inlined_call_operand.vmem [shape: f32[1,1152], index: 1, kind: input, shape index: {}]
  %s2 = inlined_call_operand.vmem [shape: f32[1,1152], index: 2, kind: input, shape index: {}]
  %s3 = inlined_call_operand.vmem [shape: f32[1152,128], index: 3, kind: input, shape index: {}]
  %s4 = inlined_call_operand.vmem [shape: f32[288,128], index: 4, kind: output, shape index: {0}]
  %s5 = inlined_call_operand.vmem [shape: f32[1,128], index: 5, kind: output, shape index: {1}]
  %s6 = inlined_call_operand.vmem [shape: f32[1,128], index: 6, kind: output, shape index: {2}]
  %7 = xla_tuple %s4, %s5, %s6
  %s8 = sld [smem:[#allocation0]]
  $region46: #{decoder_block_forward.4} parent=0
    _
  %s10 = ssub.s32 1, %s8
  %s11 = scalar_select 0, %s10, %s8
  // Predicated region
  $region2: #{decoder_block_forward.4} parent=0 // pred_check
    _
  $region3: #{decoder_block_forward.4} parent=0 // pred_check_branch
    %13 = sbr.rel (0) target = $region5
  $region4: #{decoder_block_forward.4} parent=0 // pred_region
    _
  $region5: #{decoder_block_forward.4} parent=0 // pred_fallthru
    _
  // Predicated region
  $region6: #{decoder_block_forward.4} parent=0 // pred_check
    _
  $region7: #{decoder_block_forward.4} parent=0 // pred_check_branch
    %15 = sbr.rel (0) target = $region9
  $region8: #{decoder_block_forward.4} parent=0 // pred_region
    _
  $region9: #{decoder_block_forward.4} parent=0 // pred_fallthru
    _
  // Predicated region
  $region10: #{decoder_block_forward.4} parent=0 // pred_check
    _
  $region11: #{decoder_block_forward.4} parent=0 // pred_check_branch
    %17 = sbr.rel (0) target = $region13
  $region12: #{decoder_block_forward.4} parent=0 // pred_region
    _
  $region13: #{decoder_block_forward.4} parent=0 // pred_fallthru
    _
  // Predicated region
  $region14: #{decoder_block_forward.4} parent=0 // pred_check
    _
  $region15: #{decoder_block_forward.4} parent=0 // pred_check_branch
    %19 = sbr.rel (0) target = $region17
  $region16: #{decoder_block_forward.4} parent=0 // pred_region
    _
  $region17: #{decoder_block_forward.4} parent=0 // pred_fallthru
    _
  %p20 = scmp.eq.s32.totalorder 0, 0
  // Predicated region
  $region18: #{decoder_block_forward.4} parent=0 // pred_check
    %p21 = pneg %p20
  $region19: #{decoder_block_forward.4} parent=0 // pred_check_branch
    %23 = sbr.rel (%p21) target = $region21
  $region20: #{decoder_block_forward.4} parent=0 // pred_region
    %24 = vst [vmem:[%s5] sm:$0x1] 0.0
    %25 = vst [vmem:[%s6] sm:$0x1] 0.0
  $region21: #{decoder_block_forward.4} parent=0 // pred_fallthru
    _
  %v26 = vld [vmem:[%s0] sm:$0xff]
  %v27 = vld [vmem:[%s0 + $0x8] sm:$0xff]
  %v28 = vld [vmem:[%s0 + $0x10] sm:$0xff]
  %v29 = vld [vmem:[%s0 + $0x18] sm:$0xff]
  %v30 = vld [vmem:[%s0 + $0x20] sm:$0xff]
  %v31 = vld [vmem:[%s0 + $0x28] sm:$0xff]
  %v32 = vld [vmem:[%s0 + $0x30] sm:$0xff]
  %v33 = vld [vmem:[%s0 + $0x38] sm:$0xff]
  %v34 = vld [vmem:[%s0 + $0x40] sm:$0xff]
  %v35 = vld [vmem:[%s0 + $0x48] sm:$0xff]
  %v36 = vld [vmem:[%s0 + $0x50] sm:$0xff]
  %v37 = vld [vmem:[%s0 + $0x58] sm:$0xff]
  %v38 = vld [vmem:[%s0 + $0x60] sm:$0xff]
  %v39 = vld [vmem:[%s0 + $0x68] sm:$0xff]
  %v40 = vld [vmem:[%s0 + $0x70] sm:$0xff]
  %v41 = vld [vmem:[%s0 + $0x78] sm:$0xff]
  %v42 = vld [vmem:[%s0 + $0x80] sm:$0xff]
  %v43 = vld [vmem:[%s0 + $0x88] sm:$0xff]
  %v44 = vld [vmem:[%s0 + $0x90] sm:$0xff]
  %v45 = vld [vmem:[%s0 + $0x98] sm:$0xff]
  %v46 = vld [vmem:[%s0 + $0xa0] sm:$0xff]
  %v47 = vld [vmem:[%s0 + $0xa8] sm:$0xff]
  %v48 = vld [vmem:[%s0 + $0xb0] sm:$0xff]
  %v49 = vld [vmem:[%s0 + $0xb8] sm:$0xff]
  %v50 = vld [vmem:[%s0 + $0xc0] sm:$0xff]
  %v51 = vld [vmem:[%s0 + $0xc8] sm:$0xff]
  %v52 = vld [vmem:[%s0 + $0xd0] sm:$0xff]
  %v53 = vld [vmem:[%s0 + $0xd8] sm:$0xff]
  %v54 = vld [vmem:[%s0 + $0xe0] sm:$0xff]
  %v55 = vld [vmem:[%s0 + $0xe8] sm:$0xff]
  %v56 = vld [vmem:[%s0 + $0xf0] sm:$0xff]
  %v57 = vld [vmem:[%s0 + $0xf8] sm:$0xff]
  %v58 = vld [vmem:[%s0 + $0x100] sm:$0xff]
  %v59 = vld [vmem:[%s0 + $0x108] sm:$0xff]
  %v60 = vld [vmem:[%s0 + $0x110] sm:$0xff]
  %v61 = vld [vmem:[%s0 + $0x118] sm:$0xff]
  %v62 = vld [vmem:[%s0 + $0x120] sm:$0xff]
  %v63 = vld [vmem:[%s0 + $0x128] sm:$0xff]
  %v64 = vld [vmem:[%s0 + $0x130] sm:$0xff]
  %v65 = vld [vmem:[%s0 + $0x138] sm:$0xff]
  %v66 = vld [vmem:[%s0 + $0x140] sm:$0xff]
  %v67 = vld [vmem:[%s0 + $0x148] sm:$0xff]
  %v68 = vld [vmem:[%s0 + $0x150] sm:$0xff]
  %v69 = vld [vmem:[%s0 + $0x158] sm:$0xff]
  %v70 = vld [vmem:[%s0 + $0x160] sm:$0xff]
  %v71 = vld [vmem:[%s0 + $0x168] sm:$0xff]
  %v72 = vld [vmem:[%s0 + $0x170] sm:$0xff]
  %v73 = vld [vmem:[%s0 + $0x178] sm:$0xff]
  %v74 = vld [vmem:[%s0 + $0x180] sm:$0xff]
  %v75 = vld [vmem:[%s0 + $0x188] sm:$0xff]
  %v76 = vld [vmem:[%s0 + $0x190] sm:$0xff]
  %v77 = vld [vmem:[%s0 + $0x198] sm:$0xff]
  %v78 = vld [vmem:[%s0 + $0x1a0] sm:$0xff]
  %v79 = vld [vmem:[%s0 + $0x1a8] sm:$0xff]
  %v80 = vld [vmem:[%s0 + $0x1b0] sm:$0xff]
  %v81 = vld [vmem:[%s0 + $0x1b8] sm:$0xff]
  %v82 = vld [vmem:[%s0 + $0x1c0] sm:$0xff]
  %v83 = vld [vmem:[%s0 + $0x1c8] sm:$0xff]
  %v84 = vld [vmem:[%s0 + $0x1d0] sm:$0xff]
  %v85 = vld [vmem:[%s0 + $0x1d8] sm:$0xff]
  %v86 = vld [vmem:[%s0 + $0x1e0] sm:$0xff]
  %v87 = vld [vmem:[%s0 + $0x1e8] sm:$0xff]
  %v88 = vld [vmem:[%s0 + $0x1f0] sm:$0xff]
  %v89 = vld [vmem:[%s0 + $0x1f8] sm:$0xff]
  %v90 = vld [vmem:[%s0 + $0x200] sm:$0xff]
  %v91 = vld [vmem:[%s0 + $0x208] sm:$0xff]
  %v92 = vld [vmem:[%s0 + $0x210] sm:$0xff]
  %v93 = vld [vmem:[%s0 + $0x218] sm:$0xff]
  %v94 = vld [vmem:[%s0 + $0x220] sm:$0xff]
  %v95 = vld [vmem:[%s0 + $0x228] sm:$0xff]
  %v96 = vld [vmem:[%s0 + $0x230] sm:$0xff]
  %v97 = vld [vmem:[%s0 + $0x238] sm:$0xff]
  %v98 = vld [vmem:[%s0 + $0x240] sm:$0xff]
  %v99 = vld [vmem:[%s0 + $0x248] sm:$0xff]
  %v100 = vld [vmem:[%s0 + $0x250] sm:$0xff]
  %v101 = vld [vmem:[%s0 + $0x258] sm:$0xff]
  %v102 = vld [vmem:[%s0 + $0x260] sm:$0xff]
  %v103 = vld [vmem:[%s0 + $0x268] sm:$0xff]
  %v104 = vld [vmem:[%s0 + $0x270] sm:$0xff]
  %v105 = vld [vmem:[%s0 + $0x278] sm:$0xff]
  %v106 = vld [vmem:[%s0 + $0x280] sm:$0xff]
  %v107 = vld [vmem:[%s0 + $0x288] sm:$0xff]
  %v108 = vld [vmem:[%s0 + $0x290] sm:$0xff]
  %v109 = vld [vmem:[%s0 + $0x298] sm:$0xff]
  %v110 = vld [vmem:[%s0 + $0x2a0] sm:$0xff]
  %v111 = vld [vmem:[%s0 + $0x2a8] sm:$0xff]
  %v112 = vld [vmem:[%s0 + $0x2b0] sm:$0xff]
  %v113 = vld [vmem:[%s0 + $0x2b8] sm:$0xff]
  %v114 = vld [vmem:[%s0 + $0x2c0] sm:$0xff]
  %v115 = vld [vmem:[%s0 + $0x2c8] sm:$0xff]
  %v116 = vld [vmem:[%s0 + $0x2d0] sm:$0xff]
  %v117 = vld [vmem:[%s0 + $0x2d8] sm:$0xff]
  %v118 = vld [vmem:[%s0 + $0x2e0] sm:$0xff]
  %v119 = vld [vmem:[%s0 + $0x2e8] sm:$0xff]
  %v120 = vld [vmem:[%s0 + $0x2f0] sm:$0xff]
  %v121 = vld [vmem:[%s0 + $0x2f8] sm:$0xff]
  %v122 = vld [vmem:[%s0 + $0x300] sm:$0xff]
  %v123 = vld [vmem:[%s0 + $0x308] sm:$0xff]
  %v124 = vld [vmem:[%s0 + $0x310] sm:$0xff]
  %v125 = vld [vmem:[%s0 + $0x318] sm:$0xff]
  %v126 = vld [vmem:[%s0 + $0x320] sm:$0xff]
  %v127 = vld [vmem:[%s0 + $0x328] sm:$0xff]
  %v128 = vld [vmem:[%s0 + $0x330] sm:$0xff]
  %v129 = vld [vmem:[%s0 + $0x338] sm:$0xff]
  %v130 = vld [vmem:[%s0 + $0x340] sm:$0xff]
  %v131 = vld [vmem:[%s0 + $0x348] sm:$0xff]
  %v132 = vld [vmem:[%s0 + $0x350] sm:$0xff]
  %v133 = vld [vmem:[%s0 + $0x358] sm:$0xff]
  %v134 = vld [vmem:[%s0 + $0x360] sm:$0xff]
  %v135 = vld [vmem:[%s0 + $0x368] sm:$0xff]
  %v136 = vld [vmem:[%s0 + $0x370] sm:$0xff]
  %v137 = vld [vmem:[%s0 + $0x378] sm:$0xff]
  %v138 = vld [vmem:[%s0 + $0x380] sm:$0xff]
  %v139 = vld [vmem:[%s0 + $0x388] sm:$0xff]
  %v140 = vld [vmem:[%s0 + $0x390] sm:$0xff]
  %v141 = vld [vmem:[%s0 + $0x398] sm:$0xff]
  %v142 = vld [vmem:[%s0 + $0x3a0] sm:$0xff]
  %v143 = vld [vmem:[%s0 + $0x3a8] sm:$0xff]
  %v144 = vld [vmem:[%s0 + $0x3b0] sm:$0xff]
  %v145 = vld [vmem:[%s0 + $0x3b8] sm:$0xff]
  %v146 = vld [vmem:[%s0 + $0x3c0] sm:$0xff]
  %v147 = vld [vmem:[%s0 + $0x3c8] sm:$0xff]
  %v148 = vld [vmem:[%s0 + $0x3d0] sm:$0xff]
  %v149 = vld [vmem:[%s0 + $0x3d8] sm:$0xff]
  %v150 = vld [vmem:[%s0 + $0x3e0] sm:$0xff]
  %v151 = vld [vmem:[%s0 + $0x3e8] sm:$0xff]
  %v152 = vld [vmem:[%s0 + $0x3f0] sm:$0xff]
  %v153 = vld [vmem:[%s0 + $0x3f8] sm:$0xff]
  %v154 = vld [vmem:[%s0 + $0x400] sm:$0xff]
  %v155 = vld [vmem:[%s0 + $0x408] sm:$0xff]
  %v156 = vld [vmem:[%s0 + $0x410] sm:$0xff]
  %v157 = vld [vmem:[%s0 + $0x418] sm:$0xff]
  %v158 = vld [vmem:[%s0 + $0x420] sm:$0xff]
  %v159 = vld [vmem:[%s0 + $0x428] sm:$0xff]
  %v160 = vld [vmem:[%s0 + $0x430] sm:$0xff]
  %v161 = vld [vmem:[%s0 + $0x438] sm:$0xff]
  %v162 = vld [vmem:[%s0 + $0x440] sm:$0xff]
  %v163 = vld [vmem:[%s0 + $0x448] sm:$0xff]
  %v164 = vld [vmem:[%s0 + $0x450] sm:$0xff]
  %v165 = vld [vmem:[%s0 + $0x458] sm:$0xff]
  %v166 = vld [vmem:[%s0 + $0x460] sm:$0xff]
  %v167 = vld [vmem:[%s0 + $0x468] sm:$0xff]
  %v168 = vld [vmem:[%s0 + $0x470] sm:$0xff]
  %v169 = vld [vmem:[%s0 + $0x478] sm:$0xff]
  %v170 = vld [vmem:[%s0 + $0x480] sm:$0xff]
  %v171 = vld [vmem:[%s0 + $0x488] sm:$0xff]
  %v172 = vld [vmem:[%s0 + $0x490] sm:$0xff]
  %v173 = vld [vmem:[%s0 + $0x498] sm:$0xff]
  %v174 = vld [vmem:[%s0 + $0x4a0] sm:$0xff]
  %v175 = vld [vmem:[%s0 + $0x4a8] sm:$0xff]
  %v176 = vld [vmem:[%s0 + $0x4b0] sm:$0xff]
  %v177 = vld [vmem:[%s0 + $0x4b8] sm:$0xff]
  %v178 = vld [vmem:[%s0 + $0x4c0] sm:$0xff]
  %v179 = vld [vmem:[%s0 + $0x4c8] sm:$0xff]
  %v180 = vld [vmem:[%s0 + $0x4d0] sm:$0xff]
  %v181 = vld [vmem:[%s0 + $0x4d8] sm:$0xff]
  %v182 = vld [vmem:[%s0 + $0x4e0] sm:$0xff]
  %v183 = vld [vmem:[%s0 + $0x4e8] sm:$0xff]
  %v184 = vld [vmem:[%s0 + $0x4f0] sm:$0xff]
  %v185 = vld [vmem:[%s0 + $0x4f8] sm:$0xff]
  %v186 = vld [vmem:[%s0 + $0x500] sm:$0xff]
  %v187 = vld [vmem:[%s0 + $0x508] sm:$0xff]
  %v188 = vld [vmem:[%s0 + $0x510] sm:$0xff]
  %v189 = vld [vmem:[%s0 + $0x518] sm:$0xff]
  %v190 = vld [vmem:[%s0 + $0x520] sm:$0xff]
  %v191 = vld [vmem:[%s0 + $0x528] sm:$0xff]
  %v192 = vld [vmem:[%s0 + $0x530] sm:$0xff]
  %v193 = vld [vmem:[%s0 + $0x538] sm:$0xff]
  %v194 = vld [vmem:[%s0 + $0x540] sm:$0xff]
  %v195 = vld [vmem:[%s0 + $0x548] sm:$0xff]
  %v196 = vld [vmem:[%s0 + $0x550] sm:$0xff]
  %v197 = vld [vmem:[%s0 + $0x558] sm:$0xff]
  %v198 = vld [vmem:[%s0 + $0x560] sm:$0xff]
  %v199 = vld [vmem:[%s0 + $0x568] sm:$0xff]
  %v200 = vld [vmem:[%s0 + $0x570] sm:$0xff]
  %v201 = vld [vmem:[%s0 + $0x578] sm:$0xff]
  %v202 = vld [vmem:[%s0 + $0x580] sm:$0xff]
  %v203 = vld [vmem:[%s0 + $0x588] sm:$0xff]
  %v204 = vld [vmem:[%s0 + $0x590] sm:$0xff]
  %v205 = vld [vmem:[%s0 + $0x598] sm:$0xff]
  %v206 = vld [vmem:[%s0 + $0x5a0] sm:$0xff]
  %v207 = vld [vmem:[%s0 + $0x5a8] sm:$0xff]
  %v208 = vld [vmem:[%s0 + $0x5b0] sm:$0xff]
  %v209 = vld [vmem:[%s0 + $0x5b8] sm:$0xff]
  %v210 = vld [vmem:[%s0 + $0x5c0] sm:$0xff]
  %v211 = vld [vmem:[%s0 + $0x5c8] sm:$0xff]
  %v212 = vld [vmem:[%s0 + $0x5d0] sm:$0xff]
  %v213 = vld [vmem:[%s0 + $0x5d8] sm:$0xff]
  %v214 = vld [vmem:[%s0 + $0x5e0] sm:$0xff]
  %v215 = vld [vmem:[%s0 + $0x5e8] sm:$0xff]
  %v216 = vld [vmem:[%s0 + $0x5f0] sm:$0xff]
  %v217 = vld [vmem:[%s0 + $0x5f8] sm:$0xff]
  %v218 = vld [vmem:[%s0 + $0x600] sm:$0xff]
  %v219 = vld [vmem:[%s0 + $0x608] sm:$0xff]
  %v220 = vld [vmem:[%s0 + $0x610] sm:$0xff]
  %v221 = vld [vmem:[%s0 + $0x618] sm:$0xff]
  %v222 = vld [vmem:[%s0 + $0x620] sm:$0xff]
  %v223 = vld [vmem:[%s0 + $0x628] sm:$0xff]
  %v224 = vld [vmem:[%s0 + $0x630] sm:$0xff]
  %v225 = vld [vmem:[%s0 + $0x638] sm:$0xff]
  %v226 = vld [vmem:[%s0 + $0x640] sm:$0xff]
  %v227 = vld [vmem:[%s0 + $0x648] sm:$0xff]
  %v228 = vld [vmem:[%s0 + $0x650] sm:$0xff]
  %v229 = vld [vmem:[%s0 + $0x658] sm:$0xff]
  %v230 = vld [vmem:[%s0 + $0x660] sm:$0xff]
  %v231 = vld [vmem:[%s0 + $0x668] sm:$0xff]
  %v232 = vld [vmem:[%s0 + $0x670] sm:$0xff]
  %v233 = vld [vmem:[%s0 + $0x678] sm:$0xff]
  %v234 = vld [vmem:[%s0 + $0x680] sm:$0xff]
  %v235 = vld [vmem:[%s0 + $0x688] sm:$0xff]
  %v236 = vld [vmem:[%s0 + $0x690] sm:$0xff]
  %v237 = vld [vmem:[%s0 + $0x698] sm:$0xff]
  %v238 = vld [vmem:[%s0 + $0x6a0] sm:$0xff]
  %v239 = vld [vmem:[%s0 + $0x6a8] sm:$0xff]
  %v240 = vld [vmem:[%s0 + $0x6b0] sm:$0xff]
  %v241 = vld [vmem:[%s0 + $0x6b8] sm:$0xff]
  %v242 = vld [vmem:[%s0 + $0x6c0] sm:$0xff]
  %v243 = vld [vmem:[%s0 + $0x6c8] sm:$0xff]
  %v244 = vld [vmem:[%s0 + $0x6d0] sm:$0xff]
  %v245 = vld [vmem:[%s0 + $0x6d8] sm:$0xff]
  %v246 = vld [vmem:[%s0 + $0x6e0] sm:$0xff]
  %v247 = vld [vmem:[%s0 + $0x6e8] sm:$0xff]
  %v248 = vld [vmem:[%s0 + $0x6f0] sm:$0xff]
  %v249 = vld [vmem:[%s0 + $0x6f8] sm:$0xff]
  %v250 = vld [vmem:[%s0 + $0x700] sm:$0xff]
  %v251 = vld [vmem:[%s0 + $0x708] sm:$0xff]
  %v252 = vld [vmem:[%s0 + $0x710] sm:$0xff]
  %v253 = vld [vmem:[%s0 + $0x718] sm:$0xff]
  %v254 = vld [vmem:[%s0 + $0x720] sm:$0xff]
  %v255 = vld [vmem:[%s0 + $0x728] sm:$0xff]
  %v256 = vld [vmem:[%s0 + $0x730] sm:$0xff]
  %v257 = vld [vmem:[%s0 + $0x738] sm:$0xff]
  %v258 = vld [vmem:[%s0 + $0x740] sm:$0xff]
  %v259 = vld [vmem:[%s0 + $0x748] sm:$0xff]
  %v260 = vld [vmem:[%s0 + $0x750] sm:$0xff]
  %v261 = vld [vmem:[%s0 + $0x758] sm:$0xff]
  %v262 = vld [vmem:[%s0 + $0x760] sm:$0xff]
  %v263 = vld [vmem:[%s0 + $0x768] sm:$0xff]
  %v264 = vld [vmem:[%s0 + $0x770] sm:$0xff]
  %v265 = vld [vmem:[%s0 + $0x778] sm:$0xff]
  %v266 = vld [vmem:[%s0 + $0x780] sm:$0xff]
  %v267 = vld [vmem:[%s0 + $0x788] sm:$0xff]
  %v268 = vld [vmem:[%s0 + $0x790] sm:$0xff]
  %v269 = vld [vmem:[%s0 + $0x798] sm:$0xff]
  %v270 = vld [vmem:[%s0 + $0x7a0] sm:$0xff]
  %v271 = vld [vmem:[%s0 + $0x7a8] sm:$0xff]
  %v272 = vld [vmem:[%s0 + $0x7b0] sm:$0xff]
  %v273 = vld [vmem:[%s0 + $0x7b8] sm:$0xff]
  %v274 = vld [vmem:[%s0 + $0x7c0] sm:$0xff]
  %v275 = vld [vmem:[%s0 + $0x7c8] sm:$0xff]
  %v276 = vld [vmem:[%s0 + $0x7d0] sm:$0xff]
  %v277 = vld [vmem:[%s0 + $0x7d8] sm:$0xff]
  %v278 = vld [vmem:[%s0 + $0x7e0] sm:$0xff]
  %v279 = vld [vmem:[%s0 + $0x7e8] sm:$0xff]
  %v280 = vld [vmem:[%s0 + $0x7f0] sm:$0xff]
  %v281 = vld [vmem:[%s0 + $0x7f8] sm:$0xff]
  %v282 = vld [vmem:[%s0 + $0x800] sm:$0xff]
  %v283 = vld [vmem:[%s0 + $0x808] sm:$0xff]
  %v284 = vld [vmem:[%s0 + $0x810] sm:$0xff]
  %v285 = vld [vmem:[%s0 + $0x818] sm:$0xff]
  %v286 = vld [vmem:[%s0 + $0x820] sm:$0xff]
  %v287 = vld [vmem:[%s0 + $0x828] sm:$0xff]
  %v288 = vld [vmem:[%s0 + $0x830] sm:$0xff]
  %v289 = vld [vmem:[%s0 + $0x838] sm:$0xff]
  %v290 = vld [vmem:[%s0 + $0x840] sm:$0xff]
  %v291 = vld [vmem:[%s0 + $0x848] sm:$0xff]
  %v292 = vld [vmem:[%s0 + $0x850] sm:$0xff]
  %v293 = vld [vmem:[%s0 + $0x858] sm:$0xff]
  %v294 = vld [vmem:[%s0 + $0x860] sm:$0xff]
  %v295 = vld [vmem:[%s0 + $0x868] sm:$0xff]
  %v296 = vld [vmem:[%s0 + $0x870] sm:$0xff]
  %v297 = vld [vmem:[%s0 + $0x878] sm:$0xff]
  %v298 = vld [vmem:[%s0 + $0x880] sm:$0xff]
  %v299 = vld [vmem:[%s0 + $0x888] sm:$0xff]
  %v300 = vld [vmem:[%s0 + $0x890] sm:$0xff]
  %v301 = vld [vmem:[%s0 + $0x898] sm:$0xff]
  %v302 = vld [vmem:[%s0 + $0x8a0] sm:$0xff]
  %v303 = vld [vmem:[%s0 + $0x8a8] sm:$0xff]
  %v304 = vld [vmem:[%s0 + $0x8b0] sm:$0xff]
  %v305 = vld [vmem:[%s0 + $0x8b8] sm:$0xff]
  %v306 = vld [vmem:[%s0 + $0x8c0] sm:$0xff]
  %v307 = vld [vmem:[%s0 + $0x8c8] sm:$0xff]
  %v308 = vld [vmem:[%s0 + $0x8d0] sm:$0xff]
  %v309 = vld [vmem:[%s0 + $0x8d8] sm:$0xff]
  %v310 = vld [vmem:[%s0 + $0x8e0] sm:$0xff]
  %v311 = vld [vmem:[%s0 + $0x8e8] sm:$0xff]
  %v312 = vld [vmem:[%s0 + $0x8f0] sm:$0xff]
  %v313 = vld [vmem:[%s0 + $0x8f8] sm:$0xff]
  %v314 = vld [vmem:[%s0 + $0x900] sm:$0xff]
  %v315 = vld [vmem:[%s0 + $0x908] sm:$0xff]
  %v316 = vld [vmem:[%s0 + $0x910] sm:$0xff]
  %v317 = vld [vmem:[%s0 + $0x918] sm:$0xff]
  %v318 = vld [vmem:[%s0 + $0x920] sm:$0xff]
  %v319 = vld [vmem:[%s0 + $0x928] sm:$0xff]
  %v320 = vld [vmem:[%s0 + $0x930] sm:$0xff]
  %v321 = vld [vmem:[%s0 + $0x938] sm:$0xff]
  %v322 = vld [vmem:[%s0 + $0x940] sm:$0xff]
  %v323 = vld [vmem:[%s0 + $0x948] sm:$0xff]
  %v324 = vld [vmem:[%s0 + $0x950] sm:$0xff]
  %v325 = vld [vmem:[%s0 + $0x958] sm:$0xff]
  %v326 = vld [vmem:[%s0 + $0x960] sm:$0xff]
  %v327 = vld [vmem:[%s0 + $0x968] sm:$0xff]
  %v328 = vld [vmem:[%s0 + $0x970] sm:$0xff]
  %v329 = vld [vmem:[%s0 + $0x978] sm:$0xff]
  %v330 = vld [vmem:[%s0 + $0x980] sm:$0xff]
  %v331 = vld [vmem:[%s0 + $0x988] sm:$0xff]
  %v332 = vld [vmem:[%s0 + $0x990] sm:$0xff]
  %v333 = vld [vmem:[%s0 + $0x998] sm:$0xff]
  %v334 = vld [vmem:[%s0 + $0x9a0] sm:$0xff]
  %v335 = vld [vmem:[%s0 + $0x9a8] sm:$0xff]
  %v336 = vld [vmem:[%s0 + $0x9b0] sm:$0xff]
  %v337 = vld [vmem:[%s0 + $0x9b8] sm:$0xff]
  %v338 = vld [vmem:[%s0 + $0x9c0] sm:$0xff]
  %v339 = vld [vmem:[%s0 + $0x9c8] sm:$0xff]
  %v340 = vld [vmem:[%s0 + $0x9d0] sm:$0xff]
  %v341 = vld [vmem:[%s0 + $0x9d8] sm:$0xff]
  %v342 = vld [vmem:[%s0 + $0x9e0] sm:$0xff]
  %v343 = vld [vmem:[%s0 + $0x9e8] sm:$0xff]
  %v344 = vld [vmem:[%s0 + $0x9f0] sm:$0xff]
  %v345 = vld [vmem:[%s0 + $0x9f8] sm:$0xff]
  %v346 = vld [vmem:[%s0 + $0xa00] sm:$0xff]
  %v347 = vld [vmem:[%s0 + $0xa08] sm:$0xff]
  %v348 = vld [vmem:[%s0 + $0xa10] sm:$0xff]
  %v349 = vld [vmem:[%s0 + $0xa18] sm:$0xff]
  %v350 = vld [vmem:[%s1] sm:$0xff]
  %v351 = vld [vmem:[%s1 + $0x8] sm:$0x1]
  %v354 = vlaneseq
  %v355 = vshrl.u32 %v354, 7
  %v356 = vsub.s32 0, %v355
  %v357 = vrot.slane %v350, %v356
  %v358 = vlaneseq
  %v359 = vshrl.u32 %v358, 7
  %v360 = vsub.s32 1, %v359
  %v361 = vrot.slane %v350, %v360
  %v362 = vlaneseq
  %v363 = vshrl.u32 %v362, 7
  %v364 = vsub.s32 2, %v363
  %v365 = vrot.slane %v350, %v364
  %v366 = vlaneseq
  %v367 = vshrl.u32 %v366, 7
  %v368 = vsub.s32 3, %v367
  %v369 = vrot.slane %v350, %v368
  %v370 = vlaneseq
  %v371 = vshrl.u32 %v370, 7
  %v372 = vsub.s32 4, %v371
  %v373 = vrot.slane %v350, %v372
  %v374 = vlaneseq
  %v375 = vshrl.u32 %v374, 7
  %v376 = vsub.s32 5, %v375
  %v377 = vrot.slane %v350, %v376
  %v378 = vlaneseq
  %v379 = vshrl.u32 %v378, 7
  %v380 = vsub.s32 6, %v379
  %v381 = vrot.slane %v350, %v380
  %v382 = vlaneseq
  %v383 = vshrl.u32 %v382, 7
  %v384 = vsub.s32 7, %v383
  %v385 = vrot.slane %v350, %v384
  %v386 = vlaneseq
  %v387 = vshrl.u32 %v386, 7
  %v388 = vsub.s32 0, %v387
  %v389 = vrot.slane %v351, %v388
  %v399 = vmul.f32 %v26, %v357
  %v400 = vmul.f32 %v27, %v361
  %v401 = vmul.f32 %v28, %v365
  %v402 = vmul.f32 %v29, %v369
  %v403 = vmul.f32 %v30, %v373
  %v404 = vmul.f32 %v31, %v377
  %v405 = vmul.f32 %v32, %v381
  %v406 = vmul.f32 %v33, %v385
  %v407 = vmul.f32 %v34, %v389
  %v408 = vmul.f32 %v35, %v357
  %v409 = vmul.f32 %v36, %v361
  %v410 = vmul.f32 %v37, %v365
  %v411 = vmul.f32 %v38, %v369
  %v412 = vmul.f32 %v39, %v373
  %v413 = vmul.f32 %v40, %v377
  %v414 = vmul.f32 %v41, %v381
  %v415 = vmul.f32 %v42, %v385
  %v416 = vmul.f32 %v43, %v389
  %v417 = vmul.f32 %v44, %v357
  %v418 = vmul.f32 %v45, %v361
  %v419 = vmul.f32 %v46, %v365
  %v420 = vmul.f32 %v47, %v369
  %v421 = vmul.f32 %v48, %v373
  %v422 = vmul.f32 %v49, %v377
  %v423 = vmul.f32 %v50, %v381
  %v424 = vmul.f32 %v51, %v385
  %v425 = vmul.f32 %v52, %v389
  %v426 = vmul.f32 %v53, %v357
  %v427 = vmul.f32 %v54, %v361
  %v428 = vmul.f32 %v55, %v365
  %v429 = vmul.f32 %v56, %v369
  %v430 = vmul.f32 %v57, %v373
  %v431 = vmul.f32 %v58, %v377
  %v432 = vmul.f32 %v59, %v381
  %v433 = vmul.f32 %v60, %v385
  %v434 = vmul.f32 %v61, %v389
  %v435 = vmul.f32 %v62, %v357
  %v436 = vmul.f32 %v63, %v361
  %v437 = vmul.f32 %v64, %v365
  %v438 = vmul.f32 %v65, %v369
  %v439 = vmul.f32 %v66, %v373
  %v440 = vmul.f32 %v67, %v377
  %v441 = vmul.f32 %v68, %v381
  %v442 = vmul.f32 %v69, %v385
  %v443 = vmul.f32 %v70, %v389
  %v444 = vmul.f32 %v71, %v357
  %v445 = vmul.f32 %v72, %v361
  %v446 = vmul.f32 %v73, %v365
  %v447 = vmul.f32 %v74, %v369
  %v448 = vmul.f32 %v75, %v373
  %v449 = vmul.f32 %v76, %v377
  %v450 = vmul.f32 %v77, %v381
  %v451 = vmul.f32 %v78, %v385
  %v452 = vmul.f32 %v79, %v389
  %v453 = vmul.f32 %v80, %v357
  %v454 = vmul.f32 %v81, %v361
  %v455 = vmul.f32 %v82, %v365
  %v456 = vmul.f32 %v83, %v369
  %v457 = vmul.f32 %v84, %v373
  %v458 = vmul.f32 %v85, %v377
  %v459 = vmul.f32 %v86, %v381
  %v460 = vmul.f32 %v87, %v385
  %v461 = vmul.f32 %v88, %v389
  %v462 = vmul.f32 %v89, %v357
  %v463 = vmul.f32 %v90, %v361
  %v464 = vmul.f32 %v91, %v365
  %v465 = vmul.f32 %v92, %v369
  %v466 = vmul.f32 %v93, %v373
  %v467 = vmul.f32 %v94, %v377
  %v468 = vmul.f32 %v95, %v381
  %v469 = vmul.f32 %v96, %v385
  %v470 = vmul.f32 %v97, %v389
  %v471 = vmul.f32 %v98, %v357
  %v472 = vmul.f32 %v99, %v361
  %v473 = vmul.f32 %v100, %v365
  %v474 = vmul.f32 %v101, %v369
  %v475 = vmul.f32 %v102, %v373
  %v476 = vmul.f32 %v103, %v377
  %v477 = vmul.f32 %v104, %v381
  %v478 = vmul.f32 %v105, %v385
  %v479 = vmul.f32 %v106, %v389
  %v480 = vmul.f32 %v107, %v357
  %v481 = vmul.f32 %v108, %v361
  %v482 = vmul.f32 %v109, %v365
  %v483 = vmul.f32 %v110, %v369
  %v484 = vmul.f32 %v111, %v373
  %v485 = vmul.f32 %v112, %v377
  %v486 = vmul.f32 %v113, %v381
  %v487 = vmul.f32 %v114, %v385
  %v488 = vmul.f32 %v115, %v389
  %v489 = vmul.f32 %v116, %v357
  %v490 = vmul.f32 %v117, %v361
  %v491 = vmul.f32 %v118, %v365
  %v492 = vmul.f32 %v119, %v369
  %v493 = vmul.f32 %v120, %v373
  %v494 = vmul.f32 %v121, %v377
  %v495 = vmul.f32 %v122, %v381
  %v496 = vmul.f32 %v123, %v385
  %v497 = vmul.f32 %v124, %v389
  %v498 = vmul.f32 %v125, %v357
  %v499 = vmul.f32 %v126, %v361
  %v500 = vmul.f32 %v127, %v365
  %v501 = vmul.f32 %v128, %v369
  %v502 = vmul.f32 %v129, %v373
  %v503 = vmul.f32 %v130, %v377
  %v504 = vmul.f32 %v131, %v381
  %v505 = vmul.f32 %v132, %v385
  %v506 = vmul.f32 %v133, %v389
  %v507 = vmul.f32 %v134, %v357
  %v508 = vmul.f32 %v135, %v361
  %v509 = vmul.f32 %v136, %v365
  %v510 = vmul.f32 %v137, %v369
  %v511 = vmul.f32 %v138, %v373
  %v512 = vmul.f32 %v139, %v377
  %v513 = vmul.f32 %v140, %v381
  %v514 = vmul.f32 %v141, %v385
  %v515 = vmul.f32 %v142, %v389
  %v516 = vmul.f32 %v143, %v357
  %v517 = vmul.f32 %v144, %v361
  %v518 = vmul.f32 %v145, %v365
  %v519 = vmul.f32 %v146, %v369
  %v520 = vmul.f32 %v147, %v373
  %v521 = vmul.f32 %v148, %v377
  %v522 = vmul.f32 %v149, %v381
  %v523 = vmul.f32 %v150, %v385
  %v524 = vmul.f32 %v151, %v389
  %v525 = vmul.f32 %v152, %v357
  %v526 = vmul.f32 %v153, %v361
  %v527 = vmul.f32 %v154, %v365
  %v528 = vmul.f32 %v155, %v369
  %v529 = vmul.f32 %v156, %v373
  %v530 = vmul.f32 %v157, %v377
  %v531 = vmul.f32 %v158, %v381
  %v532 = vmul.f32 %v159, %v385
  %v533 = vmul.f32 %v160, %v389
  %v534 = vmul.f32 %v161, %v357
  %v535 = vmul.f32 %v162, %v361
  %v536 = vmul.f32 %v163, %v365
  %v537 = vmul.f32 %v164, %v369
  %v538 = vmul.f32 %v165, %v373
  %v539 = vmul.f32 %v166, %v377
  %v540 = vmul.f32 %v167, %v381
  %v541 = vmul.f32 %v168, %v385
  %v542 = vmul.f32 %v169, %v389
  %v543 = vmul.f32 %v170, %v357
  %v544 = vmul.f32 %v171, %v361
  %v545 = vmul.f32 %v172, %v365
  %v546 = vmul.f32 %v173, %v369
  %v547 = vmul.f32 %v174, %v373
  %v548 = vmul.f32 %v175, %v377
  %v549 = vmul.f32 %v176, %v381
  %v550 = vmul.f32 %v177, %v385
  %v551 = vmul.f32 %v178, %v389
  %v552 = vmul.f32 %v179, %v357
  %v553 = vmul.f32 %v180, %v361
  %v554 = vmul.f32 %v181, %v365
  %v555 = vmul.f32 %v182, %v369
  %v556 = vmul.f32 %v183, %v373
  %v557 = vmul.f32 %v184, %v377
  %v558 = vmul.f32 %v185, %v381
  %v559 = vmul.f32 %v186, %v385
  %v560 = vmul.f32 %v187, %v389
  %v561 = vmul.f32 %v188, %v357
  %v562 = vmul.f32 %v189, %v361
  %v563 = vmul.f32 %v190, %v365
  %v564 = vmul.f32 %v191, %v369
  %v565 = vmul.f32 %v192, %v373
  %v566 = vmul.f32 %v193, %v377
  %v567 = vmul.f32 %v194, %v381
  %v568 = vmul.f32 %v195, %v385
  %v569 = vmul.f32 %v196, %v389
  %v570 = vmul.f32 %v197, %v357
  %v571 = vmul.f32 %v198, %v361
  %v572 = vmul.f32 %v199, %v365
  %v573 = vmul.f32 %v200, %v369
  %v574 = vmul.f32 %v201, %v373
  %v575 = vmul.f32 %v202, %v377
  %v576 = vmul.f32 %v203, %v381
  %v577 = vmul.f32 %v204, %v385
  %v578 = vmul.f32 %v205, %v389
  %v579 = vmul.f32 %v206, %v357
  %v580 = vmul.f32 %v207, %v361
  %v581 = vmul.f32 %v208, %v365
  %v582 = vmul.f32 %v209, %v369
  %v583 = vmul.f32 %v210, %v373
  %v584 = vmul.f32 %v211, %v377
  %v585 = vmul.f32 %v212, %v381
  %v586 = vmul.f32 %v213, %v385
  %v587 = vmul.f32 %v214, %v389
  %v588 = vmul.f32 %v215, %v357
  %v589 = vmul.f32 %v216, %v361
  %v590 = vmul.f32 %v217, %v365
  %v591 = vmul.f32 %v218, %v369
  %v592 = vmul.f32 %v219, %v373
  %v593 = vmul.f32 %v220, %v377
  %v594 = vmul.f32 %v221, %v381
  %v595 = vmul.f32 %v222, %v385
  %v596 = vmul.f32 %v223, %v389
  %v597 = vmul.f32 %v224, %v357
  %v598 = vmul.f32 %v225, %v361
  %v599 = vmul.f32 %v226, %v365
  %v600 = vmul.f32 %v227, %v369
  %v601 = vmul.f32 %v228, %v373
  %v602 = vmul.f32 %v229, %v377
  %v603 = vmul.f32 %v230, %v381
  %v604 = vmul.f32 %v231, %v385
  %v605 = vmul.f32 %v232, %v389
  %v606 = vmul.f32 %v233, %v357
  %v607 = vmul.f32 %v234, %v361
  %v608 = vmul.f32 %v235, %v365
  %v609 = vmul.f32 %v236, %v369
  %v610 = vmul.f32 %v237, %v373
  %v611 = vmul.f32 %v238, %v377
  %v612 = vmul.f32 %v239, %v381
  %v613 = vmul.f32 %v240, %v385
  %v614 = vmul.f32 %v241, %v389
  %v615 = vmul.f32 %v242, %v357
  %v616 = vmul.f32 %v243, %v361
  %v617 = vmul.f32 %v244, %v365
  %v618 = vmul.f32 %v245, %v369
  %v619 = vmul.f32 %v246, %v373
  %v620 = vmul.f32 %v247, %v377
  %v621 = vmul.f32 %v248, %v381
  %v622 = vmul.f32 %v249, %v385
  %v623 = vmul.f32 %v250, %v389
  %v624 = vmul.f32 %v251, %v357
  %v625 = vmul.f32 %v252, %v361
  %v626 = vmul.f32 %v253, %v365
  %v627 = vmul.f32 %v254, %v369
  %v628 = vmul.f32 %v255, %v373
  %v629 = vmul.f32 %v256, %v377
  %v630 = vmul.f32 %v257, %v381
  %v631 = vmul.f32 %v258, %v385
  %v632 = vmul.f32 %v259, %v389
  %v633 = vmul.f32 %v260, %v357
  %v634 = vmul.f32 %v261, %v361
  %v635 = vmul.f32 %v262, %v365
  %v636 = vmul.f32 %v263, %v369
  %v637 = vmul.f32 %v264, %v373
  %v638 = vmul.f32 %v265, %v377
  %v639 = vmul.f32 %v266, %v381
  %v640 = vmul.f32 %v267, %v385
  %v641 = vmul.f32 %v268, %v389
  %v642 = vmul.f32 %v269, %v357
  %v643 = vmul.f32 %v270, %v361
  %v644 = vmul.f32 %v271, %v365
  %v645 = vmul.f32 %v272, %v369
  %v646 = vmul.f32 %v273, %v373
  %v647 = vmul.f32 %v274, %v377
  %v648 = vmul.f32 %v275, %v381
  %v649 = vmul.f32 %v276, %v385
  %v650 = vmul.f32 %v277, %v389
  %v651 = vmul.f32 %v278, %v357
  %v652 = vmul.f32 %v279, %v361
  %v653 = vmul.f32 %v280, %v365
  %v654 = vmul.f32 %v281, %v369
  %v655 = vmul.f32 %v282, %v373
  %v656 = vmul.f32 %v283, %v377
  %v657 = vmul.f32 %v284, %v381
  %v658 = vmul.f32 %v285, %v385
  %v659 = vmul.f32 %v286, %v389
  %v660 = vmul.f32 %v287, %v357
  %v661 = vmul.f32 %v288, %v361
  %v662 = vmul.f32 %v289, %v365
  %v663 = vmul.f32 %v290, %v369
  %v664 = vmul.f32 %v291, %v373
  %v665 = vmul.f32 %v292, %v377
  %v666 = vmul.f32 %v293, %v381
  %v667 = vmul.f32 %v294, %v385
  %v668 = vmul.f32 %v295, %v389
  %v669 = vmul.f32 %v296, %v357
  %v670 = vmul.f32 %v297, %v361
  %v671 = vmul.f32 %v298, %v365
  %v672 = vmul.f32 %v299, %v369
  %v673 = vmul.f32 %v300, %v373
  %v674 = vmul.f32 %v301, %v377
  %v675 = vmul.f32 %v302, %v381
  %v676 = vmul.f32 %v303, %v385
  %v677 = vmul.f32 %v304, %v389
  %v678 = vmul.f32 %v305, %v357
  %v679 = vmul.f32 %v306, %v361
  %v680 = vmul.f32 %v307, %v365
  %v681 = vmul.f32 %v308, %v369
  %v682 = vmul.f32 %v309, %v373
  %v683 = vmul.f32 %v310, %v377
  %v684 = vmul.f32 %v311, %v381
  %v685 = vmul.f32 %v312, %v385
  %v686 = vmul.f32 %v313, %v389
  %v687 = vmul.f32 %v314, %v357
  %v688 = vmul.f32 %v315, %v361
  %v689 = vmul.f32 %v316, %v365
  %v690 = vmul.f32 %v317, %v369
  %v691 = vmul.f32 %v318, %v373
  %v692 = vmul.f32 %v319, %v377
  %v693 = vmul.f32 %v320, %v381
  %v694 = vmul.f32 %v321, %v385
  %v695 = vmul.f32 %v322, %v389
  %v696 = vmul.f32 %v323, %v357
  %v697 = vmul.f32 %v324, %v361
  %v698 = vmul.f32 %v325, %v365
  %v699 = vmul.f32 %v326, %v369
  %v700 = vmul.f32 %v327, %v373
  %v701 = vmul.f32 %v328, %v377
  %v702 = vmul.f32 %v329, %v381
  %v703 = vmul.f32 %v330, %v385
  %v704 = vmul.f32 %v331, %v389
  %v705 = vmul.f32 %v332, %v357
  %v706 = vmul.f32 %v333, %v361
  %v707 = vmul.f32 %v334, %v365
  %v708 = vmul.f32 %v335, %v369
  %v709 = vmul.f32 %v336, %v373
  %v710 = vmul.f32 %v337, %v377
  %v711 = vmul.f32 %v338, %v381
  %v712 = vmul.f32 %v339, %v385
  %v713 = vmul.f32 %v340, %v389
  %v714 = vmul.f32 %v341, %v357
  %v715 = vmul.f32 %v342, %v361
  %v716 = vmul.f32 %v343, %v365
  %v717 = vmul.f32 %v344, %v369
  %v718 = vmul.f32 %v345, %v373
  %v719 = vmul.f32 %v346, %v377
  %v720 = vmul.f32 %v347, %v381
  %v721 = vmul.f32 %v348, %v385
  %v722 = vmul.f32 %v349, %v389
  %v723 = vld [vmem:[%s2] sm:$0xff]
  %v724 = vld [vmem:[%s2 + $0x8] sm:$0x1]
  %v727 = vlaneseq
  %v728 = vshrl.u32 %v727, 7
  %v729 = vsub.s32 0, %v728
  %v730 = vrot.slane %v723, %v729
  %v731 = vlaneseq
  %v732 = vshrl.u32 %v731, 7
  %v733 = vsub.s32 1, %v732
  %v734 = vrot.slane %v723, %v733
  %v735 = vlaneseq
  %v736 = vshrl.u32 %v735, 7
  %v737 = vsub.s32 2, %v736
  %v738 = vrot.slane %v723, %v737
  %v739 = vlaneseq
  %v740 = vshrl.u32 %v739, 7
  %v741 = vsub.s32 3, %v740
  %v742 = vrot.slane %v723, %v741
  %v743 = vlaneseq
  %v744 = vshrl.u32 %v743, 7
  %v745 = vsub.s32 4, %v744
  %v746 = vrot.slane %v723, %v745
  %v747 = vlaneseq
  %v748 = vshrl.u32 %v747, 7
  %v749 = vsub.s32 5, %v748
  %v750 = vrot.slane %v723, %v749
  %v751 = vlaneseq
  %v752 = vshrl.u32 %v751, 7
  %v753 = vsub.s32 6, %v752
  %v754 = vrot.slane %v723, %v753
  %v755 = vlaneseq
  %v756 = vshrl.u32 %v755, 7
  %v757 = vsub.s32 7, %v756
  %v758 = vrot.slane %v723, %v757
  %v759 = vlaneseq
  %v760 = vshrl.u32 %v759, 7
  %v761 = vsub.s32 0, %v760
  %v762 = vrot.slane %v724, %v761
  %v772 = vadd.f32 %v399, %v730
  %v773 = vadd.f32 %v400, %v734
  %v774 = vadd.f32 %v401, %v738
  %v775 = vadd.f32 %v402, %v742
  %v776 = vadd.f32 %v403, %v746
  %v777 = vadd.f32 %v404, %v750
  %v778 = vadd.f32 %v405, %v754
  %v779 = vadd.f32 %v406, %v758
  %v780 = vadd.f32 %v407, %v762
  %v781 = vadd.f32 %v408, %v730
  %v782 = vadd.f32 %v409, %v734
  %v783 = vadd.f32 %v410, %v738
  %v784 = vadd.f32 %v411, %v742
  %v785 = vadd.f32 %v412, %v746
  %v786 = vadd.f32 %v413, %v750
  %v787 = vadd.f32 %v414, %v754
  %v788 = vadd.f32 %v415, %v758
  %v789 = vadd.f32 %v416, %v762
  %v790 = vadd.f32 %v417, %v730
  %v791 = vadd.f32 %v418, %v734
  %v792 = vadd.f32 %v419, %v738
  %v793 = vadd.f32 %v420, %v742
  %v794 = vadd.f32 %v421, %v746
  %v795 = vadd.f32 %v422, %v750
  %v796 = vadd.f32 %v423, %v754
  %v797 = vadd.f32 %v424, %v758
  %v798 = vadd.f32 %v425, %v762
  %v799 = vadd.f32 %v426, %v730
  %v800 = vadd.f32 %v427, %v734
  %v801 = vadd.f32 %v428, %v738
  %v802 = vadd.f32 %v429, %v742
  %v803 = vadd.f32 %v430, %v746
  %v804 = vadd.f32 %v431, %v750
  %v805 = vadd.f32 %v432, %v754
  %v806 = vadd.f32 %v433, %v758
  %v807 = vadd.f32 %v434, %v762
  %v808 = vadd.f32 %v435, %v730
  %v809 = vadd.f32 %v436, %v734
  %v810 = vadd.f32 %v437, %v738
  %v811 = vadd.f32 %v438, %v742
  %v812 = vadd.f32 %v439, %v746
  %v813 = vadd.f32 %v440, %v750
  %v814 = vadd.f32 %v441, %v754
  %v815 = vadd.f32 %v442, %v758
  %v816 = vadd.f32 %v443, %v762
  %v817 = vadd.f32 %v444, %v730
  %v818 = vadd.f32 %v445, %v734
  %v819 = vadd.f32 %v446, %v738
  %v820 = vadd.f32 %v447, %v742
  %v821 = vadd.f32 %v448, %v746
  %v822 = vadd.f32 %v449, %v750
  %v823 = vadd.f32 %v450, %v754
  %v824 = vadd.f32 %v451, %v758
  %v825 = vadd.f32 %v452, %v762
  %v826 = vadd.f32 %v453, %v730
  %v827 = vadd.f32 %v454, %v734
  %v828 = vadd.f32 %v455, %v738
  %v829 = vadd.f32 %v456, %v742
  %v830 = vadd.f32 %v457, %v746
  %v831 = vadd.f32 %v458, %v750
  %v832 = vadd.f32 %v459, %v754
  %v833 = vadd.f32 %v460, %v758
  %v834 = vadd.f32 %v461, %v762
  %v835 = vadd.f32 %v462, %v730
  %v836 = vadd.f32 %v463, %v734
  %v837 = vadd.f32 %v464, %v738
  %v838 = vadd.f32 %v465, %v742
  %v839 = vadd.f32 %v466, %v746
  %v840 = vadd.f32 %v467, %v750
  %v841 = vadd.f32 %v468, %v754
  %v842 = vadd.f32 %v469, %v758
  %v843 = vadd.f32 %v470, %v762
  %v844 = vadd.f32 %v471, %v730
  %v845 = vadd.f32 %v472, %v734
  %v846 = vadd.f32 %v473, %v738
  %v847 = vadd.f32 %v474, %v742
  %v848 = vadd.f32 %v475, %v746
  %v849 = vadd.f32 %v476, %v750
  %v850 = vadd.f32 %v477, %v754
  %v851 = vadd.f32 %v478, %v758
  %v852 = vadd.f32 %v479, %v762
  %v853 = vadd.f32 %v480, %v730
  %v854 = vadd.f32 %v481, %v734
  %v855 = vadd.f32 %v482, %v738
  %v856 = vadd.f32 %v483, %v742
  %v857 = vadd.f32 %v484, %v746
  %v858 = vadd.f32 %v485, %v750
  %v859 = vadd.f32 %v486, %v754
  %v860 = vadd.f32 %v487, %v758
  %v861 = vadd.f32 %v488, %v762
  %v862 = vadd.f32 %v489, %v730
  %v863 = vadd.f32 %v490, %v734
  %v864 = vadd.f32 %v491, %v738
  %v865 = vadd.f32 %v492, %v742
  %v866 = vadd.f32 %v493, %v746
  %v867 = vadd.f32 %v494, %v750
  %v868 = vadd.f32 %v495, %v754
  %v869 = vadd.f32 %v496, %v758
  %v870 = vadd.f32 %v497, %v762
  %v871 = vadd.f32 %v498, %v730
  %v872 = vadd.f32 %v499, %v734
  %v873 = vadd.f32 %v500, %v738
  %v874 = vadd.f32 %v501, %v742
  %v875 = vadd.f32 %v502, %v746
  %v876 = vadd.f32 %v503, %v750
  %v877 = vadd.f32 %v504, %v754
  %v878 = vadd.f32 %v505, %v758
  %v879 = vadd.f32 %v506, %v762
  %v880 = vadd.f32 %v507, %v730
  %v881 = vadd.f32 %v508, %v734
  %v882 = vadd.f32 %v509, %v738
  %v883 = vadd.f32 %v510, %v742
  %v884 = vadd.f32 %v511, %v746
  %v885 = vadd.f32 %v512, %v750
  %v886 = vadd.f32 %v513, %v754
  %v887 = vadd.f32 %v514, %v758
  %v888 = vadd.f32 %v515, %v762
  %v889 = vadd.f32 %v516, %v730
  %v890 = vadd.f32 %v517, %v734
  %v891 = vadd.f32 %v518, %v738
  %v892 = vadd.f32 %v519, %v742
  %v893 = vadd.f32 %v520, %v746
  %v894 = vadd.f32 %v521, %v750
  %v895 = vadd.f32 %v522, %v754
  %v896 = vadd.f32 %v523, %v758
  %v897 = vadd.f32 %v524, %v762
  %v898 = vadd.f32 %v525, %v730
  %v899 = vadd.f32 %v526, %v734
  %v900 = vadd.f32 %v527, %v738
  %v901 = vadd.f32 %v528, %v742
  %v902 = vadd.f32 %v529, %v746
  %v903 = vadd.f32 %v530, %v750
  %v904 = vadd.f32 %v531, %v754
  %v905 = vadd.f32 %v532, %v758
  %v906 = vadd.f32 %v533, %v762
  %v907 = vadd.f32 %v534, %v730
  %v908 = vadd.f32 %v535, %v734
  %v909 = vadd.f32 %v536, %v738
  %v910 = vadd.f32 %v537, %v742
  %v911 = vadd.f32 %v538, %v746
  %v912 = vadd.f32 %v539, %v750
  %v913 = vadd.f32 %v540, %v754
  %v914 = vadd.f32 %v541, %v758
  %v915 = vadd.f32 %v542, %v762
  %v916 = vadd.f32 %v543, %v730
  %v917 = vadd.f32 %v544, %v734
  %v918 = vadd.f32 %v545, %v738
  %v919 = vadd.f32 %v546, %v742
  %v920 = vadd.f32 %v547, %v746
  %v921 = vadd.f32 %v548, %v750
  %v922 = vadd.f32 %v549, %v754
  %v923 = vadd.f32 %v550, %v758
  %v924 = vadd.f32 %v551, %v762
  %v925 = vadd.f32 %v552, %v730
  %v926 = vadd.f32 %v553, %v734
  %v927 = vadd.f32 %v554, %v738
  %v928 = vadd.f32 %v555, %v742
  %v929 = vadd.f32 %v556, %v746
  %v930 = vadd.f32 %v557, %v750
  %v931 = vadd.f32 %v558, %v754
  %v932 = vadd.f32 %v559, %v758
  %v933 = vadd.f32 %v560, %v762
  %v934 = vadd.f32 %v561, %v730
  %v935 = vadd.f32 %v562, %v734
  %v936 = vadd.f32 %v563, %v738
  %v937 = vadd.f32 %v564, %v742
  %v938 = vadd.f32 %v565, %v746
  %v939 = vadd.f32 %v566, %v750
  %v940 = vadd.f32 %v567, %v754
  %v941 = vadd.f32 %v568, %v758
  %v942 = vadd.f32 %v569, %v762
  %v943 = vadd.f32 %v570, %v730
  %v944 = vadd.f32 %v571, %v734
  %v945 = vadd.f32 %v572, %v738
  %v946 = vadd.f32 %v573, %v742
  %v947 = vadd.f32 %v574, %v746
  %v948 = vadd.f32 %v575, %v750
  %v949 = vadd.f32 %v576, %v754
  %v950 = vadd.f32 %v577, %v758
  %v951 = vadd.f32 %v578, %v762
  %v952 = vadd.f32 %v579, %v730
  %v953 = vadd.f32 %v580, %v734
  %v954 = vadd.f32 %v581, %v738
  %v955 = vadd.f32 %v582, %v742
  %v956 = vadd.f32 %v583, %v746
  %v957 = vadd.f32 %v584, %v750
  %v958 = vadd.f32 %v585, %v754
  %v959 = vadd.f32 %v586, %v758
  %v960 = vadd.f32 %v587, %v762
  %v961 = vadd.f32 %v588, %v730
  %v962 = vadd.f32 %v589, %v734
  %v963 = vadd.f32 %v590, %v738
  %v964 = vadd.f32 %v591, %v742
  %v965 = vadd.f32 %v592, %v746
  %v966 = vadd.f32 %v593, %v750
  %v967 = vadd.f32 %v594, %v754
  %v968 = vadd.f32 %v595, %v758
  %v969 = vadd.f32 %v596, %v762
  %v970 = vadd.f32 %v597, %v730
  %v971 = vadd.f32 %v598, %v734
  %v972 = vadd.f32 %v599, %v738
  %v973 = vadd.f32 %v600, %v742
  %v974 = vadd.f32 %v601, %v746
  %v975 = vadd.f32 %v602, %v750
  %v976 = vadd.f32 %v603, %v754
  %v977 = vadd.f32 %v604, %v758
  %v978 = vadd.f32 %v605, %v762
  %v979 = vadd.f32 %v606, %v730
  %v980 = vadd.f32 %v607, %v734
  %v981 = vadd.f32 %v608, %v738
  %v982 = vadd.f32 %v609, %v742
  %v983 = vadd.f32 %v610, %v746
  %v984 = vadd.f32 %v611, %v750
  %v985 = vadd.f32 %v612, %v754
  %v986 = vadd.f32 %v613, %v758
  %v987 = vadd.f32 %v614, %v762
  %v988 = vadd.f32 %v615, %v730
  %v989 = vadd.f32 %v616, %v734
  %v990 = vadd.f32 %v617, %v738
  %v991 = vadd.f32 %v618, %v742
  %v992 = vadd.f32 %v619, %v746
  %v993 = vadd.f32 %v620, %v750
  %v994 = vadd.f32 %v621, %v754
  %v995 = vadd.f32 %v622, %v758
  %v996 = vadd.f32 %v623, %v762
  %v997 = vadd.f32 %v624, %v730
  %v998 = vadd.f32 %v625, %v734
  %v999 = vadd.f32 %v626, %v738
  %v1000 = vadd.f32 %v627, %v742
  %v1001 = vadd.f32 %v628, %v746
  %v1002 = vadd.f32 %v629, %v750
  %v1003 = vadd.f32 %v630, %v754
  %v1004 = vadd.f32 %v631, %v758
  %v1005 = vadd.f32 %v632, %v762
  %v1006 = vadd.f32 %v633, %v730
  %v1007 = vadd.f32 %v634, %v734
  %v1008 = vadd.f32 %v635, %v738
  %v1009 = vadd.f32 %v636, %v742
  %v1010 = vadd.f32 %v637, %v746
  %v1011 = vadd.f32 %v638, %v750
  %v1012 = vadd.f32 %v639, %v754
  %v1013 = vadd.f32 %v640, %v758
  %v1014 = vadd.f32 %v641, %v762
  %v1015 = vadd.f32 %v642, %v730
  %v1016 = vadd.f32 %v643, %v734
  %v1017 = vadd.f32 %v644, %v738
  %v1018 = vadd.f32 %v645, %v742
  %v1019 = vadd.f32 %v646, %v746
  %v1020 = vadd.f32 %v647, %v750
  %v1021 = vadd.f32 %v648, %v754
  %v1022 = vadd.f32 %v649, %v758
  %v1023 = vadd.f32 %v650, %v762
  %v1024 = vadd.f32 %v651, %v730
  %v1025 = vadd.f32 %v652, %v734
  %v1026 = vadd.f32 %v653, %v738
  %v1027 = vadd.f32 %v654, %v742
  %v1028 = vadd.f32 %v655, %v746
  %v1029 = vadd.f32 %v656, %v750
  %v1030 = vadd.f32 %v657, %v754
  %v1031 = vadd.f32 %v658, %v758
  %v1032 = vadd.f32 %v659, %v762
  %v1033 = vadd.f32 %v660, %v730
  %v1034 = vadd.f32 %v661, %v734
  %v1035 = vadd.f32 %v662, %v738
  %v1036 = vadd.f32 %v663, %v742
  %v1037 = vadd.f32 %v664, %v746
  %v1038 = vadd.f32 %v665, %v750
  %v1039 = vadd.f32 %v666, %v754
  %v1040 = vadd.f32 %v667, %v758
  %v1041 = vadd.f32 %v668, %v762
  %v1042 = vadd.f32 %v669, %v730
  %v1043 = vadd.f32 %v670, %v734
  %v1044 = vadd.f32 %v671, %v738
  %v1045 = vadd.f32 %v672, %v742
  %v1046 = vadd.f32 %v673, %v746
  %v1047 = vadd.f32 %v674, %v750
  %v1048 = vadd.f32 %v675, %v754
  %v1049 = vadd.f32 %v676, %v758
  %v1050 = vadd.f32 %v677, %v762
  %v1051 = vadd.f32 %v678, %v730
  %v1052 = vadd.f32 %v679, %v734
  %v1053 = vadd.f32 %v680, %v738
  %v1054 = vadd.f32 %v681, %v742
  %v1055 = vadd.f32 %v682, %v746
  %v1056 = vadd.f32 %v683, %v750
  %v1057 = vadd.f32 %v684, %v754
  %v1058 = vadd.f32 %v685, %v758
  %v1059 = vadd.f32 %v686, %v762
  %v1060 = vadd.f32 %v687, %v730
  %v1061 = vadd.f32 %v688, %v734
  %v1062 = vadd.f32 %v689, %v738
  %v1063 = vadd.f32 %v690, %v742
  %v1064 = vadd.f32 %v691, %v746
  %v1065 = vadd.f32 %v692, %v750
  %v1066 = vadd.f32 %v693, %v754
  %v1067 = vadd.f32 %v694, %v758
  %v1068 = vadd.f32 %v695, %v762
  %v1069 = vadd.f32 %v696, %v730
  %v1070 = vadd.f32 %v697, %v734
  %v1071 = vadd.f32 %v698, %v738
  %v1072 = vadd.f32 %v699, %v742
  %v1073 = vadd.f32 %v700, %v746
  %v1074 = vadd.f32 %v701, %v750
  %v1075 = vadd.f32 %v702, %v754
  %v1076 = vadd.f32 %v703, %v758
  %v1077 = vadd.f32 %v704, %v762
  %v1078 = vadd.f32 %v705, %v730
  %v1079 = vadd.f32 %v706, %v734
  %v1080 = vadd.f32 %v707, %v738
  %v1081 = vadd.f32 %v708, %v742
  %v1082 = vadd.f32 %v709, %v746
  %v1083 = vadd.f32 %v710, %v750
  %v1084 = vadd.f32 %v711, %v754
  %v1085 = vadd.f32 %v712, %v758
  %v1086 = vadd.f32 %v713, %v762
  %v1087 = vadd.f32 %v714, %v730
  %v1088 = vadd.f32 %v715, %v734
  %v1089 = vadd.f32 %v716, %v738
  %v1090 = vadd.f32 %v717, %v742
  %v1091 = vadd.f32 %v718, %v746
  %v1092 = vadd.f32 %v719, %v750
  %v1093 = vadd.f32 %v720, %v754
  %v1094 = vadd.f32 %v721, %v758
  %v1095 = vadd.f32 %v722, %v762
  %v1096 = vmax.f32 %v772, 0.0
  %v1097 = vmax.f32 %v773, 0.0
  %v1098 = vmax.f32 %v774, 0.0
  %v1099 = vmax.f32 %v775, 0.0
  %v1100 = vmax.f32 %v776, 0.0
  %v1101 = vmax.f32 %v777, 0.0
  %v1102 = vmax.f32 %v778, 0.0
  %v1103 = vmax.f32 %v779, 0.0
  %v1104 = vmax.f32 %v780, 0.0
  %v1105 = vmax.f32 %v781, 0.0
  %v1106 = vmax.f32 %v782, 0.0
  %v1107 = vmax.f32 %v783, 0.0
  %v1108 = vmax.f32 %v784, 0.0
  %v1109 = vmax.f32 %v785, 0.0
  %v1110 = vmax.f32 %v786, 0.0
  %v1111 = vmax.f32 %v787, 0.0
  %v1112 = vmax.f32 %v788, 0.0
  %v1113 = vmax.f32 %v789, 0.0
  %v1114 = vmax.f32 %v790, 0.0
  %v1115 = vmax.f32 %v791, 0.0
  %v1116 = vmax.f32 %v792, 0.0
  %v1117 = vmax.f32 %v793, 0.0
  %v1118 = vmax.f32 %v794, 0.0
  %v1119 = vmax.f32 %v795, 0.0
  %v1120 = vmax.f32 %v796, 0.0
  %v1121 = vmax.f32 %v797, 0.0
  %v1122 = vmax.f32 %v798, 0.0
  %v1123 = vmax.f32 %v799, 0.0
  %v1124 = vmax.f32 %v800, 0.0
  %v1125 = vmax.f32 %v801, 0.0
  %v1126 = vmax.f32 %v802, 0.0
  %v1127 = vmax.f32 %v803, 0.0
  %v1128 = vmax.f32 %v804, 0.0
  %v1129 = vmax.f32 %v805, 0.0
  %v1130 = vmax.f32 %v806, 0.0
  %v1131 = vmax.f32 %v807, 0.0
  %v1132 = vmax.f32 %v808, 0.0
  %v1133 = vmax.f32 %v809, 0.0
  %v1134 = vmax.f32 %v810, 0.0
  %v1135 = vmax.f32 %v811, 0.0
  %v1136 = vmax.f32 %v812, 0.0
  %v1137 = vmax.f32 %v813, 0.0
  %v1138 = vmax.f32 %v814, 0.0
  %v1139 = vmax.f32 %v815, 0.0
  %v1140 = vmax.f32 %v816, 0.0
  %v1141 = vmax.f32 %v817, 0.0
  %v1142 = vmax.f32 %v818, 0.0
  %v1143 = vmax.f32 %v819, 0.0
  %v1144 = vmax.f32 %v820, 0.0
  %v1145 = vmax.f32 %v821, 0.0
  %v1146 = vmax.f32 %v822, 0.0
  %v1147 = vmax.f32 %v823, 0.0
  %v1148 = vmax.f32 %v824, 0.0
  %v1149 = vmax.f32 %v825, 0.0
  %v1150 = vmax.f32 %v826, 0.0
  %v1151 = vmax.f32 %v827, 0.0
  %v1152 = vmax.f32 %v828, 0.0
  %v1153 = vmax.f32 %v829, 0.0
  %v1154 = vmax.f32 %v830, 0.0
  %v1155 = vmax.f32 %v831, 0.0
  %v1156 = vmax.f32 %v832, 0.0
  %v1157 = vmax.f32 %v833, 0.0
  %v1158 = vmax.f32 %v834, 0.0
  %v1159 = vmax.f32 %v835, 0.0
  %v1160 = vmax.f32 %v836, 0.0
  %v1161 = vmax.f32 %v837, 0.0
  %v1162 = vmax.f32 %v838, 0.0
  %v1163 = vmax.f32 %v839, 0.0
  %v1164 = vmax.f32 %v840, 0.0
  %v1165 = vmax.f32 %v841, 0.0
  %v1166 = vmax.f32 %v842, 0.0
  %v1167 = vmax.f32 %v843, 0.0
  %v1168 = vmax.f32 %v844, 0.0
  %v1169 = vmax.f32 %v845, 0.0
  %v1170 = vmax.f32 %v846, 0.0
  %v1171 = vmax.f32 %v847, 0.0
  %v1172 = vmax.f32 %v848, 0.0
  %v1173 = vmax.f32 %v849, 0.0
  %v1174 = vmax.f32 %v850, 0.0
  %v1175 = vmax.f32 %v851, 0.0
  %v1176 = vmax.f32 %v852, 0.0
  %v1177 = vmax.f32 %v853, 0.0
  %v1178 = vmax.f32 %v854, 0.0
  %v1179 = vmax.f32 %v855, 0.0
  %v1180 = vmax.f32 %v856, 0.0
  %v1181 = vmax.f32 %v857, 0.0
  %v1182 = vmax.f32 %v858, 0.0
  %v1183 = vmax.f32 %v859, 0.0
  %v1184 = vmax.f32 %v860, 0.0
  %v1185 = vmax.f32 %v861, 0.0
  %v1186 = vmax.f32 %v862, 0.0
  %v1187 = vmax.f32 %v863, 0.0
  %v1188 = vmax.f32 %v864, 0.0
  %v1189 = vmax.f32 %v865, 0.0
  %v1190 = vmax.f32 %v866, 0.0
  %v1191 = vmax.f32 %v867, 0.0
  %v1192 = vmax.f32 %v868, 0.0
  %v1193 = vmax.f32 %v869, 0.0
  %v1194 = vmax.f32 %v870, 0.0
  %v1195 = vmax.f32 %v871, 0.0
  %v1196 = vmax.f32 %v872, 0.0
  %v1197 = vmax.f32 %v873, 0.0
  %v1198 = vmax.f32 %v874, 0.0
  %v1199 = vmax.f32 %v875, 0.0
  %v1200 = vmax.f32 %v876, 0.0
  %v1201 = vmax.f32 %v877, 0.0
  %v1202 = vmax.f32 %v878, 0.0
  %v1203 = vmax.f32 %v879, 0.0
  %v1204 = vmax.f32 %v880, 0.0
  %v1205 = vmax.f32 %v881, 0.0
  %v1206 = vmax.f32 %v882, 0.0
  %v1207 = vmax.f32 %v883, 0.0
  %v1208 = vmax.f32 %v884, 0.0
  %v1209 = vmax.f32 %v885, 0.0
  %v1210 = vmax.f32 %v886, 0.0
  %v1211 = vmax.f32 %v887, 0.0
  %v1212 = vmax.f32 %v888, 0.0
  %v1213 = vmax.f32 %v889, 0.0
  %v1214 = vmax.f32 %v890, 0.0
  %v1215 = vmax.f32 %v891, 0.0
  %v1216 = vmax.f32 %v892, 0.0
  %v1217 = vmax.f32 %v893, 0.0
  %v1218 = vmax.f32 %v894, 0.0
  %v1219 = vmax.f32 %v895, 0.0
  %v1220 = vmax.f32 %v896, 0.0
  %v1221 = vmax.f32 %v897, 0.0
  %v1222 = vmax.f32 %v898, 0.0
  %v1223 = vmax.f32 %v899, 0.0
  %v1224 = vmax.f32 %v900, 0.0
  %v1225 = vmax.f32 %v901, 0.0
  %v1226 = vmax.f32 %v902, 0.0
  %v1227 = vmax.f32 %v903, 0.0
  %v1228 = vmax.f32 %v904, 0.0
  %v1229 = vmax.f32 %v905, 0.0
  %v1230 = vmax.f32 %v906, 0.0
  %v1231 = vmax.f32 %v907, 0.0
  %v1232 = vmax.f32 %v908, 0.0
  %v1233 = vmax.f32 %v909, 0.0
  %v1234 = vmax.f32 %v910, 0.0
  %v1235 = vmax.f32 %v911, 0.0
  %v1236 = vmax.f32 %v912, 0.0
  %v1237 = vmax.f32 %v913, 0.0
  %v1238 = vmax.f32 %v914, 0.0
  %v1239 = vmax.f32 %v915, 0.0
  %v1240 = vmax.f32 %v916, 0.0
  %v1241 = vmax.f32 %v917, 0.0
  %v1242 = vmax.f32 %v918, 0.0
  %v1243 = vmax.f32 %v919, 0.0
  %v1244 = vmax.f32 %v920, 0.0
  %v1245 = vmax.f32 %v921, 0.0
  %v1246 = vmax.f32 %v922, 0.0
  %v1247 = vmax.f32 %v923, 0.0
  %v1248 = vmax.f32 %v924, 0.0
  %v1249 = vmax.f32 %v925, 0.0
  %v1250 = vmax.f32 %v926, 0.0
  %v1251 = vmax.f32 %v927, 0.0
  %v1252 = vmax.f32 %v928, 0.0
  %v1253 = vmax.f32 %v929, 0.0
  %v1254 = vmax.f32 %v930, 0.0
  %v1255 = vmax.f32 %v931, 0.0
  %v1256 = vmax.f32 %v932, 0.0
  %v1257 = vmax.f32 %v933, 0.0
  %v1258 = vmax.f32 %v934, 0.0
  %v1259 = vmax.f32 %v935, 0.0
  %v1260 = vmax.f32 %v936, 0.0
  %v1261 = vmax.f32 %v937, 0.0
  %v1262 = vmax.f32 %v938, 0.0
  %v1263 = vmax.f32 %v939, 0.0
  %v1264 = vmax.f32 %v940, 0.0
  %v1265 = vmax.f32 %v941, 0.0
  %v1266 = vmax.f32 %v942, 0.0
  %v1267 = vmax.f32 %v943, 0.0
  %v1268 = vmax.f32 %v944, 0.0
  %v1269 = vmax.f32 %v945, 0.0
  %v1270 = vmax.f32 %v946, 0.0
  %v1271 = vmax.f32 %v947, 0.0
  %v1272 = vmax.f32 %v948, 0.0
  %v1273 = vmax.f32 %v949, 0.0
  %v1274 = vmax.f32 %v950, 0.0
  %v1275 = vmax.f32 %v951, 0.0
  %v1276 = vmax.f32 %v952, 0.0
  %v1277 = vmax.f32 %v953, 0.0
  %v1278 = vmax.f32 %v954, 0.0
  %v1279 = vmax.f32 %v955, 0.0
  %v1280 = vmax.f32 %v956, 0.0
  %v1281 = vmax.f32 %v957, 0.0
  %v1282 = vmax.f32 %v958, 0.0
  %v1283 = vmax.f32 %v959, 0.0
  %v1284 = vmax.f32 %v960, 0.0
  %v1285 = vmax.f32 %v961, 0.0
  %v1286 = vmax.f32 %v962, 0.0
  %v1287 = vmax.f32 %v963, 0.0
  %v1288 = vmax.f32 %v964, 0.0
  %v1289 = vmax.f32 %v965, 0.0
  %v1290 = vmax.f32 %v966, 0.0
  %v1291 = vmax.f32 %v967, 0.0
  %v1292 = vmax.f32 %v968, 0.0
  %v1293 = vmax.f32 %v969, 0.0
  %v1294 = vmax.f32 %v970, 0.0
  %v1295 = vmax.f32 %v971, 0.0
  %v1296 = vmax.f32 %v972, 0.0
  %v1297 = vmax.f32 %v973, 0.0
  %v1298 = vmax.f32 %v974, 0.0
  %v1299 = vmax.f32 %v975, 0.0
  %v1300 = vmax.f32 %v976, 0.0
  %v1301 = vmax.f32 %v977, 0.0
  %v1302 = vmax.f32 %v978, 0.0
  %v1303 = vmax.f32 %v979, 0.0
  %v1304 = vmax.f32 %v980, 0.0
  %v1305 = vmax.f32 %v981, 0.0
  %v1306 = vmax.f32 %v982, 0.0
  %v1307 = vmax.f32 %v983, 0.0
  %v1308 = vmax.f32 %v984, 0.0
  %v1309 = vmax.f32 %v985, 0.0
  %v1310 = vmax.f32 %v986, 0.0
  %v1311 = vmax.f32 %v987, 0.0
  %v1312 = vmax.f32 %v988, 0.0
  %v1313 = vmax.f32 %v989, 0.0
  %v1314 = vmax.f32 %v990, 0.0
  %v1315 = vmax.f32 %v991, 0.0
  %v1316 = vmax.f32 %v992, 0.0
  %v1317 = vmax.f32 %v993, 0.0
  %v1318 = vmax.f32 %v994, 0.0
  %v1319 = vmax.f32 %v995, 0.0
  %v1320 = vmax.f32 %v996, 0.0
  %v1321 = vmax.f32 %v997, 0.0
  %v1322 = vmax.f32 %v998, 0.0
  %v1323 = vmax.f32 %v999, 0.0
  %v1324 = vmax.f32 %v1000, 0.0
  %v1325 = vmax.f32 %v1001, 0.0
  %v1326 = vmax.f32 %v1002, 0.0
  %v1327 = vmax.f32 %v1003, 0.0
  %v1328 = vmax.f32 %v1004, 0.0
  %v1329 = vmax.f32 %v1005, 0.0
  %v1330 = vmax.f32 %v1006, 0.0
  %v1331 = vmax.f32 %v1007, 0.0
  %v1332 = vmax.f32 %v1008, 0.0
  %v1333 = vmax.f32 %v1009, 0.0
  %v1334 = vmax.f32 %v1010, 0.0
  %v1335 = vmax.f32 %v1011, 0.0
  %v1336 = vmax.f32 %v1012, 0.0
  %v1337 = vmax.f32 %v1013, 0.0
  %v1338 = vmax.f32 %v1014, 0.0
  %v1339 = vmax.f32 %v1015, 0.0
  %v1340 = vmax.f32 %v1016, 0.0
  %v1341 = vmax.f32 %v1017, 0.0
  %v1342 = vmax.f32 %v1018, 0.0
  %v1343 = vmax.f32 %v1019, 0.0
  %v1344 = vmax.f32 %v1020, 0.0
  %v1345 = vmax.f32 %v1021, 0.0
  %v1346 = vmax.f32 %v1022, 0.0
  %v1347 = vmax.f32 %v1023, 0.0
  %v1348 = vmax.f32 %v1024, 0.0
  %v1349 = vmax.f32 %v1025, 0.0
  %v1350 = vmax.f32 %v1026, 0.0
  %v1351 = vmax.f32 %v1027, 0.0
  %v1352 = vmax.f32 %v1028, 0.0
  %v1353 = vmax.f32 %v1029, 0.0
  %v1354 = vmax.f32 %v1030, 0.0
  %v1355 = vmax.f32 %v1031, 0.0
  %v1356 = vmax.f32 %v1032, 0.0
  %v1357 = vmax.f32 %v1033, 0.0
  %v1358 = vmax.f32 %v1034, 0.0
  %v1359 = vmax.f32 %v1035, 0.0
  %v1360 = vmax.f32 %v1036, 0.0
  %v1361 = vmax.f32 %v1037, 0.0
  %v1362 = vmax.f32 %v1038, 0.0
  %v1363 = vmax.f32 %v1039, 0.0
  %v1364 = vmax.f32 %v1040, 0.0
  %v1365 = vmax.f32 %v1041, 0.0
  %v1366 = vmax.f32 %v1042, 0.0
  %v1367 = vmax.f32 %v1043, 0.0
  %v1368 = vmax.f32 %v1044, 0.0
  %v1369 = vmax.f32 %v1045, 0.0
  %v1370 = vmax.f32 %v1046, 0.0
  %v1371 = vmax.f32 %v1047, 0.0
  %v1372 = vmax.f32 %v1048, 0.0
  %v1373 = vmax.f32 %v1049, 0.0
  %v1374 = vmax.f32 %v1050, 0.0
  %v1375 = vmax.f32 %v1051, 0.0
  %v1376 = vmax.f32 %v1052, 0.0
  %v1377 = vmax.f32 %v1053, 0.0
  %v1378 = vmax.f32 %v1054, 0.0
  %v1379 = vmax.f32 %v1055, 0.0
  %v1380 = vmax.f32 %v1056, 0.0
  %v1381 = vmax.f32 %v1057, 0.0
  %v1382 = vmax.f32 %v1058, 0.0
  %v1383 = vmax.f32 %v1059, 0.0
  %v1384 = vmax.f32 %v1060, 0.0
  %v1385 = vmax.f32 %v1061, 0.0
  %v1386 = vmax.f32 %v1062, 0.0
  %v1387 = vmax.f32 %v1063, 0.0
  %v1388 = vmax.f32 %v1064, 0.0
  %v1389 = vmax.f32 %v1065, 0.0
  %v1390 = vmax.f32 %v1066, 0.0
  %v1391 = vmax.f32 %v1067, 0.0
  %v1392 = vmax.f32 %v1068, 0.0
  %v1393 = vmax.f32 %v1069, 0.0
  %v1394 = vmax.f32 %v1070, 0.0
  %v1395 = vmax.f32 %v1071, 0.0
  %v1396 = vmax.f32 %v1072, 0.0
  %v1397 = vmax.f32 %v1073, 0.0
  %v1398 = vmax.f32 %v1074, 0.0
  %v1399 = vmax.f32 %v1075, 0.0
  %v1400 = vmax.f32 %v1076, 0.0
  %v1401 = vmax.f32 %v1077, 0.0
  %v1402 = vmax.f32 %v1078, 0.0
  %v1403 = vmax.f32 %v1079, 0.0
  %v1404 = vmax.f32 %v1080, 0.0
  %v1405 = vmax.f32 %v1081, 0.0
  %v1406 = vmax.f32 %v1082, 0.0
  %v1407 = vmax.f32 %v1083, 0.0
  %v1408 = vmax.f32 %v1084, 0.0
  %v1409 = vmax.f32 %v1085, 0.0
  %v1410 = vmax.f32 %v1086, 0.0
  %v1411 = vmax.f32 %v1087, 0.0
  %v1412 = vmax.f32 %v1088, 0.0
  %v1413 = vmax.f32 %v1089, 0.0
  %v1414 = vmax.f32 %v1090, 0.0
  %v1415 = vmax.f32 %v1091, 0.0
  %v1416 = vmax.f32 %v1092, 0.0
  %v1417 = vmax.f32 %v1093, 0.0
  %v1418 = vmax.f32 %v1094, 0.0
  %v1419 = vmax.f32 %v1095, 0.0
  %v1420 = vld [vmem:[%s3] sm:$0xff]
  %v1421 = vld [vmem:[%s3 + $0x8] sm:$0xff]
  %v1422 = vld [vmem:[%s3 + $0x10] sm:$0xff]
  %v1423 = vld [vmem:[%s3 + $0x18] sm:$0xff]
  %v1424 = vld [vmem:[%s3 + $0x20] sm:$0xff]
  %v1425 = vld [vmem:[%s3 + $0x28] sm:$0xff]
  %v1426 = vld [vmem:[%s3 + $0x30] sm:$0xff]
  %v1427 = vld [vmem:[%s3 + $0x38] sm:$0xff]
  %v1428 = vld [vmem:[%s3 + $0x40] sm:$0xff]
  %v1429 = vld [vmem:[%s3 + $0x48] sm:$0xff]
  %v1430 = vld [vmem:[%s3 + $0x50] sm:$0xff]
  %v1431 = vld [vmem:[%s3 + $0x58] sm:$0xff]
  %v1432 = vld [vmem:[%s3 + $0x60] sm:$0xff]
  %v1433 = vld [vmem:[%s3 + $0x68] sm:$0xff]
  %v1434 = vld [vmem:[%s3 + $0x70] sm:$0xff]
  %v1435 = vld [vmem:[%s3 + $0x78] sm:$0xff]
  %v1436 = vld [vmem:[%s3 + $0x80] sm:$0xff]
  %v1437 = vld [vmem:[%s3 + $0x88] sm:$0xff]
  %v1438 = vld [vmem:[%s3 + $0x90] sm:$0xff]
  %v1439 = vld [vmem:[%s3 + $0x98] sm:$0xff]
  %v1440 = vld [vmem:[%s3 + $0xa0] sm:$0xff]
  %v1441 = vld [vmem:[%s3 + $0xa8] sm:$0xff]
  %v1442 = vld [vmem:[%s3 + $0xb0] sm:$0xff]
  %v1443 = vld [vmem:[%s3 + $0xb8] sm:$0xff]
  %v1444 = vld [vmem:[%s3 + $0xc0] sm:$0xff]
  %v1445 = vld [vmem:[%s3 + $0xc8] sm:$0xff]
  %v1446 = vld [vmem:[%s3 + $0xd0] sm:$0xff]
  %v1447 = vld [vmem:[%s3 + $0xd8] sm:$0xff]
  %v1448 = vld [vmem:[%s3 + $0xe0] sm:$0xff]
  %v1449 = vld [vmem:[%s3 + $0xe8] sm:$0xff]
  %v1450 = vld [vmem:[%s3 + $0xf0] sm:$0xff]
  %v1451 = vld [vmem:[%s3 + $0xf8] sm:$0xff]
  %v1452 = vld [vmem:[%s3 + $0x100] sm:$0xff]
  %v1453 = vld [vmem:[%s3 + $0x108] sm:$0xff]
  %v1454 = vld [vmem:[%s3 + $0x110] sm:$0xff]
  %v1455 = vld [vmem:[%s3 + $0x118] sm:$0xff]
  %v1456 = vld [vmem:[%s3 + $0x120] sm:$0xff]
  %v1457 = vld [vmem:[%s3 + $0x128] sm:$0xff]
  %v1458 = vld [vmem:[%s3 + $0x130] sm:$0xff]
  %v1459 = vld [vmem:[%s3 + $0x138] sm:$0xff]
  %v1460 = vld [vmem:[%s3 + $0x140] sm:$0xff]
  %v1461 = vld [vmem:[%s3 + $0x148] sm:$0xff]
  %v1462 = vld [vmem:[%s3 + $0x150] sm:$0xff]
  %v1463 = vld [vmem:[%s3 + $0x158] sm:$0xff]
  %v1464 = vld [vmem:[%s3 + $0x160] sm:$0xff]
  %v1465 = vld [vmem:[%s3 + $0x168] sm:$0xff]
  %v1466 = vld [vmem:[%s3 + $0x170] sm:$0xff]
  %v1467 = vld [vmem:[%s3 + $0x178] sm:$0xff]
  %v1468 = vld [vmem:[%s3 + $0x180] sm:$0xff]
  %v1469 = vld [vmem:[%s3 + $0x188] sm:$0xff]
  %v1470 = vld [vmem:[%s3 + $0x190] sm:$0xff]
  %v1471 = vld [vmem:[%s3 + $0x198] sm:$0xff]
  %v1472 = vld [vmem:[%s3 + $0x1a0] sm:$0xff]
  %v1473 = vld [vmem:[%s3 + $0x1a8] sm:$0xff]
  %v1474 = vld [vmem:[%s3 + $0x1b0] sm:$0xff]
  %v1475 = vld [vmem:[%s3 + $0x1b8] sm:$0xff]
  %v1476 = vld [vmem:[%s3 + $0x1c0] sm:$0xff]
  %v1477 = vld [vmem:[%s3 + $0x1c8] sm:$0xff]
  %v1478 = vld [vmem:[%s3 + $0x1d0] sm:$0xff]
  %v1479 = vld [vmem:[%s3 + $0x1d8] sm:$0xff]
  %v1480 = vld [vmem:[%s3 + $0x1e0] sm:$0xff]
  %v1481 = vld [vmem:[%s3 + $0x1e8] sm:$0xff]
  %v1482 = vld [vmem:[%s3 + $0x1f0] sm:$0xff]
  %v1483 = vld [vmem:[%s3 + $0x1f8] sm:$0xff]
  %v1484 = vld [vmem:[%s3 + $0x200] sm:$0xff]
  %v1485 = vld [vmem:[%s3 + $0x208] sm:$0xff]
  %v1486 = vld [vmem:[%s3 + $0x210] sm:$0xff]
  %v1487 = vld [vmem:[%s3 + $0x218] sm:$0xff]
  %v1488 = vld [vmem:[%s3 + $0x220] sm:$0xff]
  %v1489 = vld [vmem:[%s3 + $0x228] sm:$0xff]
  %v1490 = vld [vmem:[%s3 + $0x230] sm:$0xff]
  %v1491 = vld [vmem:[%s3 + $0x238] sm:$0xff]
  %v1492 = vld [vmem:[%s3 + $0x240] sm:$0xff]
  %v1493 = vld [vmem:[%s3 + $0x248] sm:$0xff]
  %v1494 = vld [vmem:[%s3 + $0x250] sm:$0xff]
  %v1495 = vld [vmem:[%s3 + $0x258] sm:$0xff]
  %v1496 = vld [vmem:[%s3 + $0x260] sm:$0xff]
  %v1497 = vld [vmem:[%s3 + $0x268] sm:$0xff]
  %v1498 = vld [vmem:[%s3 + $0x270] sm:$0xff]
  %v1499 = vld [vmem:[%s3 + $0x278] sm:$0xff]
  %v1500 = vld [vmem:[%s3 + $0x280] sm:$0xff]
  %v1501 = vld [vmem:[%s3 + $0x288] sm:$0xff]
  %v1502 = vld [vmem:[%s3 + $0x290] sm:$0xff]
  %v1503 = vld [vmem:[%s3 + $0x298] sm:$0xff]
  %v1504 = vld [vmem:[%s3 + $0x2a0] sm:$0xff]
  %v1505 = vld [vmem:[%s3 + $0x2a8] sm:$0xff]
  %v1506 = vld [vmem:[%s3 + $0x2b0] sm:$0xff]
  %v1507 = vld [vmem:[%s3 + $0x2b8] sm:$0xff]
  %v1508 = vld [vmem:[%s3 + $0x2c0] sm:$0xff]
  %v1509 = vld [vmem:[%s3 + $0x2c8] sm:$0xff]
  %v1510 = vld [vmem:[%s3 + $0x2d0] sm:$0xff]
  %v1511 = vld [vmem:[%s3 + $0x2d8] sm:$0xff]
  %v1512 = vld [vmem:[%s3 + $0x2e0] sm:$0xff]
  %v1513 = vld [vmem:[%s3 + $0x2e8] sm:$0xff]
  %v1514 = vld [vmem:[%s3 + $0x2f0] sm:$0xff]
  %v1515 = vld [vmem:[%s3 + $0x2f8] sm:$0xff]
  %v1516 = vld [vmem:[%s3 + $0x300] sm:$0xff]
  %v1517 = vld [vmem:[%s3 + $0x308] sm:$0xff]
  %v1518 = vld [vmem:[%s3 + $0x310] sm:$0xff]
  %v1519 = vld [vmem:[%s3 + $0x318] sm:$0xff]
  %v1520 = vld [vmem:[%s3 + $0x320] sm:$0xff]
  %v1521 = vld [vmem:[%s3 + $0x328] sm:$0xff]
  %v1522 = vld [vmem:[%s3 + $0x330] sm:$0xff]
  %v1523 = vld [vmem:[%s3 + $0x338] sm:$0xff]
  %v1524 = vld [vmem:[%s3 + $0x340] sm:$0xff]
  %v1525 = vld [vmem:[%s3 + $0x348] sm:$0xff]
  %v1526 = vld [vmem:[%s3 + $0x350] sm:$0xff]
  %v1527 = vld [vmem:[%s3 + $0x358] sm:$0xff]
  %v1528 = vld [vmem:[%s3 + $0x360] sm:$0xff]
  %v1529 = vld [vmem:[%s3 + $0x368] sm:$0xff]
  %v1530 = vld [vmem:[%s3 + $0x370] sm:$0xff]
  %v1531 = vld [vmem:[%s3 + $0x378] sm:$0xff]
  %v1532 = vld [vmem:[%s3 + $0x380] sm:$0xff]
  %v1533 = vld [vmem:[%s3 + $0x388] sm:$0xff]
  %v1534 = vld [vmem:[%s3 + $0x390] sm:$0xff]
  %v1535 = vld [vmem:[%s3 + $0x398] sm:$0xff]
  %v1536 = vld [vmem:[%s3 + $0x3a0] sm:$0xff]
  %v1537 = vld [vmem:[%s3 + $0x3a8] sm:$0xff]
  %v1538 = vld [vmem:[%s3 + $0x3b0] sm:$0xff]
  %v1539 = vld [vmem:[%s3 + $0x3b8] sm:$0xff]
  %v1540 = vld [vmem:[%s3 + $0x3c0] sm:$0xff]
  %v1541 = vld [vmem:[%s3 + $0x3c8] sm:$0xff]
  %v1542 = vld [vmem:[%s3 + $0x3d0] sm:$0xff]
  %v1543 = vld [vmem:[%s3 + $0x3d8] sm:$0xff]
  %v1544 = vld [vmem:[%s3 + $0x3e0] sm:$0xff]
  %v1545 = vld [vmem:[%s3 + $0x3e8] sm:$0xff]
  %v1546 = vld [vmem:[%s3 + $0x3f0] sm:$0xff]
  %v1547 = vld [vmem:[%s3 + $0x3f8] sm:$0xff]
  %v1548 = vld [vmem:[%s3 + $0x400] sm:$0xff]
  %v1549 = vld [vmem:[%s3 + $0x408] sm:$0xff]
  %v1550 = vld [vmem:[%s3 + $0x410] sm:$0xff]
  %v1551 = vld [vmem:[%s3 + $0x418] sm:$0xff]
  %v1552 = vld [vmem:[%s3 + $0x420] sm:$0xff]
  %v1553 = vld [vmem:[%s3 + $0x428] sm:$0xff]
  %v1554 = vld [vmem:[%s3 + $0x430] sm:$0xff]
  %v1555 = vld [vmem:[%s3 + $0x438] sm:$0xff]
  %v1556 = vld [vmem:[%s3 + $0x440] sm:$0xff]
  %v1557 = vld [vmem:[%s3 + $0x448] sm:$0xff]
  %v1558 = vld [vmem:[%s3 + $0x450] sm:$0xff]
  %v1559 = vld [vmem:[%s3 + $0x458] sm:$0xff]
  %v1560 = vld [vmem:[%s3 + $0x460] sm:$0xff]
  %v1561 = vld [vmem:[%s3 + $0x468] sm:$0xff]
  %v1562 = vld [vmem:[%s3 + $0x470] sm:$0xff]
  %v1563 = vld [vmem:[%s3 + $0x478] sm:$0xff]
  %1564 = vmatprep.subr.mxu0 0.0
  %1565 = vmatpush1.msra.mxu0 %v1420
  %1566 = vmatprep.subr.mxu0 0.0
  %1567 = vmatpush1.msra.mxu0 %v1421
  %1568 = vmatprep.subr.mxu0 0.0
  %1569 = vmatpush1.msra.mxu0 %v1422
  %1570 = vmatprep.subr.mxu0 0.0
  %1571 = vmatpush1.msra.mxu0 %v1423
  %1572 = vmatprep.subr.mxu0 0.0
  %1573 = vmatpush1.msra.mxu0 %v1424
  %1574 = vmatprep.subr.mxu0 0.0
  %1575 = vmatpush1.msra.mxu0 %v1425
  %1576 = vmatprep.subr.mxu0 0.0
  %1577 = vmatpush1.msra.mxu0 %v1426
  %1578 = vmatprep.subr.mxu0 0.0
  %1579 = vmatpush1.msra.mxu0 %v1427
  %1580 = vmatprep.subr.mxu0 0.0
  %1581 = vmatpush1.msra.mxu0 %v1428
  %1582 = vmatprep.subr.mxu0 0.0
  %1583 = vmatpush1.msra.mxu0 %v1429
  %1584 = vmatprep.subr.mxu0 0.0
  %1585 = vmatpush1.msra.mxu0 %v1430
  %1586 = vmatprep.subr.mxu0 0.0
  %1587 = vmatpush1.msra.mxu0 %v1431
  %1588 = vmatprep.subr.mxu0 0.0
  %1589 = vmatpush1.msra.mxu0 %v1432
  %1590 = vmatprep.subr.mxu0 0.0
  %1591 = vmatpush1.msra.mxu0 %v1433
  %1592 = vmatprep.subr.mxu0 0.0
  %1593 = vmatpush1.msra.mxu0 %v1434
  %1594 = vmatprep.subr.mxu0 0.0
  %1595 = vmatpush1.msra.mxu0 %v1435
  %1596 = vmatprep.subr.mxu0 0.0
  %1597 = vmatpush1.msra.mxu0 %v1436
  %1598 = vmatprep.subr.mxu0 0.0
  %1599 = vmatpush1.msra.mxu0 %v1437
  %1600 = vmatprep.subr.mxu0 0.0
  %1601 = vmatpush1.msra.mxu0 %v1438
  %1602 = vmatprep.subr.mxu0 0.0
  %1603 = vmatpush1.msra.mxu0 %v1439
  %1604 = vmatprep.subr.mxu0 0.0
  %1605 = vmatpush1.msra.mxu0 %v1440
  %1606 = vmatprep.subr.mxu0 0.0
  %1607 = vmatpush1.msra.mxu0 %v1441
  %1608 = vmatprep.subr.mxu0 0.0
  %1609 = vmatpush1.msra.mxu0 %v1442
  %1610 = vmatprep.subr.mxu0 0.0
  %1611 = vmatpush1.msra.mxu0 %v1443
  %1612 = vmatprep.subr.mxu0 0.0
  %1613 = vmatpush1.msra.mxu0 %v1444
  %1614 = vmatprep.subr.mxu0 0.0
  %1615 = vmatpush1.msra.mxu0 %v1445
  %1616 = vmatprep.subr.mxu0 0.0
  %1617 = vmatpush1.msra.mxu0 %v1446
  %1618 = vmatprep.subr.mxu0 0.0
  %1619 = vmatpush1.msra.mxu0 %v1447
  %1620 = vmatprep.subr.mxu0 0.0
  %1621 = vmatpush1.msra.mxu0 %v1448
  %1622 = vmatprep.subr.mxu0 0.0
  %1623 = vmatpush1.msra.mxu0 %v1449
  %1624 = vmatprep.subr.mxu0 0.0
  %1625 = vmatpush1.msra.mxu0 %v1450
  %1626 = vmatprep.subr.mxu0 0.0
  %1627 = vmatpush1.msra.mxu0 %v1451
  %1628 = vmatprep.mubr.f32.mxu0 %v1097
  %1629 = vmatmul.mubr.f32.gmra.mrb[0].mxu0 %v1096
  %v1630 = vpop.f32.mrb[0].mxu0
  %v1631 = vadd.f32 0.0, %v1630
  %v1632 = vpop.f32.mrb[0].mxu0
  %1633 = vmatprep.mubr.f32.mxu0 %v1106
  %1634 = vmatmul.mubr.f32.gmra.mrb[0].mxu0 %v1105
  %v1635 = vpop.f32.mrb[0].mxu0
  %v1636 = vadd.f32 0.0, %v1635
  %v1637 = vpop.f32.mrb[0].mxu0
  %1638 = vmatprep.mubr.f32.mxu0 %v1115
  %1639 = vmatmul.mubr.f32.gmra.mrb[0].mxu0 %v1114
  %v1640 = vpop.f32.mrb[0].mxu0
  %v1641 = vadd.f32 0.0, %v1640
  %v1642 = vpop.f32.mrb[0].mxu0
  %1643 = vmatprep.mubr.f32.mxu0 %v1124
  %1644 = vmatmul.mubr.f32.gmra.mrb[0].mxu0 %v1123
  %v1645 = vpop.f32.mrb[0].mxu0
  %v1646 = vadd.f32 0.0, %v1645
  %v1647 = vpop.f32.mrb[0].mxu0
  %1648 = vmatprep.mubr.f32.mxu0 %v1133
  %1649 = vmatmul.mubr.f32.gmra.mrb[0].mxu0 %v1132
  %v1650 = vpop.f32.mrb[0].mxu0
  %v1651 = vadd.f32 0.0, %v1650
  %v1652 = vpop.f32.mrb[0].mxu0
  %1653 = vmatprep.mubr.f32.mxu0 %v1142
  %1654 = vmatmul.mubr.f32.gmra.mrb[0].mxu0 %v1141
  %v1655 = vpop.f32.mrb[0].mxu0
  %v1656 = vadd.f32 0.0, %v1655
  %v1657 = vpop.f32.mrb[0].mxu0
  %1658 = vmatprep.mubr.f32.mxu0 %v1151
  %1659 = vmatmul.mubr.f32.gmra.mrb[0].mxu0 %v1150
  %v1660 = vpop.f32.mrb[0].mxu0
  %v1661 = vadd.f32 0.0, %v1660
  %v1662 = vpop.f32.mrb[0].mxu0
  %1663 = vmatprep.mubr.f32.mxu0 %v1160
  %1664 = vmatmul.mubr.f32.gmra.mrb[0].mxu0 %v1159
  %v1665 = vpop.f32.mrb[0].mxu0
  %v1666 = vadd.f32 0.0, %v1665
  %v1667 = vpop.f32.mrb[0].mxu0
  %1668 = vmatprep.mubr.f32.mxu0 %v1169
  %1669 = vmatmul.mubr.f32.gmra.mrb[0].mxu0 %v1168
  %v1670 = vpop.f32.mrb[0].mxu0
  %v1671 = vadd.f32 0.0, %v1670
  %v1672 = vpop.f32.mrb[0].mxu0
  %1673 = vmatprep.mubr.f32.mxu0 %v1178
  %1674 = vmatmul.mubr.f32.gmra.mrb[0].mxu0 %v1177
  %v1675 = vpop.f32.mrb[0].mxu0
  %v1676 = vadd.f32 0.0, %v1675
  %v1677 = vpop.f32.mrb[0].mxu0
  %1678 = vmatprep.mubr.f32.mxu0 %v1187
  %1679 = vmatmul.mubr.f32.gmra.mrb[0].mxu0 %v1186
  %v1680 = vpop.f32.mrb[0].mxu0
  %v1681 = vadd.f32 0.0, %v1680
  %v1682 = vpop.f32.mrb[0].mxu0
  %1683 = vmatprep.mubr.f32.mxu0 %v1196
  %1684 = vmatmul.mubr.f32.gmra.mrb[0].mxu0 %v1195
  %v1685 = vpop.f32.mrb[0].mxu0
  %v1686 = vadd.f32 0.0, %v1685
  %v1687 = vpop.f32.mrb[0].mxu0
  %1688 = vmatprep.mubr.f32.mxu0 %v1205
  %1689 = vmatmul.mubr.f32.gmra.mrb[0].mxu0 %v1204
  %v1690 = vpop.f32.mrb[0].mxu0
  %v1691 = vadd.f32 0.0, %v1690
  %v1692 = vpop.f32.mrb[0].mxu0
  %1693 = vmatprep.mubr.f32.mxu0 %v1214
  %1694 = vmatmul.mubr.f32.gmra.mrb[0].mxu0 %v1213
  %v1695 = vpop.f32.mrb[0].mxu0
  %v1696 = vadd.f32 0.0, %v1695
  %v1697 = vpop.f32.mrb[0].mxu0
  %1698 = vmatprep.mubr.f32.mxu0 %v1223
  %1699 = vmatmul.mubr.f32.gmra.mrb[0].mxu0 %v1222
  %v1700 = vpop.f32.mrb[0].mxu0
  %v1701 = vadd.f32 0.0, %v1700
  %v1702 = vpop.f32.mrb[0].mxu0
  %1703 = vmatprep.mubr.f32.mxu0 %v1232
  %1704 = vmatmul.mubr.f32.gmra.mrb[0].mxu0 %v1231
  %v1705 = vpop.f32.mrb[0].mxu0
  %v1706 = vadd.f32 0.0, %v1705
  %v1707 = vpop.f32.mrb[0].mxu0
  %1708 = vmatprep.mubr.f32.mxu0 %v1241
  %1709 = vmatmul.mubr.f32.gmra.mrb[0].mxu0 %v1240
  %v1710 = vpop.f32.mrb[0].mxu0
  %v1711 = vadd.f32 0.0, %v1710
  %v1712 = vpop.f32.mrb[0].mxu0
  %1713 = vmatprep.mubr.f32.mxu0 %v1250
  %1714 = vmatmul.mubr.f32.gmra.mrb[0].mxu0 %v1249
  %v1715 = vpop.f32.mrb[0].mxu0
  %v1716 = vadd.f32 0.0, %v1715
  %v1717 = vpop.f32.mrb[0].mxu0
  %1718 = vmatprep.mubr.f32.mxu0 %v1259
  %1719 = vmatmul.mubr.f32.gmra.mrb[0].mxu0 %v1258
  %v1720 = vpop.f32.mrb[0].mxu0
  %v1721 = vadd.f32 0.0, %v1720
  %v1722 = vpop.f32.mrb[0].mxu0
  %1723 = vmatprep.mubr.f32.mxu0 %v1268
  %1724 = vmatmul.mubr.f32.gmra.mrb[0].mxu0 %v1267
  %v1725 = vpop.f32.mrb[0].mxu0
  %v1726 = vadd.f32 0.0, %v1725
  %v1727 = vpop.f32.mrb[0].mxu0
  %1728 = vmatprep.mubr.f32.mxu0 %v1277
  %1729 = vmatmul.mubr.f32.gmra.mrb[0].mxu0 %v1276
  %v1730 = vpop.f32.mrb[0].mxu0
  %v1731 = vadd.f32 0.0, %v1730
  %v1732 = vpop.f32.mrb[0].mxu0
  %1733 = vmatprep.mubr.f32.mxu0 %v1286
  %1734 = vmatmul.mubr.f32.gmra.mrb[0].mxu0 %v1285
  %v1735 = vpop.f32.mrb[0].mxu0
  %v1736 = vadd.f32 0.0, %v1735
  %v1737 = vpop.f32.mrb[0].mxu0
  %1738 = vmatprep.mubr.f32.mxu0 %v1295
  %1739 = vmatmul.mubr.f32.gmra.mrb[0].mxu0 %v1294
  %v1740 = vpop.f32.mrb[0].mxu0
  %v1741 = vadd.f32 0.0, %v1740
  %v1742 = vpop.f32.mrb[0].mxu0
  %1743 = vmatprep.mubr.f32.mxu0 %v1304
  %1744 = vmatmul.mubr.f32.gmra.mrb[0].mxu0 %v1303
  %v1745 = vpop.f32.mrb[0].mxu0
  %v1746 = vadd.f32 0.0, %v1745
  %v1747 = vpop.f32.mrb[0].mxu0
  %1748 = vmatprep.mubr.f32.mxu0 %v1313
  %1749 = vmatmul.mubr.f32.gmra.mrb[0].mxu0 %v1312
  %v1750 = vpop.f32.mrb[0].mxu0
  %v1751 = vadd.f32 0.0, %v1750
  %v1752 = vpop.f32.mrb[0].mxu0
  %1753 = vmatprep.mubr.f32.mxu0 %v1322
  %1754 = vmatmul.mubr.f32.gmra.mrb[0].mxu0 %v1321
  %v1755 = vpop.f32.mrb[0].mxu0
  %v1756 = vadd.f32 0.0, %v1755
  %v1757 = vpop.f32.mrb[0].mxu0
  %1758 = vmatprep.mubr.f32.mxu0 %v1331
  %1759 = vmatmul.mubr.f32.gmra.mrb[0].mxu0 %v1330
  %v1760 = vpop.f32.mrb[0].mxu0
  %v1761 = vadd.f32 0.0, %v1760
  %v1762 = vpop.f32.mrb[0].mxu0
  %1763 = vmatprep.mubr.f32.mxu0 %v1340
  %1764 = vmatmul.mubr.f32.gmra.mrb[0].mxu0 %v1339
  %v1765 = vpop.f32.mrb[0].mxu0
  %v1766 = vadd.f32 0.0, %v1765
  %v1767 = vpop.f32.mrb[0].mxu0
  %1768 = vmatprep.mubr.f32.mxu0 %v1349
  %1769 = vmatmul.mubr.f32.gmra.mrb[0].mxu0 %v1348
  %v1770 = vpop.f32.mrb[0].mxu0
  %v1771 = vadd.f32 0.0, %v1770
  %v1772 = vpop.f32.mrb[0].mxu0
  %1773 = vmatprep.mubr.f32.mxu0 %v1358
  %1774 = vmatmul.mubr.f32.gmra.mrb[0].mxu0 %v1357
  %v1775 = vpop.f32.mrb[0].mxu0
  %v1776 = vadd.f32 0.0, %v1775
  %v1777 = vpop.f32.mrb[0].mxu0
  %1778 = vmatprep.mubr.f32.mxu0 %v1367
  %1779 = vmatmul.mubr.f32.gmra.mrb[0].mxu0 %v1366
  %v1780 = vpop.f32.mrb[0].mxu0
  %v1781 = vadd.f32 0.0, %v1780
  %v1782 = vpop.f32.mrb[0].mxu0
  %1783 = vmatprep.mubr.f32.mxu0 %v1376
  %1784 = vmatmul.mubr.f32.gmra.mrb[0].mxu0 %v1375
  %v1785 = vpop.f32.mrb[0].mxu0
  %v1786 = vadd.f32 0.0, %v1785
  %v1787 = vpop.f32.mrb[0].mxu0
  %1788 = vmatprep.mubr.f32.mxu0 %v1385
  %1789 = vmatmul.mubr.f32.gmra.mrb[0].mxu0 %v1384
  %v1790 = vpop.f32.mrb[0].mxu0
  %v1791 = vadd.f32 0.0, %v1790
  %v1792 = vpop.f32.mrb[0].mxu0
  %1793 = vmatprep.mubr.f32.mxu0 %v1394
  %1794 = vmatmul.mubr.f32.gmra.mrb[0].mxu0 %v1393
  %v1795 = vpop.f32.mrb[0].mxu0
  %v1796 = vadd.f32 0.0, %v1795
  %v1797 = vpop.f32.mrb[0].mxu0
  %1798 = vmatprep.mubr.f32.mxu0 %v1403
  %1799 = vmatmul.mubr.f32.gmra.mrb[0].mxu0 %v1402
  %v1800 = vpop.f32.mrb[0].mxu0
  %v1801 = vadd.f32 0.0, %v1800
  %v1802 = vpop.f32.mrb[0].mxu0
  %1803 = vmatprep.mubr.f32.mxu0 %v1412
  %1804 = vmatmul.mubr.f32.gmra.mrb[0].mxu0 %v1411
  %v1805 = vpop.f32.mrb[0].mxu0
  %v1806 = vadd.f32 0.0, %v1805
  %v1807 = vpop.f32.mrb[0].mxu0
  %1808 = vdwg.mxu0
  %1809 = vmatprep.subr.mxu0 0.0
  %1810 = vmatpush1.msra.mxu0 %v1452
  %1811 = vmatprep.subr.mxu0 0.0
  %1812 = vmatpush1.msra.mxu0 %v1453
  %1813 = vmatprep.subr.mxu0 0.0
  %1814 = vmatpush1.msra.mxu0 %v1454
  %1815 = vmatprep.subr.mxu0 0.0
  %1816 = vmatpush1.msra.mxu0 %v1455
  %1817 = vmatprep.subr.mxu0 0.0
  %1818 = vmatpush1.msra.mxu0 %v1456
  %1819 = vmatprep.subr.mxu0 0.0
  %1820 = vmatpush1.msra.mxu0 %v1457
  %1821 = vmatprep.subr.mxu0 0.0
  %1822 = vmatpush1.msra.mxu0 %v1458
  %1823 = vmatprep.subr.mxu0 0.0
  %1824 = vmatpush1.msra.mxu0 %v1459
  %1825 = vmatprep.subr.mxu0 0.0
  %1826 = vmatpush1.msra.mxu0 %v1460
  %1827 = vmatprep.subr.mxu0 0.0
  %1828 = vmatpush1.msra.mxu0 %v1461
  %1829 = vmatprep.subr.mxu0 0.0
  %1830 = vmatpush1.msra.mxu0 %v1462
  %1831 = vmatprep.subr.mxu0 0.0
  %1832 = vmatpush1.msra.mxu0 %v1463
  %1833 = vmatprep.subr.mxu0 0.0
  %1834 = vmatpush1.msra.mxu0 %v1464
  %1835 = vmatprep.subr.mxu0 0.0
  %1836 = vmatpush1.msra.mxu0 %v1465
  %1837 = vmatprep.subr.mxu0 0.0
  %1838 = vmatpush1.msra.mxu0 %v1466
  %1839 = vmatprep.subr.mxu0 0.0
  %1840 = vmatpush1.msra.mxu0 %v1467
  %1841 = vmatprep.subr.mxu0 0.0
  %1842 = vmatpush1.msra.mxu0 %v1468
  %1843 = vmatprep.subr.mxu0 0.0
  %1844 = vmatpush1.msra.mxu0 %v1469
  %1845 = vmatprep.subr.mxu0 0.0
  %1846 = vmatpush1.msra.mxu0 %v1470
  %1847 = vmatprep.subr.mxu0 0.0
  %1848 = vmatpush1.msra.mxu0 %v1471
  %1849 = vmatprep.subr.mxu0 0.0
  %1850 = vmatpush1.msra.mxu0 %v1472
  %1851 = vmatprep.subr.mxu0 0.0
  %1852 = vmatpush1.msra.mxu0 %v1473
  %1853 = vmatprep.subr.mxu0 0.0
  %1854 = vmatpush1.msra.mxu0 %v1474
  %1855 = vmatprep.subr.mxu0 0.0
  %1856 = vmatpush1.msra.mxu0 %v1475
  %1857 = vmatprep.subr.mxu0 0.0
  %1858 = vmatpush1.msra.mxu0 %v1476
  %1859 = vmatprep.subr.mxu0 0.0
  %1860 = vmatpush1.msra.mxu0 %v1477
  %1861 = vmatprep.subr.mxu0 0.0
  %1862 = vmatpush1.msra.mxu0 %v1478
  %1863 = vmatprep.subr.mxu0 0.0
  %1864 = vmatpush1.msra.mxu0 %v1479
  %1865 = vmatprep.subr.mxu0 0.0
  %1866 = vmatpush1.msra.mxu0 %v1480
  %1867 = vmatprep.subr.mxu0 0.0
  %1868 = vmatpush1.msra.mxu0 %v1481
  %1869 = vmatprep.subr.mxu0 0.0
  %1870 = vmatpush1.msra.mxu0 %v1482
  %1871 = vmatprep.subr.mxu0 0.0
  %1872 = vmatpush1.msra.mxu0 %v1483
  %1873 = vmatprep.mubr.f32.mxu0 %v1099
  %1874 = vmatmul.mubr.f32.gmra.mrb[0].mxu0 %v1098
  %v1875 = vpop.f32.mrb[0].mxu0
  %v1876 = vadd.f32 %v1631, %v1875
  %v1877 = vpop.f32.mrb[0].mxu0
  %1878 = vmatprep.mubr.f32.mxu0 %v1108
  %1879 = vmatmul.mubr.f32.gmra.mrb[0].mxu0 %v1107
  %v1880 = vpop.f32.mrb[0].mxu0
  %v1881 = vadd.f32 %v1636, %v1880
  %v1882 = vpop.f32.mrb[0].mxu0
  %1883 = vmatprep.mubr.f32.mxu0 %v1117
  %1884 = vmatmul.mubr.f32.gmra.mrb[0].mxu0 %v1116
  %v1885 = vpop.f32.mrb[0].mxu0
  %v1886 = vadd.f32 %v1641, %v1885
  %v1887 = vpop.f32.mrb[0].mxu0
  %1888 = vmatprep.mubr.f32.mxu0 %v1126
  %1889 = vmatmul.mubr.f32.gmra.mrb[0].mxu0 %v1125
  %v1890 = vpop.f32.mrb[0].mxu0
  %v1891 = vadd.f32 %v1646, %v1890
  %v1892 = vpop.f32.mrb[0].mxu0
  %1893 = vmatprep.mubr.f32.mxu0 %v1135
  %1894 = vmatmul.mubr.f32.gmra.mrb[0].mxu0 %v1134
  %v1895 = vpop.f32.mrb[0].mxu0
  %v1896 = vadd.f32 %v1651, %v1895
  %v1897 = vpop.f32.mrb[0].mxu0
  %1898 = vmatprep.mubr.f32.mxu0 %v1144
  %1899 = vmatmul.mubr.f32.gmra.mrb[0].mxu0 %v1143
  %v1900 = vpop.f32.mrb[0].mxu0
  %v1901 = vadd.f32 %v1656, %v1900
  %v1902 = vpop.f32.mrb[0].mxu0
  %1903 = vmatprep.mubr.f32.mxu0 %v1153
  %1904 = vmatmul.mubr.f32.gmra.mrb[0].mxu0 %v1152
  %v1905 = vpop.f32.mrb[0].mxu0
  %v1906 = vadd.f32 %v1661, %v1905
  %v1907 = vpop.f32.mrb[0].mxu0
  %1908 = vmatprep.mubr.f32.mxu0 %v1162
  %1909 = vmatmul.mubr.f32.gmra.mrb[0].mxu0 %v1161
  %v1910 = vpop.f32.mrb[0].mxu0
  %v1911 = vadd.f32 %v1666, %v1910
  %v1912 = vpop.f32.mrb[0].mxu0
  %1913 = vmatprep.mubr.f32.mxu0 %v1171
  %1914 = vmatmul.mubr.f32.gmra.mrb[0].mxu0 %v1170
  %v1915 = vpop.f32.mrb[0].mxu0
  %v1916 = vadd.f32 %v1671, %v1915
  %v1917 = vpop.f32.mrb[0].mxu0
  %1918 = vmatprep.mubr.f32.mxu0 %v1180
  %1919 = vmatmul.mubr.f32.gmra.mrb[0].mxu0 %v1179
  %v1920 = vpop.f32.mrb[0].mxu0
  %v1921 = vadd.f32 %v1676, %v1920
  %v1922 = vpop.f32.mrb[0].mxu0
  %1923 = vmatprep.mubr.f32.mxu0 %v1189
  %1924 = vmatmul.mubr.f32.gmra.mrb[0].mxu0 %v1188
  %v1925 = vpop.f32.mrb[0].mxu0
  %v1926 = vadd.f32 %v1681, %v1925
  %v1927 = vpop.f32.mrb[0].mxu0
  %1928 = vmatprep.mubr.f32.mxu0 %v1198
  %1929 = vmatmul.mubr.f32.gmra.mrb[0].mxu0 %v1197
  %v1930 = vpop.f32.mrb[0].mxu0
  %v1931 = vadd.f32 %v1686, %v1930
  %v1932 = vpop.f32.mrb[0].mxu0
  %1933 = vmatprep.mubr.f32.mxu0 %v1207
  %1934 = vmatmul.mubr.f32.gmra.mrb[0].mxu0 %v1206
  %v1935 = vpop.f32.mrb[0].mxu0
  %v1936 = vadd.f32 %v1691, %v1935
  %v1937 = vpop.f32.mrb[0].mxu0
  %1938 = vmatprep.mubr.f32.mxu0 %v1216
  %1939 = vmatmul.mubr.f32.gmra.mrb[0].mxu0 %v1215
  %v1940 = vpop.f32.mrb[0].mxu0
  %v1941 = vadd.f32 %v1696, %v1940
  %v1942 = vpop.f32.mrb[0].mxu0
  %1943 = vmatprep.mubr.f32.mxu0 %v1225
  %1944 = vmatmul.mubr.f32.gmra.mrb[0].mxu0 %v1224
  %v1945 = vpop.f32.mrb[0].mxu0
  %v1946 = vadd.f32 %v1701, %v1945
  %v1947 = vpop.f32.mrb[0].mxu0
  %1948 = vmatprep.mubr.f32.mxu0 %v1234
  %1949 = vmatmul.mubr.f32.gmra.mrb[0].mxu0 %v1233
  %v1950 = vpop.f32.mrb[0].mxu0
  %v1951 = vadd.f32 %v1706, %v1950
  %v1952 = vpop.f32.mrb[0].mxu0
  %1953 = vmatprep.mubr.f32.mxu0 %v1243
  %1954 = vmatmul.mubr.f32.gmra.mrb[0].mxu0 %v1242
  %v1955 = vpop.f32.mrb[0].mxu0
  %v1956 = vadd.f32 %v1711, %v1955
  %v1957 = vpop.f32.mrb[0].mxu0
  %1958 = vmatprep.mubr.f32.mxu0 %v1252
  %1959 = vmatmul.mubr.f32.gmra.mrb[0].mxu0 %v1251
  %v1960 = vpop.f32.mrb[0].mxu0
  %v1961 = vadd.f32 %v1716, %v1960
  %v1962 = vpop.f32.mrb[0].mxu0
  %1963 = vmatprep.mubr.f32.mxu0 %v1261
  %1964 = vmatmul.mubr.f32.gmra.mrb[0].mxu0 %v1260
  %v1965 = vpop.f32.mrb[0].mxu0
  %v1966 = vadd.f32 %v1721, %v1965
  %v1967 = vpop.f32.mrb[0].mxu0
  %1968 = vmatprep.mubr.f32.mxu0 %v1270
  %1969 = vmatmul.mubr.f32.gmra.mrb[0].mxu0 %v1269
  %v1970 = vpop.f32.mrb[0].mxu0
  %v1971 = vadd.f32 %v1726, %v1970
  %v1972 = vpop.f32.mrb[0].mxu0
  %1973 = vmatprep.mubr.f32.mxu0 %v1279
  %1974 = vmatmul.mubr.f32.gmra.mrb[0].mxu0 %v1278
  %v1975 = vpop.f32.mrb[0].mxu0
  %v1976 = vadd.f32 %v1731, %v1975
  %v1977 = vpop.f32.mrb[0].mxu0
  %1978 = vmatprep.mubr.f32.mxu0 %v1288
  %1979 = vmatmul.mubr.f32.gmra.mrb[0].mxu0 %v1287
  %v1980 = vpop.f32.mrb[0].mxu0
  %v1981 = vadd.f32 %v1736, %v1980
  %v1982 = vpop.f32.mrb[0].mxu0
  %1983 = vmatprep.mubr.f32.mxu0 %v1297
  %1984 = vmatmul.mubr.f32.gmra.mrb[0].mxu0 %v1296
  %v1985 = vpop.f32.mrb[0].mxu0
  %v1986 = vadd.f32 %v1741, %v1985
  %v1987 = vpop.f32.mrb[0].mxu0
  %1988 = vmatprep.mubr.f32.mxu0 %v1306
  %1989 = vmatmul.mubr.f32.gmra.mrb[0].mxu0 %v1305
  %v1990 = vpop.f32.mrb[0].mxu0
  %v1991 = vadd.f32 %v1746, %v1990
  %v1992 = vpop.f32.mrb[0].mxu0
  %1993 = vmatprep.mubr.f32.mxu0 %v1315
  %1994 = vmatmul.mubr.f32.gmra.mrb[0].mxu0 %v1314
  %v1995 = vpop.f32.mrb[0].mxu0
  %v1996 = vadd.f32 %v1751, %v1995
  %v1997 = vpop.f32.mrb[0].mxu0
  %1998 = vmatprep.mubr.f32.mxu0 %v1324
  %1999 = vmatmul.mubr.f32.gmra.mrb[0].mxu0 %v1323
  %v2000 = vpop.f32.mrb[0].mxu0
  %v2001 = vadd.f32 %v1756, %v2000
  %v2002 = vpop.f32.mrb[0].mxu0
  %2003 = vmatprep.mubr.f32.mxu0 %v1333
  %2004 = vmatmul.mubr.f32.gmra.mrb[0].mxu0 %v1332
  %v2005 = vpop.f32.mrb[0].mxu0
  %v2006 = vadd.f32 %v1761, %v2005
  %v2007 = vpop.f32.mrb[0].mxu0
  %2008 = vmatprep.mubr.f32.mxu0 %v1342
  %2009 = vmatmul.mubr.f32.gmra.mrb[0].mxu0 %v1341
  %v2010 = vpop.f32.mrb[0].mxu0
  %v2011 = vadd.f32 %v1766, %v2010
  %v2012 = vpop.f32.mrb[0].mxu0
  %2013 = vmatprep.mubr.f32.mxu0 %v1351
  %2014 = vmatmul.mubr.f32.gmra.mrb[0].mxu0 %v1350
  %v2015 = vpop.f32.mrb[0].mxu0
  %v2016 = vadd.f32 %v1771, %v2015
  %v2017 = vpop.f32.mrb[0].mxu0
  %2018 = vmatprep.mubr.f32.mxu0 %v1360
  %2019 = vmatmul.mubr.f32.gmra.mrb[0].mxu0 %v1359
  %v2020 = vpop.f32.mrb[0].mxu0
  %v2021 = vadd.f32 %v1776, %v2020
  %v2022 = vpop.f32.mrb[0].mxu0
  %2023 = vmatprep.mubr.f32.mxu0 %v1369
  %2024 = vmatmul.mubr.f32.gmra.mrb[0].mxu0 %v1368
  %v2025 = vpop.f32.mrb[0].mxu0
  %v2026 = vadd.f32 %v1781, %v2025
  %v2027 = vpop.f32.mrb[0].mxu0
  %2028 = vmatprep.mubr.f32.mxu0 %v1378
  %2029 = vmatmul.mubr.f32.gmra.mrb[0].mxu0 %v1377
  %v2030 = vpop.f32.mrb[0].mxu0
  %v2031 = vadd.f32 %v1786, %v2030
  %v2032 = vpop.f32.mrb[0].mxu0
  %2033 = vmatprep.mubr.f32.mxu0 %v1387
  %2034 = vmatmul.mubr.f32.gmra.mrb[0].mxu0 %v1386
  %v2035 = vpop.f32.mrb[0].mxu0
  %v2036 = vadd.f32 %v1791, %v2035
  %v2037 = vpop.f32.mrb[0].mxu0
  %2038 = vmatprep.mubr.f32.mxu0 %v1396
  %2039 = vmatmul.mubr.f32.gmra.mrb[0].mxu0 %v1395
  %v2040 = vpop.f32.mrb[0].mxu0
  %v2041 = vadd.f32 %v1796, %v2040
  %v2042 = vpop.f32.mrb[0].mxu0
  %2043 = vmatprep.mubr.f32.mxu0 %v1405
  %2044 = vmatmul.mubr.f32.gmra.mrb[0].mxu0 %v1404
  %v2045 = vpop.f32.mrb[0].mxu0
  %v2046 = vadd.f32 %v1801, %v2045
  %v2047 = vpop.f32.mrb[0].mxu0
  %2048 = vmatprep.mubr.f32.mxu0 %v1414
  %2049 = vmatmul.mubr.f32.gmra.mrb[0].mxu0 %v1413
  %v2050 = vpop.f32.mrb[0].mxu0
  %v2051 = vadd.f32 %v1806, %v2050
  %v2052 = vpop.f32.mrb[0].mxu0
  %2053 = vdwg.mxu0
  %2054 = vmatprep.subr.mxu0 0.0
  %2055 = vmatpush1.msra.mxu0 %v1484
  %2056 = vmatprep.subr.mxu0 0.0
  %2057 = vmatpush1.msra.mxu0 %v1485
  %2058 = vmatprep.subr.mxu0 0.0
  %2059 = vmatpush1.msra.mxu0 %v1486
  %2060 = vmatprep.subr.mxu0 0.0
  %2061 = vmatpush1.msra.mxu0 %v1487
  %2062 = vmatprep.subr.mxu0 0.0
  %2063 = vmatpush1.msra.mxu0 %v1488
  %2064 = vmatprep.subr.mxu0 0.0
  %2065 = vmatpush1.msra.mxu0 %v1489
  %2066 = vmatprep.subr.mxu0 0.0
  %2067 = vmatpush1.msra.mxu0 %v1490
  %2068 = vmatprep.subr.mxu0 0.0
  %2069 = vmatpush1.msra.mxu0 %v1491
  %2070 = vmatprep.subr.mxu0 0.0
  %2071 = vmatpush1.msra.mxu0 %v1492
  %2072 = vmatprep.subr.mxu0 0.0
  %2073 = vmatpush1.msra.mxu0 %v1493
  %2074 = vmatprep.subr.mxu0 0.0
  %2075 = vmatpush1.msra.mxu0 %v1494
  %2076 = vmatprep.subr.mxu0 0.0
  %2077 = vmatpush1.msra.mxu0 %v1495
  %2078 = vmatprep.subr.mxu0 0.0
  %2079 = vmatpush1.msra.mxu0 %v1496
  %2080 = vmatprep.subr.mxu0 0.0
  %2081 = vmatpush1.msra.mxu0 %v1497
  %2082 = vmatprep.subr.mxu0 0.0
  %2083 = vmatpush1.msra.mxu0 %v1498
  %2084 = vmatprep.subr.mxu0 0.0
  %2085 = vmatpush1.msra.mxu0 %v1499
  %2086 = vmatprep.subr.mxu0 0.0
  %2087 = vmatpush1.msra.mxu0 %v1500
  %2088 = vmatprep.subr.mxu0 0.0
  %2089 = vmatpush1.msra.mxu0 %v1501
  %2090 = vmatprep.subr.mxu0 0.0
  %2091 = vmatpush1.msra.mxu0 %v1502
  %2092 = vmatprep.subr.mxu0 0.0
  %2093 = vmatpush1.msra.mxu0 %v1503
  %2094 = vmatprep.subr.mxu0 0.0
  %2095 = vmatpush1.msra.mxu0 %v1504
  %2096 = vmatprep.subr.mxu0 0.0
  %2097 = vmatpush1.msra.mxu0 %v1505
  %2098 = vmatprep.subr.mxu0 0.0
  %2099 = vmatpush1.msra.mxu0 %v1506
  %2100 = vmatprep.subr.mxu0 0.0
  %2101 = vmatpush1.msra.mxu0 %v1507
  %2102 = vmatprep.subr.mxu0 0.0
  %2103 = vmatpush1.msra.mxu0 %v1508
  %2104 = vmatprep.subr.mxu0 0.0
  %2105 = vmatpush1.msra.mxu0 %v1509
  %2106 = vmatprep.subr.mxu0 0.0
  %2107 = vmatpush1.msra.mxu0 %v1510
  %2108 = vmatprep.subr.mxu0 0.0
  %2109 = vmatpush1.msra.mxu0 %v1511
  %2110 = vmatprep.subr.mxu0 0.0
  %2111 = vmatpush1.msra.mxu0 %v1512
  %2112 = vmatprep.subr.mxu0 0.0
  %2113 = vmatpush1.msra.mxu0 %v1513
  %2114 = vmatprep.subr.mxu0 0.0
  %2115 = vmatpush1.msra.mxu0 %v1514
  %2116 = vmatprep.subr.mxu0 0.0
  %2117 = vmatpush1.msra.mxu0 %v1515
  %2118 = vmatprep.mubr.f32.mxu0 %v1101
  %2119 = vmatmul.mubr.f32.gmra.mrb[0].mxu0 %v1100
  %v2120 = vpop.f32.mrb[0].mxu0
  %v2121 = vadd.f32 %v1876, %v2120
  %v2122 = vpop.f32.mrb[0].mxu0
  %2123 = vmatprep.mubr.f32.mxu0 %v1110
  %2124 = vmatmul.mubr.f32.gmra.mrb[0].mxu0 %v1109
  %v2125 = vpop.f32.mrb[0].mxu0
  %v2126 = vadd.f32 %v1881, %v2125
  %v2127 = vpop.f32.mrb[0].mxu0
  %2128 = vmatprep.mubr.f32.mxu0 %v1119
  %2129 = vmatmul.mubr.f32.gmra.mrb[0].mxu0 %v1118
  %v2130 = vpop.f32.mrb[0].mxu0
  %v2131 = vadd.f32 %v1886, %v2130
  %v2132 = vpop.f32.mrb[0].mxu0
  %2133 = vmatprep.mubr.f32.mxu0 %v1128
  %2134 = vmatmul.mubr.f32.gmra.mrb[0].mxu0 %v1127
  %v2135 = vpop.f32.mrb[0].mxu0
  %v2136 = vadd.f32 %v1891, %v2135
  %v2137 = vpop.f32.mrb[0].mxu0
  %2138 = vmatprep.mubr.f32.mxu0 %v1137
  %2139 = vmatmul.mubr.f32.gmra.mrb[0].mxu0 %v1136
  %v2140 = vpop.f32.mrb[0].mxu0
  %v2141 = vadd.f32 %v1896, %v2140
  %v2142 = vpop.f32.mrb[0].mxu0
  %2143 = vmatprep.mubr.f32.mxu0 %v1146
  %2144 = vmatmul.mubr.f32.gmra.mrb[0].mxu0 %v1145
  %v2145 = vpop.f32.mrb[0].mxu0
  %v2146 = vadd.f32 %v1901, %v2145
  %v2147 = vpop.f32.mrb[0].mxu0
  %2148 = vmatprep.mubr.f32.mxu0 %v1155
  %2149 = vmatmul.mubr.f32.gmra.mrb[0].mxu0 %v1154
  %v2150 = vpop.f32.mrb[0].mxu0
  %v2151 = vadd.f32 %v1906, %v2150
  %v2152 = vpop.f32.mrb[0].mxu0
  %2153 = vmatprep.mubr.f32.mxu0 %v1164
  %2154 = vmatmul.mubr.f32.gmra.mrb[0].mxu0 %v1163
  %v2155 = vpop.f32.mrb[0].mxu0
  %v2156 = vadd.f32 %v1911, %v2155
  %v2157 = vpop.f32.mrb[0].mxu0
  %2158 = vmatprep.mubr.f32.mxu0 %v1173
  %2159 = vmatmul.mubr.f32.gmra.mrb[0].mxu0 %v1172
  %v2160 = vpop.f32.mrb[0].mxu0
  %v2161 = vadd.f32 %v1916, %v2160
  %v2162 = vpop.f32.mrb[0].mxu0
  %2163 = vmatprep.mubr.f32.mxu0 %v1182
  %2164 = vmatmul.mubr.f32.gmra.mrb[0].mxu0 %v1181
  %v2165 = vpop.f32.mrb[0].mxu0
  %v2166 = vadd.f32 %v1921, %v2165
  %v2167 = vpop.f32.mrb[0].mxu0
  %2168 = vmatprep.mubr.f32.mxu0 %v1191
  %2169 = vmatmul.mubr.f32.gmra.mrb[0].mxu0 %v1190
  %v2170 = vpop.f32.mrb[0].mxu0
  %v2171 = vadd.f32 %v1926, %v2170
  %v2172 = vpop.f32.mrb[0].mxu0
  %2173 = vmatprep.mubr.f32.mxu0 %v1200
  %2174 = vmatmul.mubr.f32.gmra.mrb[0].mxu0 %v1199
  %v2175 = vpop.f32.mrb[0].mxu0
  %v2176 = vadd.f32 %v1931, %v2175
  %v2177 = vpop.f32.mrb[0].mxu0
  %2178 = vmatprep.mubr.f32.mxu0 %v1209
  %2179 = vmatmul.mubr.f32.gmra.mrb[0].mxu0 %v1208
  %v2180 = vpop.f32.mrb[0].mxu0
  %v2181 = vadd.f32 %v1936, %v2180
  %v2182 = vpop.f32.mrb[0].mxu0
  %2183 = vmatprep.mubr.f32.mxu0 %v1218
  %2184 = vmatmul.mubr.f32.gmra.mrb[0].mxu0 %v1217
  %v2185 = vpop.f32.mrb[0].mxu0
  %v2186 = vadd.f32 %v1941, %v2185
  %v2187 = vpop.f32.mrb[0].mxu0
  %2188 = vmatprep.mubr.f32.mxu0 %v1227
  %2189 = vmatmul.mubr.f32.gmra.mrb[0].mxu0 %v1226
  %v2190 = vpop.f32.mrb[0].mxu0
  %v2191 = vadd.f32 %v1946, %v2190
  %v2192 = vpop.f32.mrb[0].mxu0
  %2193 = vmatprep.mubr.f32.mxu0 %v1236
  %2194 = vmatmul.mubr.f32.gmra.mrb[0].mxu0 %v1235
  %v2195 = vpop.f32.mrb[0].mxu0
  %v2196 = vadd.f32 %v1951, %v2195
  %v2197 = vpop.f32.mrb[0].mxu0
  %2198 = vmatprep.mubr.f32.mxu0 %v1245
  %2199 = vmatmul.mubr.f32.gmra.mrb[0].mxu0 %v1244
  %v2200 = vpop.f32.mrb[0].mxu0
  %v2201 = vadd.f32 %v1956, %v2200
  %v2202 = vpop.f32.mrb[0].mxu0
  %2203 = vmatprep.mubr.f32.mxu0 %v1254
  %2204 = vmatmul.mubr.f32.gmra.mrb[0].mxu0 %v1253
  %v2205 = vpop.f32.mrb[0].mxu0
  %v2206 = vadd.f32 %v1961, %v2205
  %v2207 = vpop.f32.mrb[0].mxu0
  %2208 = vmatprep.mubr.f32.mxu0 %v1263
  %2209 = vmatmul.mubr.f32.gmra.mrb[0].mxu0 %v1262
  %v2210 = vpop.f32.mrb[0].mxu0
  %v2211 = vadd.f32 %v1966, %v2210
  %v2212 = vpop.f32.mrb[0].mxu0
  %2213 = vmatprep.mubr.f32.mxu0 %v1272
  %2214 = vmatmul.mubr.f32.gmra.mrb[0].mxu0 %v1271
  %v2215 = vpop.f32.mrb[0].mxu0
  %v2216 = vadd.f32 %v1971, %v2215
  %v2217 = vpop.f32.mrb[0].mxu0
  %2218 = vmatprep.mubr.f32.mxu0 %v1281
  %2219 = vmatmul.mubr.f32.gmra.mrb[0].mxu0 %v1280
  %v2220 = vpop.f32.mrb[0].mxu0
  %v2221 = vadd.f32 %v1976, %v2220
  %v2222 = vpop.f32.mrb[0].mxu0
  %2223 = vmatprep.mubr.f32.mxu0 %v1290
  %2224 = vmatmul.mubr.f32.gmra.mrb[0].mxu0 %v1289
  %v2225 = vpop.f32.mrb[0].mxu0
  %v2226 = vadd.f32 %v1981, %v2225
  %v2227 = vpop.f32.mrb[0].mxu0
  %2228 = vmatprep.mubr.f32.mxu0 %v1299
  %2229 = vmatmul.mubr.f32.gmra.mrb[0].mxu0 %v1298
  %v2230 = vpop.f32.mrb[0].mxu0
  %v2231 = vadd.f32 %v1986, %v2230
  %v2232 = vpop.f32.mrb[0].mxu0
  %2233 = vmatprep.mubr.f32.mxu0 %v1308
  %2234 = vmatmul.mubr.f32.gmra.mrb[0].mxu0 %v1307
  %v2235 = vpop.f32.mrb[0].mxu0
  %v2236 = vadd.f32 %v1991, %v2235
  %v2237 = vpop.f32.mrb[0].mxu0
  %2238 = vmatprep.mubr.f32.mxu0 %v1317
  %2239 = vmatmul.mubr.f32.gmra.mrb[0].mxu0 %v1316
  %v2240 = vpop.f32.mrb[0].mxu0
  %v2241 = vadd.f32 %v1996, %v2240
  %v2242 = vpop.f32.mrb[0].mxu0
  %2243 = vmatprep.mubr.f32.mxu0 %v1326
  %2244 = vmatmul.mubr.f32.gmra.mrb[0].mxu0 %v1325
  %v2245 = vpop.f32.mrb[0].mxu0
  %v2246 = vadd.f32 %v2001, %v2245
  %v2247 = vpop.f32.mrb[0].mxu0
  %2248 = vmatprep.mubr.f32.mxu0 %v1335
  %2249 = vmatmul.mubr.f32.gmra.mrb[0].mxu0 %v1334
  %v2250 = vpop.f32.mrb[0].mxu0
  %v2251 = vadd.f32 %v2006, %v2250
  %v2252 = vpop.f32.mrb[0].mxu0
  %2253 = vmatprep.mubr.f32.mxu0 %v1344
  %2254 = vmatmul.mubr.f32.gmra.mrb[0].mxu0 %v1343
  %v2255 = vpop.f32.mrb[0].mxu0
  %v2256 = vadd.f32 %v2011, %v2255
  %v2257 = vpop.f32.mrb[0].mxu0
  %2258 = vmatprep.mubr.f32.mxu0 %v1353
  %2259 = vmatmul.mubr.f32.gmra.mrb[0].mxu0 %v1352
  %v2260 = vpop.f32.mrb[0].mxu0
  %v2261 = vadd.f32 %v2016, %v2260
  %v2262 = vpop.f32.mrb[0].mxu0
  %2263 = vmatprep.mubr.f32.mxu0 %v1362
  %2264 = vmatmul.mubr.f32.gmra.mrb[0].mxu0 %v1361
  %v2265 = vpop.f32.mrb[0].mxu0
  %v2266 = vadd.f32 %v2021, %v2265
  %v2267 = vpop.f32.mrb[0].mxu0
  %2268 = vmatprep.mubr.f32.mxu0 %v1371
  %2269 = vmatmul.mubr.f32.gmra.mrb[0].mxu0 %v1370
  %v2270 = vpop.f32.mrb[0].mxu0
  %v2271 = vadd.f32 %v2026, %v2270
  %v2272 = vpop.f32.mrb[0].mxu0
  %2273 = vmatprep.mubr.f32.mxu0 %v1380
  %2274 = vmatmul.mubr.f32.gmra.mrb[0].mxu0 %v1379
  %v2275 = vpop.f32.mrb[0].mxu0
  %v2276 = vadd.f32 %v2031, %v2275
  %v2277 = vpop.f32.mrb[0].mxu0
  %2278 = vmatprep.mubr.f32.mxu0 %v1389
  %2279 = vmatmul.mubr.f32.gmra.mrb[0].mxu0 %v1388
  %v2280 = vpop.f32.mrb[0].mxu0
  %v2281 = vadd.f32 %v2036, %v2280
  %v2282 = vpop.f32.mrb[0].mxu0
  %2283 = vmatprep.mubr.f32.mxu0 %v1398
  %2284 = vmatmul.mubr.f32.gmra.mrb[0].mxu0 %v1397
  %v2285 = vpop.f32.mrb[0].mxu0
  %v2286 = vadd.f32 %v2041, %v2285
  %v2287 = vpop.f32.mrb[0].mxu0
  %2288 = vmatprep.mubr.f32.mxu0 %v1407
  %2289 = vmatmul.mubr.f32.gmra.mrb[0].mxu0 %v1406
  %v2290 = vpop.f32.mrb[0].mxu0
  %v2291 = vadd.f32 %v2046, %v2290
  %v2292 = vpop.f32.mrb[0].mxu0
  %2293 = vmatprep.mubr.f32.mxu0 %v1416
  %2294 = vmatmul.mubr.f32.gmra.mrb[0].mxu0 %v1415
  %v2295 = vpop.f32.mrb[0].mxu0
  %v2296 = vadd.f32 %v2051, %v2295
  %v2297 = vpop.f32.mrb[0].mxu0
  %2298 = vdwg.mxu0
  %2299 = vmatprep.subr.mxu0 0.0
  %2300 = vmatpush1.msra.mxu0 %v1516
  %2301 = vmatprep.subr.mxu0 0.0
  %2302 = vmatpush1.msra.mxu0 %v1517
  %2303 = vmatprep.subr.mxu0 0.0
  %2304 = vmatpush1.msra.mxu0 %v1518
  %2305 = vmatprep.subr.mxu0 0.0
  %2306 = vmatpush1.msra.mxu0 %v1519
  %2307 = vmatprep.subr.mxu0 0.0
  %2308 = vmatpush1.msra.mxu0 %v1520
  %2309 = vmatprep.subr.mxu0 0.0
  %2310 = vmatpush1.msra.mxu0 %v1521
  %2311 = vmatprep.subr.mxu0 0.0
  %2312 = vmatpush1.msra.mxu0 %v1522
  %2313 = vmatprep.subr.mxu0 0.0
  %2314 = vmatpush1.msra.mxu0 %v1523
  %2315 = vmatprep.subr.mxu0 0.0
  %2316 = vmatpush1.msra.mxu0 %v1524
  %2317 = vmatprep.subr.mxu0 0.0
  %2318 = vmatpush1.msra.mxu0 %v1525
  %2319 = vmatprep.subr.mxu0 0.0
  %2320 = vmatpush1.msra.mxu0 %v1526
  %2321 = vmatprep.subr.mxu0 0.0
  %2322 = vmatpush1.msra.mxu0 %v1527
  %2323 = vmatprep.subr.mxu0 0.0
  %2324 = vmatpush1.msra.mxu0 %v1528
  %2325 = vmatprep.subr.mxu0 0.0
  %2326 = vmatpush1.msra.mxu0 %v1529
  %2327 = vmatprep.subr.mxu0 0.0
  %2328 = vmatpush1.msra.mxu0 %v1530
  %2329 = vmatprep.subr.mxu0 0.0
  %2330 = vmatpush1.msra.mxu0 %v1531
  %2331 = vmatprep.subr.mxu0 0.0
  %2332 = vmatpush1.msra.mxu0 %v1532
  %2333 = vmatprep.subr.mxu0 0.0
  %2334 = vmatpush1.msra.mxu0 %v1533
  %2335 = vmatprep.subr.mxu0 0.0
  %2336 = vmatpush1.msra.mxu0 %v1534
  %2337 = vmatprep.subr.mxu0 0.0
  %2338 = vmatpush1.msra.mxu0 %v1535
  %2339 = vmatprep.subr.mxu0 0.0
  %2340 = vmatpush1.msra.mxu0 %v1536
  %2341 = vmatprep.subr.mxu0 0.0
  %2342 = vmatpush1.msra.mxu0 %v1537
  %2343 = vmatprep.subr.mxu0 0.0
  %2344 = vmatpush1.msra.mxu0 %v1538
  %2345 = vmatprep.subr.mxu0 0.0
  %2346 = vmatpush1.msra.mxu0 %v1539
  %2347 = vmatprep.subr.mxu0 0.0
  %2348 = vmatpush1.msra.mxu0 %v1540
  %2349 = vmatprep.subr.mxu0 0.0
  %2350 = vmatpush1.msra.mxu0 %v1541
  %2351 = vmatprep.subr.mxu0 0.0
  %2352 = vmatpush1.msra.mxu0 %v1542
  %2353 = vmatprep.subr.mxu0 0.0
  %2354 = vmatpush1.msra.mxu0 %v1543
  %2355 = vmatprep.subr.mxu0 0.0
  %2356 = vmatpush1.msra.mxu0 %v1544
  %2357 = vmatprep.subr.mxu0 0.0
  %2358 = vmatpush1.msra.mxu0 %v1545
  %2359 = vmatprep.subr.mxu0 0.0
  %2360 = vmatpush1.msra.mxu0 %v1546
  %2361 = vmatprep.subr.mxu0 0.0
  %2362 = vmatpush1.msra.mxu0 %v1547
  %2363 = vmatprep.mubr.f32.mxu0 %v1103
  %2364 = vmatmul.mubr.f32.gmra.mrb[0].mxu0 %v1102
  %v2365 = vpop.f32.mrb[0].mxu0
  %v2366 = vadd.f32 %v2121, %v2365
  %v2367 = vpop.f32.mrb[0].mxu0
  %2368 = vmatprep.mubr.f32.mxu0 %v1112
  %2369 = vmatmul.mubr.f32.gmra.mrb[0].mxu0 %v1111
  %v2370 = vpop.f32.mrb[0].mxu0
  %v2371 = vadd.f32 %v2126, %v2370
  %v2372 = vpop.f32.mrb[0].mxu0
  %2373 = vmatprep.mubr.f32.mxu0 %v1121
  %2374 = vmatmul.mubr.f32.gmra.mrb[0].mxu0 %v1120
  %v2375 = vpop.f32.mrb[0].mxu0
  %v2376 = vadd.f32 %v2131, %v2375
  %v2377 = vpop.f32.mrb[0].mxu0
  %2378 = vmatprep.mubr.f32.mxu0 %v1130
  %2379 = vmatmul.mubr.f32.gmra.mrb[0].mxu0 %v1129
  %v2380 = vpop.f32.mrb[0].mxu0
  %v2381 = vadd.f32 %v2136, %v2380
  %v2382 = vpop.f32.mrb[0].mxu0
  %2383 = vmatprep.mubr.f32.mxu0 %v1139
  %2384 = vmatmul.mubr.f32.gmra.mrb[0].mxu0 %v1138
  %v2385 = vpop.f32.mrb[0].mxu0
  %v2386 = vadd.f32 %v2141, %v2385
  %v2387 = vpop.f32.mrb[0].mxu0
  %2388 = vmatprep.mubr.f32.mxu0 %v1148
  %2389 = vmatmul.mubr.f32.gmra.mrb[0].mxu0 %v1147
  %v2390 = vpop.f32.mrb[0].mxu0
  %v2391 = vadd.f32 %v2146, %v2390
  %v2392 = vpop.f32.mrb[0].mxu0
  %2393 = vmatprep.mubr.f32.mxu0 %v1157
  %2394 = vmatmul.mubr.f32.gmra.mrb[0].mxu0 %v1156
  %v2395 = vpop.f32.mrb[0].mxu0
  %v2396 = vadd.f32 %v2151, %v2395
  %v2397 = vpop.f32.mrb[0].mxu0
  %2398 = vmatprep.mubr.f32.mxu0 %v1166
  %2399 = vmatmul.mubr.f32.gmra.mrb[0].mxu0 %v1165
  %v2400 = vpop.f32.mrb[0].mxu0
  %v2401 = vadd.f32 %v2156, %v2400
  %v2402 = vpop.f32.mrb[0].mxu0
  %2403 = vmatprep.mubr.f32.mxu0 %v1175
  %2404 = vmatmul.mubr.f32.gmra.mrb[0].mxu0 %v1174
  %v2405 = vpop.f32.mrb[0].mxu0
  %v2406 = vadd.f32 %v2161, %v2405
  %v2407 = vpop.f32.mrb[0].mxu0
  %2408 = vmatprep.mubr.f32.mxu0 %v1184
  %2409 = vmatmul.mubr.f32.gmra.mrb[0].mxu0 %v1183
  %v2410 = vpop.f32.mrb[0].mxu0
  %v2411 = vadd.f32 %v2166, %v2410
  %v2412 = vpop.f32.mrb[0].mxu0
  %2413 = vmatprep.mubr.f32.mxu0 %v1193
  %2414 = vmatmul.mubr.f32.gmra.mrb[0].mxu0 %v1192
  %v2415 = vpop.f32.mrb[0].mxu0
  %v2416 = vadd.f32 %v2171, %v2415
  %v2417 = vpop.f32.mrb[0].mxu0
  %2418 = vmatprep.mubr.f32.mxu0 %v1202
  %2419 = vmatmul.mubr.f32.gmra.mrb[0].mxu0 %v1201
  %v2420 = vpop.f32.mrb[0].mxu0
  %v2421 = vadd.f32 %v2176, %v2420
  %v2422 = vpop.f32.mrb[0].mxu0
  %2423 = vmatprep.mubr.f32.mxu0 %v1211
  %2424 = vmatmul.mubr.f32.gmra.mrb[0].mxu0 %v1210
  %v2425 = vpop.f32.mrb[0].mxu0
  %v2426 = vadd.f32 %v2181, %v2425
  %v2427 = vpop.f32.mrb[0].mxu0
  %2428 = vmatprep.mubr.f32.mxu0 %v1220
  %2429 = vmatmul.mubr.f32.gmra.mrb[0].mxu0 %v1219
  %v2430 = vpop.f32.mrb[0].mxu0
  %v2431 = vadd.f32 %v2186, %v2430
  %v2432 = vpop.f32.mrb[0].mxu0
  %2433 = vmatprep.mubr.f32.mxu0 %v1229
  %2434 = vmatmul.mubr.f32.gmra.mrb[0].mxu0 %v1228
  %v2435 = vpop.f32.mrb[0].mxu0
  %v2436 = vadd.f32 %v2191, %v2435
  %v2437 = vpop.f32.mrb[0].mxu0
  %2438 = vmatprep.mubr.f32.mxu0 %v1238
  %2439 = vmatmul.mubr.f32.gmra.mrb[0].mxu0 %v1237
  %v2440 = vpop.f32.mrb[0].mxu0
  %v2441 = vadd.f32 %v2196, %v2440
  %v2442 = vpop.f32.mrb[0].mxu0
  %2443 = vmatprep.mubr.f32.mxu0 %v1247
  %2444 = vmatmul.mubr.f32.gmra.mrb[0].mxu0 %v1246
  %v2445 = vpop.f32.mrb[0].mxu0
  %v2446 = vadd.f32 %v2201, %v2445
  %v2447 = vpop.f32.mrb[0].mxu0
  %2448 = vmatprep.mubr.f32.mxu0 %v1256
  %2449 = vmatmul.mubr.f32.gmra.mrb[0].mxu0 %v1255
  %v2450 = vpop.f32.mrb[0].mxu0
  %v2451 = vadd.f32 %v2206, %v2450
  %v2452 = vpop.f32.mrb[0].mxu0
  %2453 = vmatprep.mubr.f32.mxu0 %v1265
  %2454 = vmatmul.mubr.f32.gmra.mrb[0].mxu0 %v1264
  %v2455 = vpop.f32.mrb[0].mxu0
  %v2456 = vadd.f32 %v2211, %v2455
  %v2457 = vpop.f32.mrb[0].mxu0
  %2458 = vmatprep.mubr.f32.mxu0 %v1274
  %2459 = vmatmul.mubr.f32.gmra.mrb[0].mxu0 %v1273
  %v2460 = vpop.f32.mrb[0].mxu0
  %v2461 = vadd.f32 %v2216, %v2460
  %v2462 = vpop.f32.mrb[0].mxu0
  %2463 = vmatprep.mubr.f32.mxu0 %v1283
  %2464 = vmatmul.mubr.f32.gmra.mrb[0].mxu0 %v1282
  %v2465 = vpop.f32.mrb[0].mxu0
  %v2466 = vadd.f32 %v2221, %v2465
  %v2467 = vpop.f32.mrb[0].mxu0
  %2468 = vmatprep.mubr.f32.mxu0 %v1292
  %2469 = vmatmul.mubr.f32.gmra.mrb[0].mxu0 %v1291
  %v2470 = vpop.f32.mrb[0].mxu0
  %v2471 = vadd.f32 %v2226, %v2470
  %v2472 = vpop.f32.mrb[0].mxu0
  %2473 = vmatprep.mubr.f32.mxu0 %v1301
  %2474 = vmatmul.mubr.f32.gmra.mrb[0].mxu0 %v1300
  %v2475 = vpop.f32.mrb[0].mxu0
  %v2476 = vadd.f32 %v2231, %v2475
  %v2477 = vpop.f32.mrb[0].mxu0
  %2478 = vmatprep.mubr.f32.mxu0 %v1310
  %2479 = vmatmul.mubr.f32.gmra.mrb[0].mxu0 %v1309
  %v2480 = vpop.f32.mrb[0].mxu0
  %v2481 = vadd.f32 %v2236, %v2480
  %v2482 = vpop.f32.mrb[0].mxu0
  %2483 = vmatprep.mubr.f32.mxu0 %v1319
  %2484 = vmatmul.mubr.f32.gmra.mrb[0].mxu0 %v1318
  %v2485 = vpop.f32.mrb[0].mxu0
  %v2486 = vadd.f32 %v2241, %v2485
  %v2487 = vpop.f32.mrb[0].mxu0
  %2488 = vmatprep.mubr.f32.mxu0 %v1328
  %2489 = vmatmul.mubr.f32.gmra.mrb[0].mxu0 %v1327
  %v2490 = vpop.f32.mrb[0].mxu0
  %v2491 = vadd.f32 %v2246, %v2490
  %v2492 = vpop.f32.mrb[0].mxu0
  %2493 = vmatprep.mubr.f32.mxu0 %v1337
  %2494 = vmatmul.mubr.f32.gmra.mrb[0].mxu0 %v1336
  %v2495 = vpop.f32.mrb[0].mxu0
  %v2496 = vadd.f32 %v2251, %v2495
  %v2497 = vpop.f32.mrb[0].mxu0
  %2498 = vmatprep.mubr.f32.mxu0 %v1346
  %2499 = vmatmul.mubr.f32.gmra.mrb[0].mxu0 %v1345
  %v2500 = vpop.f32.mrb[0].mxu0
  %v2501 = vadd.f32 %v2256, %v2500
  %v2502 = vpop.f32.mrb[0].mxu0
  %2503 = vmatprep.mubr.f32.mxu0 %v1355
  %2504 = vmatmul.mubr.f32.gmra.mrb[0].mxu0 %v1354
  %v2505 = vpop.f32.mrb[0].mxu0
  %v2506 = vadd.f32 %v2261, %v2505
  %v2507 = vpop.f32.mrb[0].mxu0
  %2508 = vmatprep.mubr.f32.mxu0 %v1364
  %2509 = vmatmul.mubr.f32.gmra.mrb[0].mxu0 %v1363
  %v2510 = vpop.f32.mrb[0].mxu0
  %v2511 = vadd.f32 %v2266, %v2510
  %v2512 = vpop.f32.mrb[0].mxu0
  %2513 = vmatprep.mubr.f32.mxu0 %v1373
  %2514 = vmatmul.mubr.f32.gmra.mrb[0].mxu0 %v1372
  %v2515 = vpop.f32.mrb[0].mxu0
  %v2516 = vadd.f32 %v2271, %v2515
  %v2517 = vpop.f32.mrb[0].mxu0
  %2518 = vmatprep.mubr.f32.mxu0 %v1382
  %2519 = vmatmul.mubr.f32.gmra.mrb[0].mxu0 %v1381
  %v2520 = vpop.f32.mrb[0].mxu0
  %v2521 = vadd.f32 %v2276, %v2520
  %v2522 = vpop.f32.mrb[0].mxu0
  %2523 = vmatprep.mubr.f32.mxu0 %v1391
  %2524 = vmatmul.mubr.f32.gmra.mrb[0].mxu0 %v1390
  %v2525 = vpop.f32.mrb[0].mxu0
  %v2526 = vadd.f32 %v2281, %v2525
  %v2527 = vpop.f32.mrb[0].mxu0
  %2528 = vmatprep.mubr.f32.mxu0 %v1400
  %2529 = vmatmul.mubr.f32.gmra.mrb[0].mxu0 %v1399
  %v2530 = vpop.f32.mrb[0].mxu0
  %v2531 = vadd.f32 %v2286, %v2530
  %v2532 = vpop.f32.mrb[0].mxu0
  %2533 = vmatprep.mubr.f32.mxu0 %v1409
  %2534 = vmatmul.mubr.f32.gmra.mrb[0].mxu0 %v1408
  %v2535 = vpop.f32.mrb[0].mxu0
  %v2536 = vadd.f32 %v2291, %v2535
  %v2537 = vpop.f32.mrb[0].mxu0
  %2538 = vmatprep.mubr.f32.mxu0 %v1418
  %2539 = vmatmul.mubr.f32.gmra.mrb[0].mxu0 %v1417
  %v2540 = vpop.f32.mrb[0].mxu0
  %v2541 = vadd.f32 %v2296, %v2540
  %v2542 = vpop.f32.mrb[0].mxu0
  %2543 = vdwg.mxu0
  %2544 = vmatprep.subr.mxu0 0.0
  %2545 = vmatpush1.msra.mxu0 %v1548
  %2546 = vmatprep.subr.mxu0 0.0
  %2547 = vmatpush1.msra.mxu0 %v1549
  %2548 = vmatprep.subr.mxu0 0.0
  %2549 = vmatpush1.msra.mxu0 %v1550
  %2550 = vmatprep.subr.mxu0 0.0
  %2551 = vmatpush1.msra.mxu0 %v1551
  %2552 = vmatprep.subr.mxu0 0.0
  %2553 = vmatpush1.msra.mxu0 %v1552
  %2554 = vmatprep.subr.mxu0 0.0
  %2555 = vmatpush1.msra.mxu0 %v1553
  %2556 = vmatprep.subr.mxu0 0.0
  %2557 = vmatpush1.msra.mxu0 %v1554
  %2558 = vmatprep.subr.mxu0 0.0
  %2559 = vmatpush1.msra.mxu0 %v1555
  %2560 = vmatprep.subr.mxu0 0.0
  %2561 = vmatpush1.msra.mxu0 %v1556
  %2562 = vmatprep.subr.mxu0 0.0
  %2563 = vmatpush1.msra.mxu0 %v1557
  %2564 = vmatprep.subr.mxu0 0.0
  %2565 = vmatpush1.msra.mxu0 %v1558
  %2566 = vmatprep.subr.mxu0 0.0
  %2567 = vmatpush1.msra.mxu0 %v1559
  %2568 = vmatprep.subr.mxu0 0.0
  %2569 = vmatpush1.msra.mxu0 %v1560
  %2570 = vmatprep.subr.mxu0 0.0
  %2571 = vmatpush1.msra.mxu0 %v1561
  %2572 = vmatprep.subr.mxu0 0.0
  %2573 = vmatpush1.msra.mxu0 %v1562
  %2574 = vmatprep.subr.mxu0 0.0
  %2575 = vmatpush1.msra.mxu0 %v1563
  %2576 = vmatprep.subr.mxu0 0.0
  %2577 = vmatpush1.msra.mxu0 0.0
  %2578 = vmatprep.subr.mxu0 0.0
  %2579 = vmatpush1.msra.mxu0 0.0
  %2580 = vmatprep.subr.mxu0 0.0
  %2581 = vmatpush1.msra.mxu0 0.0
  %2582 = vmatprep.subr.mxu0 0.0
  %2583 = vmatpush1.msra.mxu0 0.0
  %2584 = vmatprep.subr.mxu0 0.0
  %2585 = vmatpush1.msra.mxu0 0.0
  %2586 = vmatprep.subr.mxu0 0.0
  %2587 = vmatpush1.msra.mxu0 0.0
  %2588 = vmatprep.subr.mxu0 0.0
  %2589 = vmatpush1.msra.mxu0 0.0
  %2590 = vmatprep.subr.mxu0 0.0
  %2591 = vmatpush1.msra.mxu0 0.0
  %2592 = vmatprep.subr.mxu0 0.0
  %2593 = vmatpush1.msra.mxu0 0.0
  %2594 = vmatprep.subr.mxu0 0.0
  %2595 = vmatpush1.msra.mxu0 0.0
  %2596 = vmatprep.subr.mxu0 0.0
  %2597 = vmatpush1.msra.mxu0 0.0
  %2598 = vmatprep.subr.mxu0 0.0
  %2599 = vmatpush1.msra.mxu0 0.0
  %2600 = vmatprep.subr.mxu0 0.0
  %2601 = vmatpush1.msra.mxu0 0.0
  %2602 = vmatprep.subr.mxu0 0.0
  %2603 = vmatpush1.msra.mxu0 0.0
  %2604 = vmatprep.subr.mxu0 0.0
  %2605 = vmatpush1.msra.mxu0 0.0
  %2606 = vmatprep.subr.mxu0 0.0
  %2607 = vmatpush1.msra.mxu0 0.0
  %2608 = vmatprep.mubr.f32.mxu0 0.0
  %2609 = vmatmul.mubr.f32.gmra.mrb[0].mxu0 %v1104
  %v2610 = vpop.f32.mrb[0].mxu0
  %v2611 = vadd.f32 %v2366, %v2610
  %v2612 = vpop.f32.mrb[0].mxu0
  %2613 = vmatprep.mubr.f32.mxu0 0.0
  %2614 = vmatmul.mubr.f32.gmra.mrb[0].mxu0 %v1113
  %v2615 = vpop.f32.mrb[0].mxu0
  %v2616 = vadd.f32 %v2371, %v2615
  %v2617 = vpop.f32.mrb[0].mxu0
  %2618 = vmatprep.mubr.f32.mxu0 0.0
  %2619 = vmatmul.mubr.f32.gmra.mrb[0].mxu0 %v1122
  %v2620 = vpop.f32.mrb[0].mxu0
  %v2621 = vadd.f32 %v2376, %v2620
  %v2622 = vpop.f32.mrb[0].mxu0
  %2623 = vmatprep.mubr.f32.mxu0 0.0
  %2624 = vmatmul.mubr.f32.gmra.mrb[0].mxu0 %v1131
  %v2625 = vpop.f32.mrb[0].mxu0
  %v2626 = vadd.f32 %v2381, %v2625
  %v2627 = vpop.f32.mrb[0].mxu0
  %2628 = vmatprep.mubr.f32.mxu0 0.0
  %2629 = vmatmul.mubr.f32.gmra.mrb[0].mxu0 %v1140
  %v2630 = vpop.f32.mrb[0].mxu0
  %v2631 = vadd.f32 %v2386, %v2630
  %v2632 = vpop.f32.mrb[0].mxu0
  %2633 = vmatprep.mubr.f32.mxu0 0.0
  %2634 = vmatmul.mubr.f32.gmra.mrb[0].mxu0 %v1149
  %v2635 = vpop.f32.mrb[0].mxu0
  %v2636 = vadd.f32 %v2391, %v2635
  %v2637 = vpop.f32.mrb[0].mxu0
  %2638 = vmatprep.mubr.f32.mxu0 0.0
  %2639 = vmatmul.mubr.f32.gmra.mrb[0].mxu0 %v1158
  %v2640 = vpop.f32.mrb[0].mxu0
  %v2641 = vadd.f32 %v2396, %v2640
  %v2642 = vpop.f32.mrb[0].mxu0
  %2643 = vmatprep.mubr.f32.mxu0 0.0
  %2644 = vmatmul.mubr.f32.gmra.mrb[0].mxu0 %v1167
  %v2645 = vpop.f32.mrb[0].mxu0
  %v2646 = vadd.f32 %v2401, %v2645
  %v2647 = vpop.f32.mrb[0].mxu0
  %2648 = vmatprep.mubr.f32.mxu0 0.0
  %2649 = vmatmul.mubr.f32.gmra.mrb[0].mxu0 %v1176
  %v2650 = vpop.f32.mrb[0].mxu0
  %v2651 = vadd.f32 %v2406, %v2650
  %v2652 = vpop.f32.mrb[0].mxu0
  %2653 = vmatprep.mubr.f32.mxu0 0.0
  %2654 = vmatmul.mubr.f32.gmra.mrb[0].mxu0 %v1185
  %v2655 = vpop.f32.mrb[0].mxu0
  %v2656 = vadd.f32 %v2411, %v2655
  %v2657 = vpop.f32.mrb[0].mxu0
  %2658 = vmatprep.mubr.f32.mxu0 0.0
  %2659 = vmatmul.mubr.f32.gmra.mrb[0].mxu0 %v1194
  %v2660 = vpop.f32.mrb[0].mxu0
  %v2661 = vadd.f32 %v2416, %v2660
  %v2662 = vpop.f32.mrb[0].mxu0
  %2663 = vmatprep.mubr.f32.mxu0 0.0
  %2664 = vmatmul.mubr.f32.gmra.mrb[0].mxu0 %v1203
  %v2665 = vpop.f32.mrb[0].mxu0
  %v2666 = vadd.f32 %v2421, %v2665
  %v2667 = vpop.f32.mrb[0].mxu0
  %2668 = vmatprep.mubr.f32.mxu0 0.0
  %2669 = vmatmul.mubr.f32.gmra.mrb[0].mxu0 %v1212
  %v2670 = vpop.f32.mrb[0].mxu0
  %v2671 = vadd.f32 %v2426, %v2670
  %v2672 = vpop.f32.mrb[0].mxu0
  %2673 = vmatprep.mubr.f32.mxu0 0.0
  %2674 = vmatmul.mubr.f32.gmra.mrb[0].mxu0 %v1221
  %v2675 = vpop.f32.mrb[0].mxu0
  %v2676 = vadd.f32 %v2431, %v2675
  %v2677 = vpop.f32.mrb[0].mxu0
  %2678 = vmatprep.mubr.f32.mxu0 0.0
  %2679 = vmatmul.mubr.f32.gmra.mrb[0].mxu0 %v1230
  %v2680 = vpop.f32.mrb[0].mxu0
  %v2681 = vadd.f32 %v2436, %v2680
  %v2682 = vpop.f32.mrb[0].mxu0
  %2683 = vmatprep.mubr.f32.mxu0 0.0
  %2684 = vmatmul.mubr.f32.gmra.mrb[0].mxu0 %v1239
  %v2685 = vpop.f32.mrb[0].mxu0
  %v2686 = vadd.f32 %v2441, %v2685
  %v2687 = vpop.f32.mrb[0].mxu0
  %2688 = vmatprep.mubr.f32.mxu0 0.0
  %2689 = vmatmul.mubr.f32.gmra.mrb[0].mxu0 %v1248
  %v2690 = vpop.f32.mrb[0].mxu0
  %v2691 = vadd.f32 %v2446, %v2690
  %v2692 = vpop.f32.mrb[0].mxu0
  %2693 = vmatprep.mubr.f32.mxu0 0.0
  %2694 = vmatmul.mubr.f32.gmra.mrb[0].mxu0 %v1257
  %v2695 = vpop.f32.mrb[0].mxu0
  %v2696 = vadd.f32 %v2451, %v2695
  %v2697 = vpop.f32.mrb[0].mxu0
  %2698 = vmatprep.mubr.f32.mxu0 0.0
  %2699 = vmatmul.mubr.f32.gmra.mrb[0].mxu0 %v1266
  %v2700 = vpop.f32.mrb[0].mxu0
  %v2701 = vadd.f32 %v2456, %v2700
  %v2702 = vpop.f32.mrb[0].mxu0
  %2703 = vmatprep.mubr.f32.mxu0 0.0
  %2704 = vmatmul.mubr.f32.gmra.mrb[0].mxu0 %v1275
  %v2705 = vpop.f32.mrb[0].mxu0
  %v2706 = vadd.f32 %v2461, %v2705
  %v2707 = vpop.f32.mrb[0].mxu0
  %2708 = vmatprep.mubr.f32.mxu0 0.0
  %2709 = vmatmul.mubr.f32.gmra.mrb[0].mxu0 %v1284
  %v2710 = vpop.f32.mrb[0].mxu0
  %v2711 = vadd.f32 %v2466, %v2710
  %v2712 = vpop.f32.mrb[0].mxu0
  %2713 = vmatprep.mubr.f32.mxu0 0.0
  %2714 = vmatmul.mubr.f32.gmra.mrb[0].mxu0 %v1293
  %v2715 = vpop.f32.mrb[0].mxu0
  %v2716 = vadd.f32 %v2471, %v2715
  %v2717 = vpop.f32.mrb[0].mxu0
  %2718 = vmatprep.mubr.f32.mxu0 0.0
  %2719 = vmatmul.mubr.f32.gmra.mrb[0].mxu0 %v1302
  %v2720 = vpop.f32.mrb[0].mxu0
  %v2721 = vadd.f32 %v2476, %v2720
  %v2722 = vpop.f32.mrb[0].mxu0
  %2723 = vmatprep.mubr.f32.mxu0 0.0
  %2724 = vmatmul.mubr.f32.gmra.mrb[0].mxu0 %v1311
  %v2725 = vpop.f32.mrb[0].mxu0
  %v2726 = vadd.f32 %v2481, %v2725
  %v2727 = vpop.f32.mrb[0].mxu0
  %2728 = vmatprep.mubr.f32.mxu0 0.0
  %2729 = vmatmul.mubr.f32.gmra.mrb[0].mxu0 %v1320
  %v2730 = vpop.f32.mrb[0].mxu0
  %v2731 = vadd.f32 %v2486, %v2730
  %v2732 = vpop.f32.mrb[0].mxu0
  %2733 = vmatprep.mubr.f32.mxu0 0.0
  %2734 = vmatmul.mubr.f32.gmra.mrb[0].mxu0 %v1329
  %v2735 = vpop.f32.mrb[0].mxu0
  %v2736 = vadd.f32 %v2491, %v2735
  %v2737 = vpop.f32.mrb[0].mxu0
  %2738 = vmatprep.mubr.f32.mxu0 0.0
  %2739 = vmatmul.mubr.f32.gmra.mrb[0].mxu0 %v1338
  %v2740 = vpop.f32.mrb[0].mxu0
  %v2741 = vadd.f32 %v2496, %v2740
  %v2742 = vpop.f32.mrb[0].mxu0
  %2743 = vmatprep.mubr.f32.mxu0 0.0
  %2744 = vmatmul.mubr.f32.gmra.mrb[0].mxu0 %v1347
  %v2745 = vpop.f32.mrb[0].mxu0
  %v2746 = vadd.f32 %v2501, %v2745
  %v2747 = vpop.f32.mrb[0].mxu0
  %2748 = vmatprep.mubr.f32.mxu0 0.0
  %2749 = vmatmul.mubr.f32.gmra.mrb[0].mxu0 %v1356
  %v2750 = vpop.f32.mrb[0].mxu0
  %v2751 = vadd.f32 %v2506, %v2750
  %v2752 = vpop.f32.mrb[0].mxu0
  %2753 = vmatprep.mubr.f32.mxu0 0.0
  %2754 = vmatmul.mubr.f32.gmra.mrb[0].mxu0 %v1365
  %v2755 = vpop.f32.mrb[0].mxu0
  %v2756 = vadd.f32 %v2511, %v2755
  %v2757 = vpop.f32.mrb[0].mxu0
  %2758 = vmatprep.mubr.f32.mxu0 0.0
  %2759 = vmatmul.mubr.f32.gmra.mrb[0].mxu0 %v1374
  %v2760 = vpop.f32.mrb[0].mxu0
  %v2761 = vadd.f32 %v2516, %v2760
  %v2762 = vpop.f32.mrb[0].mxu0
  %2763 = vmatprep.mubr.f32.mxu0 0.0
  %2764 = vmatmul.mubr.f32.gmra.mrb[0].mxu0 %v1383
  %v2765 = vpop.f32.mrb[0].mxu0
  %v2766 = vadd.f32 %v2521, %v2765
  %v2767 = vpop.f32.mrb[0].mxu0
  %2768 = vmatprep.mubr.f32.mxu0 0.0
  %2769 = vmatmul.mubr.f32.gmra.mrb[0].mxu0 %v1392
  %v2770 = vpop.f32.mrb[0].mxu0
  %v2771 = vadd.f32 %v2526, %v2770
  %v2772 = vpop.f32.mrb[0].mxu0
  %2773 = vmatprep.mubr.f32.mxu0 0.0
  %2774 = vmatmul.mubr.f32.gmra.mrb[0].mxu0 %v1401
  %v2775 = vpop.f32.mrb[0].mxu0
  %v2776 = vadd.f32 %v2531, %v2775
  %v2777 = vpop.f32.mrb[0].mxu0
  %2778 = vmatprep.mubr.f32.mxu0 0.0
  %2779 = vmatmul.mubr.f32.gmra.mrb[0].mxu0 %v1410
  %v2780 = vpop.f32.mrb[0].mxu0
  %v2781 = vadd.f32 %v2536, %v2780
  %v2782 = vpop.f32.mrb[0].mxu0
  %2783 = vmatprep.mubr.f32.mxu0 0.0
  %2784 = vmatmul.mubr.f32.gmra.mrb[0].mxu0 %v1419
  %v2785 = vpop.f32.mrb[0].mxu0
  %v2786 = vadd.f32 %v2541, %v2785
  %v2787 = vpop.f32.mrb[0].mxu0
  %2788 = vdwg.mxu0
  %2789 = vst [vmem:[%s4] sm:$0xff] %v2611
  %2790 = vst [vmem:[%s4 + $0x8] sm:$0xff] %v2616
  %2791 = vst [vmem:[%s4 + $0x10] sm:$0xff] %v2621
  %2792 = vst [vmem:[%s4 + $0x18] sm:$0xff] %v2626
  %2793 = vst [vmem:[%s4 + $0x20] sm:$0xff] %v2631
  %2794 = vst [vmem:[%s4 + $0x28] sm:$0xff] %v2636
  %2795 = vst [vmem:[%s4 + $0x30] sm:$0xff] %v2641
  %2796 = vst [vmem:[%s4 + $0x38] sm:$0xff] %v2646
  %2797 = vst [vmem:[%s4 + $0x40] sm:$0xff] %v2651
  %2798 = vst [vmem:[%s4 + $0x48] sm:$0xff] %v2656
  %2799 = vst [vmem:[%s4 + $0x50] sm:$0xff] %v2661
  %2800 = vst [vmem:[%s4 + $0x58] sm:$0xff] %v2666
  %2801 = vst [vmem:[%s4 + $0x60] sm:$0xff] %v2671
  %2802 = vst [vmem:[%s4 + $0x68] sm:$0xff] %v2676
  %2803 = vst [vmem:[%s4 + $0x70] sm:$0xff] %v2681
  %2804 = vst [vmem:[%s4 + $0x78] sm:$0xff] %v2686
  %2805 = vst [vmem:[%s4 + $0x80] sm:$0xff] %v2691
  %2806 = vst [vmem:[%s4 + $0x88] sm:$0xff] %v2696
  %2807 = vst [vmem:[%s4 + $0x90] sm:$0xff] %v2701
  %2808 = vst [vmem:[%s4 + $0x98] sm:$0xff] %v2706
  %2809 = vst [vmem:[%s4 + $0xa0] sm:$0xff] %v2711
  %2810 = vst [vmem:[%s4 + $0xa8] sm:$0xff] %v2716
  %2811 = vst [vmem:[%s4 + $0xb0] sm:$0xff] %v2721
  %2812 = vst [vmem:[%s4 + $0xb8] sm:$0xff] %v2726
  %2813 = vst [vmem:[%s4 + $0xc0] sm:$0xff] %v2731
  %2814 = vst [vmem:[%s4 + $0xc8] sm:$0xff] %v2736
  %2815 = vst [vmem:[%s4 + $0xd0] sm:$0xff] %v2741
  %2816 = vst [vmem:[%s4 + $0xd8] sm:$0xff] %v2746
  %2817 = vst [vmem:[%s4 + $0xe0] sm:$0xff] %v2751
  %2818 = vst [vmem:[%s4 + $0xe8] sm:$0xff] %v2756
  %2819 = vst [vmem:[%s4 + $0xf0] sm:$0xff] %v2761
  %2820 = vst [vmem:[%s4 + $0xf8] sm:$0xff] %v2766
  %2821 = vst [vmem:[%s4 + $0x100] sm:$0xff] %v2771
  %2822 = vst [vmem:[%s4 + $0x108] sm:$0xff] %v2776
  %2823 = vst [vmem:[%s4 + $0x110] sm:$0xff] %v2781
  %2824 = vst [vmem:[%s4 + $0x118] sm:$0xff] %v2786
  %s2825 = smul.u32 0, 288
  %v2826 = vlaneseq
  %v2827 = vshrl.u32 %v2826, 7
  %v2828 = vadd.s32 %v2827, 8
  %v2829 = vadd.s32 %v2827, 16
  %v2830 = vadd.s32 %v2827, 24
  %v2831 = vadd.s32 %v2827, 32
  %v2832 = vadd.s32 %v2827, 40
  %v2833 = vadd.s32 %v2827, 48
  %v2834 = vadd.s32 %v2827, 56
  %v2835 = vadd.s32 %v2827, 64
  %v2836 = vadd.s32 %v2827, 72
  %v2837 = vadd.s32 %v2827, 80
  %v2838 = vadd.s32 %v2827, 88
  %v2839 = vadd.s32 %v2827, 96
  %v2840 = vadd.s32 %v2827, 104
  %v2841 = vadd.s32 %v2827, 112
  %v2842 = vadd.s32 %v2827, 120
  %v2843 = vadd.s32 %v2827, 128
  %v2844 = vadd.s32 %v2827, 136
  %v2845 = vadd.s32 %v2827, 144
  %v2846 = vadd.s32 %v2827, 152
  %v2847 = vadd.s32 %v2827, 160
  %v2848 = vadd.s32 %v2827, 168
  %v2849 = vadd.s32 %v2827, 176
  %v2850 = vadd.s32 %v2827, 184
  %v2851 = vadd.s32 %v2827, 192
  %v2852 = vadd.s32 %v2827, 200
  %v2853 = vadd.s32 %v2827, 208
  %v2854 = vadd.s32 %v2827, 216
  %v2855 = vadd.s32 %v2827, 224
  %v2856 = vadd.s32 %v2827, 232
  %v2857 = vadd.s32 %v2827, 240
  %v2858 = vadd.s32 %v2827, 248
  %v2859 = vadd.s32 %v2827, 256
  %v2860 = vadd.s32 %v2827, 264
  %v2861 = vadd.s32 %v2827, 272
  %v2862 = vadd.s32 %v2827, 280
  %v2863 = vstv %s2825
  %v2864 = vadd.s32 %v2863, %v2827
  %v2865 = vadd.s32 %v2863, %v2828
  %v2866 = vadd.s32 %v2863, %v2829
  %v2867 = vadd.s32 %v2863, %v2830
  %v2868 = vadd.s32 %v2863, %v2831
  %v2869 = vadd.s32 %v2863, %v2832
  %v2870 = vadd.s32 %v2863, %v2833
  %v2871 = vadd.s32 %v2863, %v2834
  %v2872 = vadd.s32 %v2863, %v2835
  %v2873 = vadd.s32 %v2863, %v2836
  %v2874 = vadd.s32 %v2863, %v2837
  %v2875 = vadd.s32 %v2863, %v2838
  %v2876 = vadd.s32 %v2863, %v2839
  %v2877 = vadd.s32 %v2863, %v2840
  %v2878 = vadd.s32 %v2863, %v2841
  %v2879 = vadd.s32 %v2863, %v2842
  %v2880 = vadd.s32 %v2863, %v2843
  %v2881 = vadd.s32 %v2863, %v2844
  %v2882 = vadd.s32 %v2863, %v2845
  %v2883 = vadd.s32 %v2863, %v2846
  %v2884 = vadd.s32 %v2863, %v2847
  %v2885 = vadd.s32 %v2863, %v2848
  %v2886 = vadd.s32 %v2863, %v2849
  %v2887 = vadd.s32 %v2863, %v2850
  %v2888 = vadd.s32 %v2863, %v2851
  %v2889 = vadd.s32 %v2863, %v2852
  %v2890 = vadd.s32 %v2863, %v2853
  %v2891 = vadd.s32 %v2863, %v2854
  %v2892 = vadd.s32 %v2863, %v2855
  %v2893 = vadd.s32 %v2863, %v2856
  %v2894 = vadd.s32 %v2863, %v2857
  %v2895 = vadd.s32 %v2863, %v2858
  %v2896 = vadd.s32 %v2863, %v2859
  %v2897 = vadd.s32 %v2863, %v2860
  %v2898 = vadd.s32 %v2863, %v2861
  %v2899 = vadd.s32 %v2863, %v2862
  %vm2900 = vcmp.lt.s32.totalorder %v2864, 288
  %vm2901 = vcmp.lt.s32.totalorder %v2865, 288
  %vm2902 = vcmp.lt.s32.totalorder %v2866, 288
  %vm2903 = vcmp.lt.s32.totalorder %v2867, 288
  %vm2904 = vcmp.lt.s32.totalorder %v2868, 288
  %vm2905 = vcmp.lt.s32.totalorder %v2869, 288
  %vm2906 = vcmp.lt.s32.totalorder %v2870, 288
  %vm2907 = vcmp.lt.s32.totalorder %v2871, 288
  %vm2908 = vcmp.lt.s32.totalorder %v2872, 288
  %vm2909 = vcmp.lt.s32.totalorder %v2873, 288
  %vm2910 = vcmp.lt.s32.totalorder %v2874, 288
  %vm2911 = vcmp.lt.s32.totalorder %v2875, 288
  %vm2912 = vcmp.lt.s32.totalorder %v2876, 288
  %vm2913 = vcmp.lt.s32.totalorder %v2877, 288
  %vm2914 = vcmp.lt.s32.totalorder %v2878, 288
  %vm2915 = vcmp.lt.s32.totalorder %v2879, 288
  %vm2916 = vcmp.lt.s32.totalorder %v2880, 288
  %vm2917 = vcmp.lt.s32.totalorder %v2881, 288
  %vm2918 = vcmp.lt.s32.totalorder %v2882, 288
  %vm2919 = vcmp.lt.s32.totalorder %v2883, 288
  %vm2920 = vcmp.lt.s32.totalorder %v2884, 288
  %vm2921 = vcmp.lt.s32.totalorder %v2885, 288
  %vm2922 = vcmp.lt.s32.totalorder %v2886, 288
  %vm2923 = vcmp.lt.s32.totalorder %v2887, 288
  %vm2924 = vcmp.lt.s32.totalorder %v2888, 288
  %vm2925 = vcmp.lt.s32.totalorder %v2889, 288
  %vm2926 = vcmp.lt.s32.totalorder %v2890, 288
  %vm2927 = vcmp.lt.s32.totalorder %v2891, 288
  %vm2928 = vcmp.lt.s32.totalorder %v2892, 288
  %vm2929 = vcmp.lt.s32.totalorder %v2893, 288
  %vm2930 = vcmp.lt.s32.totalorder %v2894, 288
  %vm2931 = vcmp.lt.s32.totalorder %v2895, 288
  %vm2932 = vcmp.lt.s32.totalorder %v2896, 288
  %vm2933 = vcmp.lt.s32.totalorder %v2897, 288
  %vm2934 = vcmp.lt.s32.totalorder %v2898, 288
  %vm2935 = vcmp.lt.s32.totalorder %v2899, 288
  %v2936 = vsel %vm2900, 1, 0
  %v2937 = vsel %vm2901, 1, 0
  %v2938 = vsel %vm2902, 1, 0
  %v2939 = vsel %vm2903, 1, 0
  %v2940 = vsel %vm2904, 1, 0
  %v2941 = vsel %vm2905, 1, 0
  %v2942 = vsel %vm2906, 1, 0
  %v2943 = vsel %vm2907, 1, 0
  %v2944 = vsel %vm2908, 1, 0
  %v2945 = vsel %vm2909, 1, 0
  %v2946 = vsel %vm2910, 1, 0
  %v2947 = vsel %vm2911, 1, 0
  %v2948 = vsel %vm2912, 1, 0
  %v2949 = vsel %vm2913, 1, 0
  %v2950 = vsel %vm2914, 1, 0
  %v2951 = vsel %vm2915, 1, 0
  %v2952 = vsel %vm2916, 1, 0
  %v2953 = vsel %vm2917, 1, 0
  %v2954 = vsel %vm2918, 1, 0
  %v2955 = vsel %vm2919, 1, 0
  %v2956 = vsel %vm2920, 1, 0
  %v2957 = vsel %vm2921, 1, 0
  %v2958 = vsel %vm2922, 1, 0
  %v2959 = vsel %vm2923, 1, 0
  %v2960 = vsel %vm2924, 1, 0
  %v2961 = vsel %vm2925, 1, 0
  %v2962 = vsel %vm2926, 1, 0
  %v2963 = vsel %vm2927, 1, 0
  %v2964 = vsel %vm2928, 1, 0
  %v2965 = vsel %vm2929, 1, 0
  %v2966 = vsel %vm2930, 1, 0
  %v2967 = vsel %vm2931, 1, 0
  %v2968 = vsel %vm2932, 1, 0
  %v2969 = vsel %vm2933, 1, 0
  %v2970 = vsel %vm2934, 1, 0
  %v2971 = vsel %vm2935, 1, 0
  %vm2972 = vcmp.eq.s32.totalorder %v2936, 1
  %vm2973 = vcmp.eq.s32.totalorder %v2937, 1
  %vm2974 = vcmp.eq.s32.totalorder %v2938, 1
  %vm2975 = vcmp.eq.s32.totalorder %v2939, 1
  %vm2976 = vcmp.eq.s32.totalorder %v2940, 1
  %vm2977 = vcmp.eq.s32.totalorder %v2941, 1
  %vm2978 = vcmp.eq.s32.totalorder %v2942, 1
  %vm2979 = vcmp.eq.s32.totalorder %v2943, 1
  %vm2980 = vcmp.eq.s32.totalorder %v2944, 1
  %vm2981 = vcmp.eq.s32.totalorder %v2945, 1
  %vm2982 = vcmp.eq.s32.totalorder %v2946, 1
  %vm2983 = vcmp.eq.s32.totalorder %v2947, 1
  %vm2984 = vcmp.eq.s32.totalorder %v2948, 1
  %vm2985 = vcmp.eq.s32.totalorder %v2949, 1
  %vm2986 = vcmp.eq.s32.totalorder %v2950, 1
  %vm2987 = vcmp.eq.s32.totalorder %v2951, 1
  %vm2988 = vcmp.eq.s32.totalorder %v2952, 1
  %vm2989 = vcmp.eq.s32.totalorder %v2953, 1
  %vm2990 = vcmp.eq.s32.totalorder %v2954, 1
  %vm2991 = vcmp.eq.s32.totalorder %v2955, 1
  %vm2992 = vcmp.eq.s32.totalorder %v2956, 1
  %vm2993 = vcmp.eq.s32.totalorder %v2957, 1
  %vm2994 = vcmp.eq.s32.totalorder %v2958, 1
  %vm2995 = vcmp.eq.s32.totalorder %v2959, 1
  %vm2996 = vcmp.eq.s32.totalorder %v2960, 1
  %vm2997 = vcmp.eq.s32.totalorder %v2961, 1
  %vm2998 = vcmp.eq.s32.totalorder %v2962, 1
  %vm2999 = vcmp.eq.s32.totalorder %v2963, 1
  %vm3000 = vcmp.eq.s32.totalorder %v2964, 1
  %vm3001 = vcmp.eq.s32.totalorder %v2965, 1
  %vm3002 = vcmp.eq.s32.totalorder %v2966, 1
  %vm3003 = vcmp.eq.s32.totalorder %v2967, 1
  %vm3004 = vcmp.eq.s32.totalorder %v2968, 1
  %vm3005 = vcmp.eq.s32.totalorder %v2969, 1
  %vm3006 = vcmp.eq.s32.totalorder %v2970, 1
  %vm3007 = vcmp.eq.s32.totalorder %v2971, 1
  %v3008 = vsel %vm2972, %v2611, 0.0
  %v3009 = vsel %vm2973, %v2616, 0.0
  %v3010 = vsel %vm2974, %v2621, 0.0
  %v3011 = vsel %vm2975, %v2626, 0.0
  %v3012 = vsel %vm2976, %v2631, 0.0
  %v3013 = vsel %vm2977, %v2636, 0.0
  %v3014 = vsel %vm2978, %v2641, 0.0
  %v3015 = vsel %vm2979, %v2646, 0.0
  %v3016 = vsel %vm2980, %v2651, 0.0
  %v3017 = vsel %vm2981, %v2656, 0.0
  %v3018 = vsel %vm2982, %v2661, 0.0
  %v3019 = vsel %vm2983, %v2666, 0.0
  %v3020 = vsel %vm2984, %v2671, 0.0
  %v3021 = vsel %vm2985, %v2676, 0.0
  %v3022 = vsel %vm2986, %v2681, 0.0
  %v3023 = vsel %vm2987, %v2686, 0.0
  %v3024 = vsel %vm2988, %v2691, 0.0
  %v3025 = vsel %vm2989, %v2696, 0.0
  %v3026 = vsel %vm2990, %v2701, 0.0
  %v3027 = vsel %vm2991, %v2706, 0.0
  %v3028 = vsel %vm2992, %v2711, 0.0
  %v3029 = vsel %vm2993, %v2716, 0.0
  %v3030 = vsel %vm2994, %v2721, 0.0
  %v3031 = vsel %vm2995, %v2726, 0.0
  %v3032 = vsel %vm2996, %v2731, 0.0
  %v3033 = vsel %vm2997, %v2736, 0.0
  %v3034 = vsel %vm2998, %v2741, 0.0
  %v3035 = vsel %vm2999, %v2746, 0.0
  %v3036 = vsel %vm3000, %v2751, 0.0
  %v3037 = vsel %vm3001, %v2756, 0.0
  %v3038 = vsel %vm3002, %v2761, 0.0
  %v3039 = vsel %vm3003, %v2766, 0.0
  %v3040 = vsel %vm3004, %v2771, 0.0
  %v3041 = vsel %vm3005, %v2776, 0.0
  %v3042 = vsel %vm3006, %v2781, 0.0
  %v3043 = vsel %vm3007, %v2786, 0.0
  %v3044 = vld [vmem:[%s5] sm:$0x1]
  %v3045 = vadd.f32 %v3008, %v3009
  %v3046 = vadd.f32 %v3045, %v3010
  %v3047 = vadd.f32 %v3046, %v3011
  %v3048 = vadd.f32 %v3047, %v3012
  %v3049 = vadd.f32 %v3048, %v3013
  %v3050 = vadd.f32 %v3049, %v3014
  %v3051 = vadd.f32 %v3050, %v3015
  %v3052 = vadd.f32 %v3051, %v3016
  %v3053 = vadd.f32 %v3052, %v3017
  %v3054 = vadd.f32 %v3053, %v3018
  %v3055 = vadd.f32 %v3054, %v3019
  %v3056 = vadd.f32 %v3055, %v3020
  %v3057 = vadd.f32 %v3056, %v3021
  %v3058 = vadd.f32 %v3057, %v3022
  %v3059 = vadd.f32 %v3058, %v3023
  %v3060 = vadd.f32 %v3059, %v3024
  %v3061 = vadd.f32 %v3060, %v3025
  %v3062 = vadd.f32 %v3061, %v3026
  %v3063 = vadd.f32 %v3062, %v3027
  %v3064 = vadd.f32 %v3063, %v3028
  %v3065 = vadd.f32 %v3064, %v3029
  %v3066 = vadd.f32 %v3065, %v3030
  %v3067 = vadd.f32 %v3066, %v3031
  %v3068 = vadd.f32 %v3067, %v3032
  %v3069 = vadd.f32 %v3068, %v3033
  %v3070 = vadd.f32 %v3069, %v3034
  %v3071 = vadd.f32 %v3070, %v3035
  %v3072 = vadd.f32 %v3071, %v3036
  %v3073 = vadd.f32 %v3072, %v3037
  %v3074 = vadd.f32 %v3073, %v3038
  %v3075 = vadd.f32 %v3074, %v3039
  %v3076 = vadd.f32 %v3075, %v3040
  %v3077 = vadd.f32 %v3076, %v3041
  %v3078 = vadd.f32 %v3077, %v3042
  %v3079 = vadd.f32 %v3078, %v3043
  %v3080 = vrot.slane %v3079, 4
  %v3081 = vadd.f32 %v3079, %v3080
  %v3082 = vrot.slane %v3081, 2
  %v3083 = vadd.f32 %v3081, %v3082
  %v3084 = vrot.slane %v3083, 1
  %v3085 = vadd.f32 %v3083, %v3084
  %v3086 = vadd.f32 %v3044, %v3085
  %3087 = vst [vmem:[%s5] sm:$0x1] %v3086
  %v3088 = vld [vmem:[%s6] sm:$0x1]
  %v3089 = vmul.f32 %v3008, %v3008
  %v3090 = vmul.f32 %v3009, %v3009
  %v3091 = vmul.f32 %v3010, %v3010
  %v3092 = vmul.f32 %v3011, %v3011
  %v3093 = vmul.f32 %v3012, %v3012
  %v3094 = vmul.f32 %v3013, %v3013
  %v3095 = vmul.f32 %v3014, %v3014
  %v3096 = vmul.f32 %v3015, %v3015
  %v3097 = vmul.f32 %v3016, %v3016
  %v3098 = vmul.f32 %v3017, %v3017
  %v3099 = vmul.f32 %v3018, %v3018
  %v3100 = vmul.f32 %v3019, %v3019
  %v3101 = vmul.f32 %v3020, %v3020
  %v3102 = vmul.f32 %v3021, %v3021
  %v3103 = vmul.f32 %v3022, %v3022
  %v3104 = vmul.f32 %v3023, %v3023
  %v3105 = vmul.f32 %v3024, %v3024
  %v3106 = vmul.f32 %v3025, %v3025
  %v3107 = vmul.f32 %v3026, %v3026
  %v3108 = vmul.f32 %v3027, %v3027
  %v3109 = vmul.f32 %v3028, %v3028
  %v3110 = vmul.f32 %v3029, %v3029
  %v3111 = vmul.f32 %v3030, %v3030
  %v3112 = vmul.f32 %v3031, %v3031
  %v3113 = vmul.f32 %v3032, %v3032
  %v3114 = vmul.f32 %v3033, %v3033
  %v3115 = vmul.f32 %v3034, %v3034
  %v3116 = vmul.f32 %v3035, %v3035
  %v3117 = vmul.f32 %v3036, %v3036
  %v3118 = vmul.f32 %v3037, %v3037
  %v3119 = vmul.f32 %v3038, %v3038
  %v3120 = vmul.f32 %v3039, %v3039
  %v3121 = vmul.f32 %v3040, %v3040
  %v3122 = vmul.f32 %v3041, %v3041
  %v3123 = vmul.f32 %v3042, %v3042
  %v3124 = vmul.f32 %v3043, %v3043
  %v3125 = vadd.f32 %v3089, %v3090
  %v3126 = vadd.f32 %v3125, %v3091
  %v3127 = vadd.f32 %v3126, %v3092
  %v3128 = vadd.f32 %v3127, %v3093
  %v3129 = vadd.f32 %v3128, %v3094
  %v3130 = vadd.f32 %v3129, %v3095
  %v3131 = vadd.f32 %v3130, %v3096
  %v3132 = vadd.f32 %v3131, %v3097
  %v3133 = vadd.f32 %v3132, %v3098
  %v3134 = vadd.f32 %v3133, %v3099
  %v3135 = vadd.f32 %v3134, %v3100
  %v3136 = vadd.f32 %v3135, %v3101
  %v3137 = vadd.f32 %v3136, %v3102
  %v3138 = vadd.f32 %v3137, %v3103
  %v3139 = vadd.f32 %v3138, %v3104
  %v3140 = vadd.f32 %v3139, %v3105
  %v3141 = vadd.f32 %v3140, %v3106
  %v3142 = vadd.f32 %v3141, %v3107
  %v3143 = vadd.f32 %v3142, %v3108
  %v3144 = vadd.f32 %v3143, %v3109
  %v3145 = vadd.f32 %v3144, %v3110
  %v3146 = vadd.f32 %v3145, %v3111
  %v3147 = vadd.f32 %v3146, %v3112
  %v3148 = vadd.f32 %v3147, %v3113
  %v3149 = vadd.f32 %v3148, %v3114
  %v3150 = vadd.f32 %v3149, %v3115
  %v3151 = vadd.f32 %v3150, %v3116
  %v3152 = vadd.f32 %v3151, %v3117
  %v3153 = vadd.f32 %v3152, %v3118
  %v3154 = vadd.f32 %v3153, %v3119
  %v3155 = vadd.f32 %v3154, %v3120
  %v3156 = vadd.f32 %v3155, %v3121
  %v3157 = vadd.f32 %v3156, %v3122
  %v3158 = vadd.f32 %v3157, %v3123
  %v3159 = vadd.f32 %v3158, %v3124
  %v3160 = vrot.slane %v3159, 4
  %v3161 = vadd.f32 %v3159, %v3160
  %v3162 = vrot.slane %v3161, 2
  %v3163 = vadd.f32 %v3161, %v3162
  %v3164 = vrot.slane %v3163, 1
  %v3165 = vadd.f32 %v3163, %v3164
  %v3166 = vadd.f32 %v3088, %v3165
  %3167 = vst [vmem:[%s6] sm:$0x1] %v3166
  // Predicated region
  $region22: #{decoder_block_forward.4} parent=0 // pred_check
    _
  $region23: #{decoder_block_forward.4} parent=0 // pred_check_branch
    %3169 = sbr.rel (0) target = $region25
  $region24: #{decoder_block_forward.4} parent=0 // pred_region
    _
  $region25: #{decoder_block_forward.4} parent=0 // pred_fallthru
    _
  // Predicated region
  $region26: #{decoder_block_forward.4} parent=0 // pred_check
    _
  $region27: #{decoder_block_forward.4} parent=0 // pred_check_branch
    %3171 = sbr.rel (0) target = $region29
  $region28: #{decoder_block_forward.4} parent=0 // pred_region
    _
  $region29: #{decoder_block_forward.4} parent=0 // pred_fallthru
    _
  // Predicated region
  $region30: #{decoder_block_forward.4} parent=0 // pred_check
    _
  $region31: #{decoder_block_forward.4} parent=0 // pred_check_branch
    %3173 = sbr.rel (0) target = $region33
  $region32: #{decoder_block_forward.4} parent=0 // pred_region
    _
  $region33: #{decoder_block_forward.4} parent=0 // pred_fallthru
    _
  // Predicated region
  $region34: #{decoder_block_forward.4} parent=0 // pred_check
    _
  $region35: #{decoder_block_forward.4} parent=0 // pred_check_branch
    %3175 = sbr.rel (0) target = $region37
  $region36: #{decoder_block_forward.4} parent=0 // pred_region
    _
  $region37: #{decoder_block_forward.4} parent=0 // pred_fallthru
    _
  // Predicated region
  $region38: #{decoder_block_forward.4} parent=0 // pred_check
    _
  $region39: #{decoder_block_forward.4} parent=0 // pred_check_branch
    %3177 = sbr.rel (0) target = $region41
  $region40: #{decoder_block_forward.4} parent=0 // pred_region
    _
  $region41: #{decoder_block_forward.4} parent=0 // pred_fallthru
    _
  // Predicated region
  $region42: #{decoder_block_forward.4} parent=0 // pred_check
    _
  $region43: #{decoder_block_forward.4} parent=0 // pred_check_branch
    %3179 = sbr.rel (0) target = $region45
  $region44: #{decoder_block_forward.4} parent=0 // pred_region
    _
  $region45: #{decoder_block_forward.4} parent=0 // pred_fallthru
    _

</llo_original>
